<compile_context>
chip_gen: v5e
topology: v5e:2x2
jax: 0.10.0
libtpu: 0.0.40
codegen_flags: <defaults>
</compile_context>

<pallas_src>
import jax
import jax.numpy as jnp
from jax import lax
from jax.experimental import pallas as pl
from jax.experimental.pallas import tpu as pltpu

# ----------------------- model hyper-params (small) -----------------------
VOCAB_SIZE = 50
EMBEDDING_DIM = 32
HIDDEN_DIM = 32
N_LAYERS = 3
OUTPUT_DIM = 3
BIDIRECTIONAL = True
BATCH = 2
SEQ_LEN = 8
PAD_INDEX = 0

BP = 8                        # batch padded to a full sublane count
OPAD = 128                    # FC output padded to a full lane width
D_IN = 2 * HIDDEN_DIM         # uniform layer-input width (E <= 2H, zero-padded)
GATES = 8 * HIDDEN_DIM        # packed gate width (4 gates x 2 directions) = 256


# ----------------------------- fused Pallas kernel -------------------------
def fused_lstm_kernel(x_ref, len_ref, wih_ref, whh_ref, b_ref, fcw_ref, fcb_ref,
                      out_ref, act_a, act_b, pg_ref):
    """3-layer bi-LSTM over the whole sequence + final linear, single call.

    x_ref  : (T*Bp, 2H) f32  layer-0 input (time-major rows, embedding zero-padded)
    len_ref: (Bp, 1) int32   sequence lengths (0 for padded batch rows)
    wih_ref: (L, 2H, 8H) bf16  packed input-projection weights (both dirs, g x2)
    whh_ref: (L, 2H, 8H) bf16  packed recurrent weights (dir-block-diag, g x2)
    b_ref  : (L, 1, 8H)  f32   packed combined biases (g entries x2)
    fcw_ref: (2H, OPAD) bf16, fcb_ref: (1, OPAD) f32  lane-padded FC params
    out_ref: (Bp, OPAD) f32 logits (padded)
    act_a/act_b: (T*Bp, 2H) f32 ping-pong next-layer-input buffers
    pg_ref : (T*Bp, 8H) f32 pre-gate buffer (x@W_ih + b, both directions)

    Packed gate column layout (width 8H): [i_f i_b f_f f_b g_f g_b o_f o_b],
    each block H wide.  State layout: h/c are (Bp, 2H) with fwd in [:, :H] and
    bwd in [:, H:2H].
    """
    TB, Din = act_a.shape
    H = Din // 2
    Bp = len_ref.shape[0]
    T = TB // Bp
    n_layers = wih_ref.shape[0]
    G = 8 * H

    len_vec = len_ref[...]                                        # (Bp, 1) int32

    # --- masks, hoisted once (shared by every layer) -------------------------
    lane_s = lax.broadcasted_iota(jnp.int32, (Bp, 2 * H), 1)
    is_fwd_state = lane_s < H                                     # (Bp, 2H)
    len_b = jnp.broadcast_to(len_vec, (Bp, 2 * H))                # (Bp, 2H)

    lane_g = lax.broadcasted_iota(jnp.int32, (Bp, G), 1)
    # 2H is a power of two -> bitwise AND instead of remainder
    fwd_gate_mask = jnp.bitwise_and(lane_g, 2 * H - 1) < H        # (Bp, G)
    g_gate_mask = (lane_g >= 4 * H) & (lane_g < 6 * H)            # (Bp, G)

    # per-step valid masks: fwd lanes use step s, bwd lanes use step T-1-s
    step_masks = [len_b > jnp.where(is_fwd_state, s, T - 1 - s) for s in range(T)]

    bufs = [act_a, act_b]
    cur_in = x_ref
    h = jnp.zeros((Bp, 2 * H), jnp.float32)

    for layer in range(n_layers):
        wih_l = wih_ref[layer]                                    # (2H, 8H) bf16
        whh_l = whh_ref[layer]                                    # (2H, 8H) bf16
        b_l = b_ref[layer]                                        # (1, 8H)  f32

        # ---- input projection for ALL timesteps + both directions, bias folded
        x_all = cur_in[...]                                       # (T*Bp, 2H) f32
        pg_ref[...] = jnp.dot(x_all.astype(jnp.bfloat16), wih_l,
                              preferred_element_type=jnp.float32) + b_l

        out_buf = bufs[layer % 2] if layer + 1 < n_layers else None

        h = jnp.zeros((Bp, 2 * H), jnp.float32)
        c = jnp.zeros((Bp, 2 * H), jnp.float32)

        # ---- serial recurrence (fully unrolled, static T) -------------------
        for s in range(T):
            sr = T - 1 - s
            # one fused recurrent matmul for both directions (block-diag W_hh)
            rec = jnp.dot(h.astype(jnp.bfloat16), whh_l,
                          preferred_element_type=jnp.float32)     # (Bp, 8H)
            # fwd gate lanes take time-s pre-gates, bwd lanes take time-(T-1-s)
            pg = jnp.where(fwd_gate_mask,
                           pg_ref[s * Bp:(s + 1) * Bp, :],
                           pg_ref[sr * Bp:(sr + 1) * Bp, :])      # (Bp, 8H)
            z = pg + rec
            a = jax.nn.sigmoid(z)                                 # single EUP pass
            a = jnp.where(g_gate_mask, 2.0 * a - 1.0, a)          # tanh via sigmoid
            i_g = a[:, 0:2 * H]
            f_g = a[:, 2 * H:4 * H]
            g_g = a[:, 4 * H:6 * H]
            o_g = a[:, 6 * H:8 * H]
            c_new = f_g * c + i_g * g_g
            h_new = o_g * jnp.tanh(c_new)

            m = step_masks[s]                                     # (Bp, 2H) bool
            h = jnp.where(m, h_new, h)                            # mask-carry
            c = jnp.where(m, c_new, c)

            if out_buf is not None:                               # feed next layer
                y = jnp.where(m, h_new, 0.0)
                out_buf[s * Bp:(s + 1) * Bp, 0:H] = y[:, 0:H]         # fwd @ t=s
                out_buf[sr * Bp:(sr + 1) * Bp, H:2 * H] = y[:, H:2 * H]  # bwd @ t=sr

        # TODO(synk): inter-layer LSTM dropout (train-mode only) skipped -> eval.
        cur_in = out_buf

    # epilogue: final hidden already laid out as [h_fwd | h_bwd] -> linear
    # TODO(synk): dropout on the concatenated hidden (train-mode only) -> identity.
    out_ref[...] = (jnp.dot(h.astype(jnp.bfloat16), fcw_ref[...],
                            preferred_element_type=jnp.float32) + fcb_ref[...])


# --------------------------- parameter creation -----------------------------
def init_params(key):
    """Returns (packed kernel params, raw params for the pure-JAX reference)."""
    params, raw = {}, {}
    k_emb, k_lstm, k_fc = jax.random.split(key, 3)

    # embedding: uniform(-0.25, 0.25) like the fasttext fallback init
    emb = jax.random.uniform(k_emb, (VOCAB_SIZE, EMBEDDING_DIM),
                             jnp.float32, -0.25, 0.25)
    params["embedding"] = emb
    raw["embedding"] = emb

    H = HIDDEN_DIM
    G = GATES
    bound = 1.0 / (H ** 0.5)
    keys = jax.random.split(k_lstm, N_LAYERS * 2 * 4)

    # fold tanh into sigmoid: scale the g-gate columns (block [4H:6H)) by 2
    col_scale = jnp.ones((G,), jnp.float32).at[4 * H:6 * H].set(2.0)

    wih_list, whh_list, b_list = [], [], []
    raw["lstm"] = []
    ki = 0
    for layer in range(N_LAYERS):
        din = EMBEDDING_DIM if layer == 0 else 2 * H
        packed_ih = jnp.zeros((D_IN, G), jnp.float32)
        packed_hh = jnp.zeros((2 * H, G), jnp.float32)
        packed_b = jnp.zeros((1, G), jnp.float32)
        raw_layer = []
        for d in range(2):                       # 0 = fwd, 1 = bwd
            w_ih = jax.random.uniform(keys[ki], (4 * H, din),
                                      jnp.float32, -bound, bound)
            w_hh = jax.random.uniform(keys[ki + 1], (4 * H, H),
                                      jnp.float32, -bound, bound)
            b_ih = jax.random.uniform(keys[ki + 2], (4 * H,),
                                      jnp.float32, -bound, bound)
            b_hh = jax.random.uniform(keys[ki + 3], (4 * H,),
                                      jnp.float32, -bound, bound)
            ki += 4
            raw_layer.append((w_ih, w_hh, b_ih, b_hh))
            bias = b_ih + b_hh
            # pack into the [i_f i_b f_f f_b g_f g_b o_f o_b] column layout
            for gate in range(4):
                c0 = gate * 2 * H + d * H
                packed_ih = packed_ih.at[0:din, c0:c0 + H].set(
                    w_ih.T[:, gate * H:(gate + 1) * H])
                packed_hh = packed_hh.at[d * H:(d + 1) * H, c0:c0 + H].set(
                    w_hh.T[:, gate * H:(gate + 1) * H])
                packed_b = packed_b.at[0, c0:c0 + H].set(
                    bias[gate * H:(gate + 1) * H])
        raw["lstm"].append(raw_layer)
        wih_list.append(packed_ih * col_scale)
        whh_list.append(packed_hh * col_scale)
        b_list.append(packed_b * col_scale)

    params["wih"] = jnp.stack(wih_list).astype(jnp.bfloat16)   # (L, 2H, 8H)
    params["whh"] = jnp.stack(whh_list).astype(jnp.bfloat16)   # (L, 2H, 8H)
    params["b"] = jnp.stack(b_list)                            # (L, 1, 8H) f32

    # final linear, padded to 128 output lanes (zeros beyond OUTPUT_DIM)
    fin = 2 * H if BIDIRECTIONAL else H
    fb = 1.0 / (fin ** 0.5)
    k_w, k_b = jax.random.split(k_fc)
    fc_w = jax.random.uniform(k_w, (fin, OUTPUT_DIM), jnp.float32, -fb, fb)
    fc_b = jax.random.uniform(k_b, (1, OUTPUT_DIM), jnp.float32, -fb, fb)
    raw["fc_w"], raw["fc_b"] = fc_w, fc_b
    params["fc_w"] = jnp.pad(fc_w, ((0, 0), (0, OPAD - OUTPUT_DIM))).astype(jnp.bfloat16)
    params["fc_b"] = jnp.pad(fc_b, ((0, 0), (0, OPAD - OUTPUT_DIM)))
    return params, raw


# ------------------------------- forward ------------------------------------
@jax.jit
def lstm_forward(params, ids, lengths):
    # embedding lookup (glue) + embedding dropout (identity in eval)
    # TODO(synk): embedding dropout (train-mode only) skipped -> eval semantics.
    emb = params["embedding"][ids]                          # (B, T, E)
    x = jnp.transpose(emb, (1, 0, 2)).astype(jnp.float32)   # (T, B, E) time-major
    T, B, E = x.shape
    assert E <= D_IN and B <= BP

    # pad batch to 8 sublanes, features to 2H lanes; flatten time into rows
    x = jnp.pad(x, ((0, 0), (0, BP - B), (0, D_IN - E)))    # (T, BP, 2H)
    x = x.reshape(T * BP, D_IN)                             # (T*BP, 2H)
    len_col = jnp.pad(lengths.astype(jnp.int32), (0, BP - B)).reshape(BP, 1)

    out = pl.pallas_call(
        fused_lstm_kernel,
        out_shape=jax.ShapeDtypeStruct((BP, OPAD), jnp.float32),
        in_specs=[
            pl.BlockSpec((T * BP, D_IN), lambda: (0, 0)),
            pl.BlockSpec((BP, 1), lambda: (0, 0)),
            pl.BlockSpec(params["wih"].shape, lambda: (0, 0, 0)),
            pl.BlockSpec(params["whh"].shape, lambda: (0, 0, 0)),
            pl.BlockSpec(params["b"].shape, lambda: (0, 0, 0)),
            pl.BlockSpec(params["fc_w"].shape, lambda: (0, 0)),
            pl.BlockSpec(params["fc_b"].shape, lambda: (0, 0)),
        ],
        out_specs=pl.BlockSpec((BP, OPAD), lambda: (0, 0)),
        scratch_shapes=[
            pltpu.VMEM((T * BP, D_IN), jnp.float32),          # layer-input ping
            pltpu.VMEM((T * BP, D_IN), jnp.float32),          # layer-input pong
            pltpu.VMEM((T * BP, GATES), jnp.float32),         # pre-gates buffer
        ],
    )(x, len_col, params["wih"], params["whh"], params["b"],
      params["fc_w"], params["fc_b"])

    return out[:B, :OUTPUT_DIM]


# ----------------------- pure-JAX f32 reference (for checking) --------------
def lstm_reference(raw, ids, lengths):
    emb = raw["embedding"][ids].astype(jnp.float32)          # (B, T, E)
    B, T, _ = emb.shape
    H = HIDDEN_DIM
    layer_in = emb
    h_f_final = h_b_final = None
    for layer in range(N_LAYERS):
        outs, finals = [], []
        for d in range(2):
            w_ih, w_hh, b_ih, b_hh = raw["lstm"][layer][d]
            h = jnp.zeros((B, H), jnp.float32)
            c = jnp.zeros((B, H), jnp.float32)
            y_t = [None] * T
            trange = range(T) if d == 0 else range(T - 1, -1, -1)
            for t in trange:
                x_t = layer_in[:, t, :]
                m = (lengths > t).astype(jnp.float32)[:, None]
                z = x_t @ w_ih.T + h @ w_hh.T + b_ih + b_hh
                i = jax.nn.sigmoid(z[:, 0:H])
                f = jax.nn.sigmoid(z[:, H:2 * H])
                g = jnp.tanh(z[:, 2 * H:3 * H])
                o = jax.nn.sigmoid(z[:, 3 * H:4 * H])
                c_new = f * c + i * g
                h_new = o * jnp.tanh(c_new)
                h = m * h_new + (1 - m) * h
                c = m * c_new + (1 - m) * c
                y_t[t] = m * h_new
            finals.append(h)
            outs.append(jnp.stack(y_t, axis=1))               # (B, T, H)
        layer_in = jnp.concatenate(outs, axis=-1)             # (B, T, 2H)
        h_f_final, h_b_final = finals
    hidden = jnp.concatenate([h_f_final, h_b_final], axis=1)
    return hidden @ raw["fc_w"] + raw["fc_b"]


# --------------------------------- main -------------------------------------
if __name__ == "__main__":
    key = jax.random.PRNGKey(0)
    k_params, k_ids = jax.random.split(key)

    params, raw = init_params(k_params)

    ids = jax.random.randint(k_ids, (BATCH, SEQ_LEN), 1, VOCAB_SIZE,
                             dtype=jnp.int32)
    lengths = jnp.array([SEQ_LEN, 5], dtype=jnp.int32)
    # pad positions beyond each length with the pad index
    pad_mask = jnp.arange(SEQ_LEN)[None, :] < lengths[:, None]
    ids = jnp.where(pad_mask, ids, PAD_INDEX)

    logits = lstm_forward(params, ids, lengths)
    logits = jax.block_until_ready(logits)
    assert logits.shape == (BATCH, OUTPUT_DIM)
    assert bool(jnp.all(jnp.isfinite(logits)))

    # correctness check vs pure-JAX f32 reference (bf16 matmul operands -> loose tol)
    ref = lstm_reference(raw, ids, lengths)
    assert bool(jnp.allclose(logits, ref, atol=5e-2, rtol=5e-2)), (
        "kernel/reference mismatch")

    print("KERNEL_OK")
</pallas_src>

<mosaic_0001>
module attributes {stable_mosaic.version = 11 : i64} {
  func.func @fused_lstm_kernel(%arg0: memref<64x64xf32, #tpu.memory_space<vmem>>, %arg1: memref<8x1xi32, #tpu.memory_space<vmem>>, %arg2: memref<3x64x256xbf16, #tpu.memory_space<vmem>>, %arg3: memref<3x64x256xbf16, #tpu.memory_space<vmem>>, %arg4: memref<3x1x256xf32, #tpu.memory_space<vmem>>, %arg5: memref<64x128xbf16, #tpu.memory_space<vmem>>, %arg6: memref<1x128xf32, #tpu.memory_space<vmem>>, %arg7: memref<8x128xf32, #tpu.memory_space<vmem>>, %arg8: memref<64x64xf32, #tpu.memory_space<vmem>>, %arg9: memref<64x64xf32, #tpu.memory_space<vmem>>, %arg10: memref<64x256xf32, #tpu.memory_space<vmem>>) attributes {dimension_semantics = [], scalar_prefetch = 0 : i64, scratch_operands = 3 : i64, tpu.core_type = #tpu.core_type<tc>} {
    %c0 = arith.constant 0 : index
    %c0_0 = arith.constant 0 : index
    %0 = vector.load %arg1[%c0, %c0_0] : memref<8x1xi32, #tpu.memory_space<vmem>>, vector<8x1xi32>
    %1 = tpu.iota {dimensions = array<i32: 1>} : vector<8x64xi32>
    %c32_i32 = arith.constant 32 : i32
    %2 = vector.broadcast %c32_i32 : i32 to vector<8x64xi32>
    %3 = arith.cmpi slt, %1, %2 : vector<8x64xi32>
    %4 = vector.shape_cast %0 : vector<8x1xi32> to vector<8x1xi32>
    %5 = vector.broadcast %4 : vector<8x1xi32> to vector<8x64xi32>
    %6 = tpu.iota {dimensions = array<i32: 1>} : vector<8x256xi32>
    %c63_i32 = arith.constant 63 : i32
    %7 = vector.broadcast %c63_i32 : i32 to vector<8x256xi32>
    %8 = arith.andi %6, %7 : vector<8x256xi32>
    %c32_i32_1 = arith.constant 32 : i32
    %9 = vector.broadcast %c32_i32_1 : i32 to vector<8x256xi32>
    %10 = arith.cmpi slt, %8, %9 : vector<8x256xi32>
    %c128_i32 = arith.constant 128 : i32
    %11 = vector.broadcast %c128_i32 : i32 to vector<8x256xi32>
    %12 = arith.cmpi sge, %6, %11 : vector<8x256xi32>
    %c192_i32 = arith.constant 192 : i32
    %13 = vector.broadcast %c192_i32 : i32 to vector<8x256xi32>
    %14 = arith.cmpi slt, %6, %13 : vector<8x256xi32>
    %15 = arith.andi %12, %14 : vector<8x256xi1>
    %c0_i32 = arith.constant 0 : i32
    %c7_i32 = arith.constant 7 : i32
    %16 = vector.broadcast %c0_i32 : i32 to vector<8x64xi32>
    %17 = vector.broadcast %c7_i32 : i32 to vector<8x64xi32>
    %18 = arith.select %3, %16, %17 : vector<8x64xi1>, vector<8x64xi32>
    %19 = arith.cmpi sgt, %5, %18 : vector<8x64xi32>
    %c1_i32 = arith.constant 1 : i32
    %c6_i32 = arith.constant 6 : i32
    %20 = vector.broadcast %c1_i32 : i32 to vector<8x64xi32>
    %21 = vector.broadcast %c6_i32 : i32 to vector<8x64xi32>
    %22 = arith.select %3, %20, %21 : vector<8x64xi1>, vector<8x64xi32>
    %23 = arith.cmpi sgt, %5, %22 : vector<8x64xi32>
    %c2_i32 = arith.constant 2 : i32
    %c5_i32 = arith.constant 5 : i32
    %24 = vector.broadcast %c2_i32 : i32 to vector<8x64xi32>
    %25 = vector.broadcast %c5_i32 : i32 to vector<8x64xi32>
    %26 = arith.select %3, %24, %25 : vector<8x64xi1>, vector<8x64xi32>
    %27 = arith.cmpi sgt, %5, %26 : vector<8x64xi32>
    %c3_i32 = arith.constant 3 : i32
    %c4_i32 = arith.constant 4 : i32
    %28 = vector.broadcast %c3_i32 : i32 to vector<8x64xi32>
    %29 = vector.broadcast %c4_i32 : i32 to vector<8x64xi32>
    %30 = arith.select %3, %28, %29 : vector<8x64xi1>, vector<8x64xi32>
    %31 = arith.cmpi sgt, %5, %30 : vector<8x64xi32>
    %c4_i32_2 = arith.constant 4 : i32
    %c3_i32_3 = arith.constant 3 : i32
    %32 = vector.broadcast %c4_i32_2 : i32 to vector<8x64xi32>
    %33 = vector.broadcast %c3_i32_3 : i32 to vector<8x64xi32>
    %34 = arith.select %3, %32, %33 : vector<8x64xi1>, vector<8x64xi32>
    %35 = arith.cmpi sgt, %5, %34 : vector<8x64xi32>
    %c5_i32_4 = arith.constant 5 : i32
    %c2_i32_5 = arith.constant 2 : i32
    %36 = vector.broadcast %c5_i32_4 : i32 to vector<8x64xi32>
    %37 = vector.broadcast %c2_i32_5 : i32 to vector<8x64xi32>
    %38 = arith.select %3, %36, %37 : vector<8x64xi1>, vector<8x64xi32>
    %39 = arith.cmpi sgt, %5, %38 : vector<8x64xi32>
    %c6_i32_6 = arith.constant 6 : i32
    %c1_i32_7 = arith.constant 1 : i32
    %40 = vector.broadcast %c6_i32_6 : i32 to vector<8x64xi32>
    %41 = vector.broadcast %c1_i32_7 : i32 to vector<8x64xi32>
    %42 = arith.select %3, %40, %41 : vector<8x64xi1>, vector<8x64xi32>
    %43 = arith.cmpi sgt, %5, %42 : vector<8x64xi32>
    %c7_i32_8 = arith.constant 7 : i32
    %c0_i32_9 = arith.constant 0 : i32
    %44 = vector.broadcast %c7_i32_8 : i32 to vector<8x64xi32>
    %45 = vector.broadcast %c0_i32_9 : i32 to vector<8x64xi32>
    %46 = arith.select %3, %44, %45 : vector<8x64xi1>, vector<8x64xi32>
    %47 = arith.cmpi sgt, %5, %46 : vector<8x64xi32>
    %c0_10 = arith.constant 0 : index
    %c0_11 = arith.constant 0 : index
    %c0_12 = arith.constant 0 : index
    %48 = vector.load %arg2[%c0_10, %c0_11, %c0_12] : memref<3x64x256xbf16, #tpu.memory_space<vmem>>, vector<1x64x256xbf16>
    %49 = vector.shape_cast %48 : vector<1x64x256xbf16> to vector<64x256xbf16>
    %c0_13 = arith.constant 0 : index
    %c0_14 = arith.constant 0 : index
    %c0_15 = arith.constant 0 : index
    %50 = vector.load %arg3[%c0_13, %c0_14, %c0_15] : memref<3x64x256xbf16, #tpu.memory_space<vmem>>, vector<1x64x256xbf16>
    %51 = vector.shape_cast %50 : vector<1x64x256xbf16> to vector<64x256xbf16>
    %c0_16 = arith.constant 0 : index
    %c0_17 = arith.constant 0 : index
    %c0_18 = arith.constant 0 : index
    %52 = vector.load %arg4[%c0_16, %c0_17, %c0_18] : memref<3x1x256xf32, #tpu.memory_space<vmem>>, vector<1x1x256xf32>
    %53 = vector.shape_cast %52 : vector<1x1x256xf32> to vector<1x256xf32>
    %c0_19 = arith.constant 0 : index
    %c0_20 = arith.constant 0 : index
    %54 = vector.load %arg0[%c0_19, %c0_20] : memref<64x64xf32, #tpu.memory_space<vmem>>, vector<64x64xf32>
    %55 = arith.truncf %54 : vector<64x64xf32> to vector<64x64xbf16>
    %cst = arith.constant dense<0.000000e+00> : vector<64x256xf32>
    %56 = tpu.matmul %55, %49, %cst {dimension_numbers = #tpu.dot_dimension_numbers<[1], [0], [0], [1], [0, 0, 1, 1], [], []>} : vector<64x64xbf16>, vector<64x256xbf16>, vector<64x256xf32> -> vector<64x256xf32>
    %57 = vector.broadcast %53 : vector<1x256xf32> to vector<64x256xf32>
    %58 = arith.addf %56, %57 : vector<64x256xf32>
    %c0_21 = arith.constant 0 : index
    %c0_22 = arith.constant 0 : index
    %59 = vector.load %arg10[%c0_21, %c0_22] : memref<64x256xf32, #tpu.memory_space<vmem>>, vector<64x256xf32>
    tpu.vector_store %arg10[%c0_21, %c0_22], %58 {strides = array<i32>} : memref<64x256xf32, #tpu.memory_space<vmem>>, vector<64x256xf32>,
    %cst_23 = arith.constant 0.000000e+00 : f32
    %60 = vector.broadcast %cst_23 : f32 to vector<8x64xf32>
    %cst_24 = arith.constant 0.000000e+00 : f32
    %61 = vector.broadcast %cst_24 : f32 to vector<8x64xf32>
    %62 = arith.truncf %60 : vector<8x64xf32> to vector<8x64xbf16>
    %cst_25 = arith.constant dense<0.000000e+00> : vector<8x256xf32>
    %63 = tpu.matmul %62, %51, %cst_25 {dimension_numbers = #tpu.dot_dimension_numbers<[1], [0], [0], [1], [0, 0, 1, 1], [], []>} : vector<8x64xbf16>, vector<64x256xbf16>, vector<8x256xf32> -> vector<8x256xf32>
    %c0_26 = arith.constant 0 : index
    %c0_27 = arith.constant 0 : index
    %64 = vector.load %arg10[%c0_26, %c0_27] : memref<64x256xf32, #tpu.memory_space<vmem>>, vector<8x256xf32>
    %c56 = arith.constant 56 : index
    %c0_28 = arith.constant 0 : index
    %65 = vector.load %arg10[%c56, %c0_28] : memref<64x256xf32, #tpu.memory_space<vmem>>, vector<8x256xf32>
    %66 = arith.select %10, %64, %65 : vector<8x256xi1>, vector<8x256xf32>
    %67 = arith.addf %66, %63 : vector<8x256xf32>
    %68 = arith.negf %67 : vector<8x256xf32>
    %69 = math.exp %68 : vector<8x256xf32>
    %cst_29 = arith.constant 1.000000e+00 : f32
    %70 = vector.broadcast %cst_29 : f32 to vector<8x256xf32>
    %71 = arith.addf %70, %69 : vector<8x256xf32>
    %72 = arith.divf %70, %71 : vector<8x256xf32>
    %cst_30 = arith.constant 2.000000e+00 : f32
    %73 = vector.broadcast %cst_30 : f32 to vector<8x256xf32>
    %74 = arith.mulf %73, %72 : vector<8x256xf32>
    %cst_31 = arith.constant 1.000000e+00 : f32
    %75 = vector.broadcast %cst_31 : f32 to vector<8x256xf32>
    %76 = arith.subf %74, %75 : vector<8x256xf32>
    %77 = arith.select %15, %76, %72 : vector<8x256xi1>, vector<8x256xf32>
    %78 = vector.extract_strided_slice %77 {offsets = [0, 0], sizes = [8, 64], strides = [1, 1]} : vector<8x256xf32> to vector<8x64xf32>
    %79 = vector.extract_strided_slice %77 {offsets = [0, 64], sizes = [8, 64], strides = [1, 1]} : vector<8x256xf32> to vector<8x64xf32>
    %80 = vector.extract_strided_slice %77 {offsets = [0, 128], sizes = [8, 64], strides = [1, 1]} : vector<8x256xf32> to vector<8x64xf32>
    %81 = vector.extract_strided_slice %77 {offsets = [0, 192], sizes = [8, 64], strides = [1, 1]} : vector<8x256xf32> to vector<8x64xf32>
    %82 = arith.mulf %79, %61 : vector<8x64xf32>
    %83 = arith.mulf %78, %80 : vector<8x64xf32>
    %84 = arith.addf %82, %83 : vector<8x64xf32>
    %85 = math.tanh %84 : vector<8x64xf32>
    %86 = arith.mulf %81, %85 : vector<8x64xf32>
    %87 = arith.select %19, %86, %60 : vector<8x64xi1>, vector<8x64xf32>
    %88 = arith.select %19, %84, %61 : vector<8x64xi1>, vector<8x64xf32>
    %cst_32 = arith.constant 0.000000e+00 : f32
    %89 = vector.broadcast %cst_32 : f32 to vector<8x64xf32>
    %90 = arith.select %19, %86, %89 : vector<8x64xi1>, vector<8x64xf32>
    %91 = vector.extract_strided_slice %90 {offsets = [0, 0], sizes = [8, 32], strides = [1, 1]} : vector<8x64xf32> to vector<8x32xf32>
    %c0_33 = arith.constant 0 : index
    %c0_34 = arith.constant 0 : index
    %92 = vector.load %arg8[%c0_33, %c0_34] : memref<64x64xf32, #tpu.memory_space<vmem>>, vector<8x32xf32>
    tpu.vector_store %arg8[%c0_33, %c0_34], %91 {strides = array<i32>} : memref<64x64xf32, #tpu.memory_space<vmem>>, vector<8x32xf32>,
    %93 = vector.extract_strided_slice %90 {offsets = [0, 32], sizes = [8, 32], strides = [1, 1]} : vector<8x64xf32> to vector<8x32xf32>
    %c56_35 = arith.constant 56 : index
    %c32 = arith.constant 32 : index
    %94 = vector.load %arg8[%c56_35, %c32] : memref<64x64xf32, #tpu.memory_space<vmem>>, vector<8x32xf32>
    tpu.vector_store %arg8[%c56_35, %c32], %93 {strides = array<i32>} : memref<64x64xf32, #tpu.memory_space<vmem>>, vector<8x32xf32>,
    %95 = arith.truncf %87 : vector<8x64xf32> to vector<8x64xbf16>
    %cst_36 = arith.constant dense<0.000000e+00> : vector<8x256xf32>
    %96 = tpu.matmul %95, %51, %cst_36 {dimension_numbers = #tpu.dot_dimension_numbers<[1], [0], [0], [1], [0, 0, 1, 1], [], []>} : vector<8x64xbf16>, vector<64x256xbf16>, vector<8x256xf32> -> vector<8x256xf32>
    %c8 = arith.constant 8 : index
    %c0_37 = arith.constant 0 : index
    %97 = vector.load %arg10[%c8, %c0_37] : memref<64x256xf32, #tpu.memory_space<vmem>>, vector<8x256xf32>
    %c48 = arith.constant 48 : index
    %c0_38 = arith.constant 0 : index
    %98 = vector.load %arg10[%c48, %c0_38] : memref<64x256xf32, #tpu.memory_space<vmem>>, vector<8x256xf32>
    %99 = arith.select %10, %97, %98 : vector<8x256xi1>, vector<8x256xf32>
    %100 = arith.addf %99, %96 : vector<8x256xf32>
    %101 = arith.negf %100 : vector<8x256xf32>
    %102 = math.exp %101 : vector<8x256xf32>
    %cst_39 = arith.constant 1.000000e+00 : f32
    %103 = vector.broadcast %cst_39 : f32 to vector<8x256xf32>
    %104 = arith.addf %103, %102 : vector<8x256xf32>
    %105 = arith.divf %103, %104 : vector<8x256xf32>
    %cst_40 = arith.constant 2.000000e+00 : f32
    %106 = vector.broadcast %cst_40 : f32 to vector<8x256xf32>
    %107 = arith.mulf %106, %105 : vector<8x256xf32>
    %cst_41 = arith.constant 1.000000e+00 : f32
    %108 = vector.broadcast %cst_41 : f32 to vector<8x256xf32>
    %109 = arith.subf %107, %108 : vector<8x256xf32>
    %110 = arith.select %15, %109, %105 : vector<8x256xi1>, vector<8x256xf32>
    %111 = vector.extract_strided_slice %110 {offsets = [0, 0], sizes = [8, 64], strides = [1, 1]} : vector<8x256xf32> to vector<8x64xf32>
    %112 = vector.extract_strided_slice %110 {offsets = [0, 64], sizes = [8, 64], strides = [1, 1]} : vector<8x256xf32> to vector<8x64xf32>
    %113 = vector.extract_strided_slice %110 {offsets = [0, 128], sizes = [8, 64], strides = [1, 1]} : vector<8x256xf32> to vector<8x64xf32>
    %114 = vector.extract_strided_slice %110 {offsets = [0, 192], sizes = [8, 64], strides = [1, 1]} : vector<8x256xf32> to vector<8x64xf32>
    %115 = arith.mulf %112, %88 : vector<8x64xf32>
    %116 = arith.mulf %111, %113 : vector<8x64xf32>
    %117 = arith.addf %115, %116 : vector<8x64xf32>
    %118 = math.tanh %117 : vector<8x64xf32>
    %119 = arith.mulf %114, %118 : vector<8x64xf32>
    %120 = arith.select %23, %119, %87 : vector<8x64xi1>, vector<8x64xf32>
    %121 = arith.select %23, %117, %88 : vector<8x64xi1>, vector<8x64xf32>
    %cst_42 = arith.constant 0.000000e+00 : f32
    %122 = vector.broadcast %cst_42 : f32 to vector<8x64xf32>
    %123 = arith.select %23, %119, %122 : vector<8x64xi1>, vector<8x64xf32>
    %124 = vector.extract_strided_slice %123 {offsets = [0, 0], sizes = [8, 32], strides = [1, 1]} : vector<8x64xf32> to vector<8x32xf32>
    %c8_43 = arith.constant 8 : index
    %c0_44 = arith.constant 0 : index
    %125 = vector.load %arg8[%c8_43, %c0_44] : memref<64x64xf32, #tpu.memory_space<vmem>>, vector<8x32xf32>
    tpu.vector_store %arg8[%c8_43, %c0_44], %124 {strides = array<i32>} : memref<64x64xf32, #tpu.memory_space<vmem>>, vector<8x32xf32>,
    %126 = vector.extract_strided_slice %123 {offsets = [0, 32], sizes = [8, 32], strides = [1, 1]} : vector<8x64xf32> to vector<8x32xf32>
    %c48_45 = arith.constant 48 : index
    %c32_46 = arith.constant 32 : index
    %127 = vector.load %arg8[%c48_45, %c32_46] : memref<64x64xf32, #tpu.memory_space<vmem>>, vector<8x32xf32>
    tpu.vector_store %arg8[%c48_45, %c32_46], %126 {strides = array<i32>} : memref<64x64xf32, #tpu.memory_space<vmem>>, vector<8x32xf32>,
    %128 = arith.truncf %120 : vector<8x64xf32> to vector<8x64xbf16>
    %cst_47 = arith.constant dense<0.000000e+00> : vector<8x256xf32>
    %129 = tpu.matmul %128, %51, %cst_47 {dimension_numbers = #tpu.dot_dimension_numbers<[1], [0], [0], [1], [0, 0, 1, 1], [], []>} : vector<8x64xbf16>, vector<64x256xbf16>, vector<8x256xf32> -> vector<8x256xf32>
    %c16 = arith.constant 16 : index
    %c0_48 = arith.constant 0 : index
    %130 = vector.load %arg10[%c16, %c0_48] : memref<64x256xf32, #tpu.memory_space<vmem>>, vector<8x256xf32>
    %c40 = arith.constant 40 : index
    %c0_49 = arith.constant 0 : index
    %131 = vector.load %arg10[%c40, %c0_49] : memref<64x256xf32, #tpu.memory_space<vmem>>, vector<8x256xf32>
    %132 = arith.select %10, %130, %131 : vector<8x256xi1>, vector<8x256xf32>
    %133 = arith.addf %132, %129 : vector<8x256xf32>
    %134 = arith.negf %133 : vector<8x256xf32>
    %135 = math.exp %134 : vector<8x256xf32>
    %cst_50 = arith.constant 1.000000e+00 : f32
    %136 = vector.broadcast %cst_50 : f32 to vector<8x256xf32>
    %137 = arith.addf %136, %135 : vector<8x256xf32>
    %138 = arith.divf %136, %137 : vector<8x256xf32>
    %cst_51 = arith.constant 2.000000e+00 : f32
    %139 = vector.broadcast %cst_51 : f32 to vector<8x256xf32>
    %140 = arith.mulf %139, %138 : vector<8x256xf32>
    %cst_52 = arith.constant 1.000000e+00 : f32
    %141 = vector.broadcast %cst_52 : f32 to vector<8x256xf32>
    %142 = arith.subf %140, %141 : vector<8x256xf32>
    %143 = arith.select %15, %142, %138 : vector<8x256xi1>, vector<8x256xf32>
    %144 = vector.extract_strided_slice %143 {offsets = [0, 0], sizes = [8, 64], strides = [1, 1]} : vector<8x256xf32> to vector<8x64xf32>
    %145 = vector.extract_strided_slice %143 {offsets = [0, 64], sizes = [8, 64], strides = [1, 1]} : vector<8x256xf32> to vector<8x64xf32>
    %146 = vector.extract_strided_slice %143 {offsets = [0, 128], sizes = [8, 64], strides = [1, 1]} : vector<8x256xf32> to vector<8x64xf32>
    %147 = vector.extract_strided_slice %143 {offsets = [0, 192], sizes = [8, 64], strides = [1, 1]} : vector<8x256xf32> to vector<8x64xf32>
    %148 = arith.mulf %145, %121 : vector<8x64xf32>
    %149 = arith.mulf %144, %146 : vector<8x64xf32>
    %150 = arith.addf %148, %149 : vector<8x64xf32>
    %151 = math.tanh %150 : vector<8x64xf32>
    %152 = arith.mulf %147, %151 : vector<8x64xf32>
    %153 = arith.select %27, %152, %120 : vector<8x64xi1>, vector<8x64xf32>
    %154 = arith.select %27, %150, %121 : vector<8x64xi1>, vector<8x64xf32>
    %cst_53 = arith.constant 0.000000e+00 : f32
    %155 = vector.broadcast %cst_53 : f32 to vector<8x64xf32>
    %156 = arith.select %27, %152, %155 : vector<8x64xi1>, vector<8x64xf32>
    %157 = vector.extract_strided_slice %156 {offsets = [0, 0], sizes = [8, 32], strides = [1, 1]} : vector<8x64xf32> to vector<8x32xf32>
    %c16_54 = arith.constant 16 : index
    %c0_55 = arith.constant 0 : index
    %158 = vector.load %arg8[%c16_54, %c0_55] : memref<64x64xf32, #tpu.memory_space<vmem>>, vector<8x32xf32>
    tpu.vector_store %arg8[%c16_54, %c0_55], %157 {strides = array<i32>} : memref<64x64xf32, #tpu.memory_space<vmem>>, vector<8x32xf32>,
    %159 = vector.extract_strided_slice %156 {offsets = [0, 32], sizes = [8, 32], strides = [1, 1]} : vector<8x64xf32> to vector<8x32xf32>
    %c40_56 = arith.constant 40 : index
    %c32_57 = arith.constant 32 : index
    %160 = vector.load %arg8[%c40_56, %c32_57] : memref<64x64xf32, #tpu.memory_space<vmem>>, vector<8x32xf32>
    tpu.vector_store %arg8[%c40_56, %c32_57], %159 {strides = array<i32>} : memref<64x64xf32, #tpu.memory_space<vmem>>, vector<8x32xf32>,
    %161 = arith.truncf %153 : vector<8x64xf32> to vector<8x64xbf16>
    %cst_58 = arith.constant dense<0.000000e+00> : vector<8x256xf32>
    %162 = tpu.matmul %161, %51, %cst_58 {dimension_numbers = #tpu.dot_dimension_numbers<[1], [0], [0], [1], [0, 0, 1, 1], [], []>} : vector<8x64xbf16>, vector<64x256xbf16>, vector<8x256xf32> -> vector<8x256xf32>
    %c24 = arith.constant 24 : index
    %c0_59 = arith.constant 0 : index
    %163 = vector.load %arg10[%c24, %c0_59] : memref<64x256xf32, #tpu.memory_space<vmem>>, vector<8x256xf32>
    %c32_60 = arith.constant 32 : index
    %c0_61 = arith.constant 0 : index
    %164 = vector.load %arg10[%c32_60, %c0_61] : memref<64x256xf32, #tpu.memory_space<vmem>>, vector<8x256xf32>
    %165 = arith.select %10, %163, %164 : vector<8x256xi1>, vector<8x256xf32>
    %166 = arith.addf %165, %162 : vector<8x256xf32>
    %167 = arith.negf %166 : vector<8x256xf32>
    %168 = math.exp %167 : vector<8x256xf32>
    %cst_62 = arith.constant 1.000000e+00 : f32
    %169 = vector.broadcast %cst_62 : f32 to vector<8x256xf32>
    %170 = arith.addf %169, %168 : vector<8x256xf32>
    %171 = arith.divf %169, %170 : vector<8x256xf32>
    %cst_63 = arith.constant 2.000000e+00 : f32
    %172 = vector.broadcast %cst_63 : f32 to vector<8x256xf32>
    %173 = arith.mulf %172, %171 : vector<8x256xf32>
    %cst_64 = arith.constant 1.000000e+00 : f32
    %174 = vector.broadcast %cst_64 : f32 to vector<8x256xf32>
    %175 = arith.subf %173, %174 : vector<8x256xf32>
    %176 = arith.select %15, %175, %171 : vector<8x256xi1>, vector<8x256xf32>
    %177 = vector.extract_strided_slice %176 {offsets = [0, 0], sizes = [8, 64], strides = [1, 1]} : vector<8x256xf32> to vector<8x64xf32>
    %178 = vector.extract_strided_slice %176 {offsets = [0, 64], sizes = [8, 64], strides = [1, 1]} : vector<8x256xf32> to vector<8x64xf32>
    %179 = vector.extract_strided_slice %176 {offsets = [0, 128], sizes = [8, 64], strides = [1, 1]} : vector<8x256xf32> to vector<8x64xf32>
    %180 = vector.extract_strided_slice %176 {offsets = [0, 192], sizes = [8, 64], strides = [1, 1]} : vector<8x256xf32> to vector<8x64xf32>
    %181 = arith.mulf %178, %154 : vector<8x64xf32>
    %182 = arith.mulf %177, %179 : vector<8x64xf32>
    %183 = arith.addf %181, %182 : vector<8x64xf32>
    %184 = math.tanh %183 : vector<8x64xf32>
    %185 = arith.mulf %180, %184 : vector<8x64xf32>
    %186 = arith.select %31, %185, %153 : vector<8x64xi1>, vector<8x64xf32>
    %187 = arith.select %31, %183, %154 : vector<8x64xi1>, vector<8x64xf32>
    %cst_65 = arith.constant 0.000000e+00 : f32
    %188 = vector.broadcast %cst_65 : f32 to vector<8x64xf32>
    %189 = arith.select %31, %185, %188 : vector<8x64xi1>, vector<8x64xf32>
    %190 = vector.extract_strided_slice %189 {offsets = [0, 0], sizes = [8, 32], strides = [1, 1]} : vector<8x64xf32> to vector<8x32xf32>
    %c24_66 = arith.constant 24 : index
    %c0_67 = arith.constant 0 : index
    %191 = vector.load %arg8[%c24_66, %c0_67] : memref<64x64xf32, #tpu.memory_space<vmem>>, vector<8x32xf32>
    tpu.vector_store %arg8[%c24_66, %c0_67], %190 {strides = array<i32>} : memref<64x64xf32, #tpu.memory_space<vmem>>, vector<8x32xf32>,
    %192 = vector.extract_strided_slice %189 {offsets = [0, 32], sizes = [8, 32], strides = [1, 1]} : vector<8x64xf32> to vector<8x32xf32>
    %c32_68 = arith.constant 32 : index
    %c32_69 = arith.constant 32 : index
    %193 = vector.load %arg8[%c32_68, %c32_69] : memref<64x64xf32, #tpu.memory_space<vmem>>, vector<8x32xf32>
    tpu.vector_store %arg8[%c32_68, %c32_69], %192 {strides = array<i32>} : memref<64x64xf32, #tpu.memory_space<vmem>>, vector<8x32xf32>,
    %194 = arith.truncf %186 : vector<8x64xf32> to vector<8x64xbf16>
    %cst_70 = arith.constant dense<0.000000e+00> : vector<8x256xf32>
    %195 = tpu.matmul %194, %51, %cst_70 {dimension_numbers = #tpu.dot_dimension_numbers<[1], [0], [0], [1], [0, 0, 1, 1], [], []>} : vector<8x64xbf16>, vector<64x256xbf16>, vector<8x256xf32> -> vector<8x256xf32>
    %c32_71 = arith.constant 32 : index
    %c0_72 = arith.constant 0 : index
    %196 = vector.load %arg10[%c32_71, %c0_72] : memref<64x256xf32, #tpu.memory_space<vmem>>, vector<8x256xf32>
    %c24_73 = arith.constant 24 : index
    %c0_74 = arith.constant 0 : index
    %197 = vector.load %arg10[%c24_73, %c0_74] : memref<64x256xf32, #tpu.memory_space<vmem>>, vector<8x256xf32>
    %198 = arith.select %10, %196, %197 : vector<8x256xi1>, vector<8x256xf32>
    %199 = arith.addf %198, %195 : vector<8x256xf32>
    %200 = arith.negf %199 : vector<8x256xf32>
    %201 = math.exp %200 : vector<8x256xf32>
    %cst_75 = arith.constant 1.000000e+00 : f32
    %202 = vector.broadcast %cst_75 : f32 to vector<8x256xf32>
    %203 = arith.addf %202, %201 : vector<8x256xf32>
    %204 = arith.divf %202, %203 : vector<8x256xf32>
    %cst_76 = arith.constant 2.000000e+00 : f32
    %205 = vector.broadcast %cst_76 : f32 to vector<8x256xf32>
    %206 = arith.mulf %205, %204 : vector<8x256xf32>
    %cst_77 = arith.constant 1.000000e+00 : f32
    %207 = vector.broadcast %cst_77 : f32 to vector<8x256xf32>
    %208 = arith.subf %206, %207 : vector<8x256xf32>
    %209 = arith.select %15, %208, %204 : vector<8x256xi1>, vector<8x256xf32>
    %210 = vector.extract_strided_slice %209 {offsets = [0, 0], sizes = [8, 64], strides = [1, 1]} : vector<8x256xf32> to vector<8x64xf32>
    %211 = vector.extract_strided_slice %209 {offsets = [0, 64], sizes = [8, 64], strides = [1, 1]} : vector<8x256xf32> to vector<8x64xf32>
    %212 = vector.extract_strided_slice %209 {offsets = [0, 128], sizes = [8, 64], strides = [1, 1]} : vector<8x256xf32> to vector<8x64xf32>
    %213 = vector.extract_strided_slice %209 {offsets = [0, 192], sizes = [8, 64], strides = [1, 1]} : vector<8x256xf32> to vector<8x64xf32>
    %214 = arith.mulf %211, %187 : vector<8x64xf32>
    %215 = arith.mulf %210, %212 : vector<8x64xf32>
    %216 = arith.addf %214, %215 : vector<8x64xf32>
    %217 = math.tanh %216 : vector<8x64xf32>
    %218 = arith.mulf %213, %217 : vector<8x64xf32>
    %219 = arith.select %35, %218, %186 : vector<8x64xi1>, vector<8x64xf32>
    %220 = arith.select %35, %216, %187 : vector<8x64xi1>, vector<8x64xf32>
    %cst_78 = arith.constant 0.000000e+00 : f32
    %221 = vector.broadcast %cst_78 : f32 to vector<8x64xf32>
    %222 = arith.select %35, %218, %221 : vector<8x64xi1>, vector<8x64xf32>
    %223 = vector.extract_strided_slice %222 {offsets = [0, 0], sizes = [8, 32], strides = [1, 1]} : vector<8x64xf32> to vector<8x32xf32>
    %c32_79 = arith.constant 32 : index
    %c0_80 = arith.constant 0 : index
    %224 = vector.load %arg8[%c32_79, %c0_80] : memref<64x64xf32, #tpu.memory_space<vmem>>, vector<8x32xf32>
    tpu.vector_store %arg8[%c32_79, %c0_80], %223 {strides = array<i32>} : memref<64x64xf32, #tpu.memory_space<vmem>>, vector<8x32xf32>,
    %225 = vector.extract_strided_slice %222 {offsets = [0, 32], sizes = [8, 32], strides = [1, 1]} : vector<8x64xf32> to vector<8x32xf32>
    %c24_81 = arith.constant 24 : index
    %c32_82 = arith.constant 32 : index
    %226 = vector.load %arg8[%c24_81, %c32_82] : memref<64x64xf32, #tpu.memory_space<vmem>>, vector<8x32xf32>
    tpu.vector_store %arg8[%c24_81, %c32_82], %225 {strides = array<i32>} : memref<64x64xf32, #tpu.memory_space<vmem>>, vector<8x32xf32>,
    %227 = arith.truncf %219 : vector<8x64xf32> to vector<8x64xbf16>
    %cst_83 = arith.constant dense<0.000000e+00> : vector<8x256xf32>
    %228 = tpu.matmul %227, %51, %cst_83 {dimension_numbers = #tpu.dot_dimension_numbers<[1], [0], [0], [1], [0, 0, 1, 1], [], []>} : vector<8x64xbf16>, vector<64x256xbf16>, vector<8x256xf32> -> vector<8x256xf32>
    %c40_84 = arith.constant 40 : index
    %c0_85 = arith.constant 0 : index
    %229 = vector.load %arg10[%c40_84, %c0_85] : memref<64x256xf32, #tpu.memory_space<vmem>>, vector<8x256xf32>
    %c16_86 = arith.constant 16 : index
    %c0_87 = arith.constant 0 : index
    %230 = vector.load %arg10[%c16_86, %c0_87] : memref<64x256xf32, #tpu.memory_space<vmem>>, vector<8x256xf32>
    %231 = arith.select %10, %229, %230 : vector<8x256xi1>, vector<8x256xf32>
    %232 = arith.addf %231, %228 : vector<8x256xf32>
    %233 = arith.negf %232 : vector<8x256xf32>
    %234 = math.exp %233 : vector<8x256xf32>
    %cst_88 = arith.constant 1.000000e+00 : f32
    %235 = vector.broadcast %cst_88 : f32 to vector<8x256xf32>
    %236 = arith.addf %235, %234 : vector<8x256xf32>
    %237 = arith.divf %235, %236 : vector<8x256xf32>
    %cst_89 = arith.constant 2.000000e+00 : f32
    %238 = vector.broadcast %cst_89 : f32 to vector<8x256xf32>
    %239 = arith.mulf %238, %237 : vector<8x256xf32>
    %cst_90 = arith.constant 1.000000e+00 : f32
    %240 = vector.broadcast %cst_90 : f32 to vector<8x256xf32>
    %241 = arith.subf %239, %240 : vector<8x256xf32>
    %242 = arith.select %15, %241, %237 : vector<8x256xi1>, vector<8x256xf32>
    %243 = vector.extract_strided_slice %242 {offsets = [0, 0], sizes = [8, 64], strides = [1, 1]} : vector<8x256xf32> to vector<8x64xf32>
    %244 = vector.extract_strided_slice %242 {offsets = [0, 64], sizes = [8, 64], strides = [1, 1]} : vector<8x256xf32> to vector<8x64xf32>
    %245 = vector.extract_strided_slice %242 {offsets = [0, 128], sizes = [8, 64], strides = [1, 1]} : vector<8x256xf32> to vector<8x64xf32>
    %246 = vector.extract_strided_slice %242 {offsets = [0, 192], sizes = [8, 64], strides = [1, 1]} : vector<8x256xf32> to vector<8x64xf32>
    %247 = arith.mulf %244, %220 : vector<8x64xf32>
    %248 = arith.mulf %243, %245 : vector<8x64xf32>
    %249 = arith.addf %247, %248 : vector<8x64xf32>
    %250 = math.tanh %249 : vector<8x64xf32>
    %251 = arith.mulf %246, %250 : vector<8x64xf32>
    %252 = arith.select %39, %251, %219 : vector<8x64xi1>, vector<8x64xf32>
    %253 = arith.select %39, %249, %220 : vector<8x64xi1>, vector<8x64xf32>
    %cst_91 = arith.constant 0.000000e+00 : f32
    %254 = vector.broadcast %cst_91 : f32 to vector<8x64xf32>
    %255 = arith.select %39, %251, %254 : vector<8x64xi1>, vector<8x64xf32>
    %256 = vector.extract_strided_slice %255 {offsets = [0, 0], sizes = [8, 32], strides = [1, 1]} : vector<8x64xf32> to vector<8x32xf32>
    %c40_92 = arith.constant 40 : index
    %c0_93 = arith.constant 0 : index
    %257 = vector.load %arg8[%c40_92, %c0_93] : memref<64x64xf32, #tpu.memory_space<vmem>>, vector<8x32xf32>
    tpu.vector_store %arg8[%c40_92, %c0_93], %256 {strides = array<i32>} : memref<64x64xf32, #tpu.memory_space<vmem>>, vector<8x32xf32>,
    %258 = vector.extract_strided_slice %255 {offsets = [0, 32], sizes = [8, 32], strides = [1, 1]} : vector<8x64xf32> to vector<8x32xf32>
    %c16_94 = arith.constant 16 : index
    %c32_95 = arith.constant 32 : index
    %259 = vector.load %arg8[%c16_94, %c32_95] : memref<64x64xf32, #tpu.memory_space<vmem>>, vector<8x32xf32>
    tpu.vector_store %arg8[%c16_94, %c32_95], %258 {strides = array<i32>} : memref<64x64xf32, #tpu.memory_space<vmem>>, vector<8x32xf32>,
    %260 = arith.truncf %252 : vector<8x64xf32> to vector<8x64xbf16>
    %cst_96 = arith.constant dense<0.000000e+00> : vector<8x256xf32>
    %261 = tpu.matmul %260, %51, %cst_96 {dimension_numbers = #tpu.dot_dimension_numbers<[1], [0], [0], [1], [0, 0, 1, 1], [], []>} : vector<8x64xbf16>, vector<64x256xbf16>, vector<8x256xf32> -> vector<8x256xf32>
    %c48_97 = arith.constant 48 : index
    %c0_98 = arith.constant 0 : index
    %262 = vector.load %arg10[%c48_97, %c0_98] : memref<64x256xf32, #tpu.memory_space<vmem>>, vector<8x256xf32>
    %c8_99 = arith.constant 8 : index
    %c0_100 = arith.constant 0 : index
    %263 = vector.load %arg10[%c8_99, %c0_100] : memref<64x256xf32, #tpu.memory_space<vmem>>, vector<8x256xf32>
    %264 = arith.select %10, %262, %263 : vector<8x256xi1>, vector<8x256xf32>
    %265 = arith.addf %264, %261 : vector<8x256xf32>
    %266 = arith.negf %265 : vector<8x256xf32>
    %267 = math.exp %266 : vector<8x256xf32>
    %cst_101 = arith.constant 1.000000e+00 : f32
    %268 = vector.broadcast %cst_101 : f32 to vector<8x256xf32>
    %269 = arith.addf %268, %267 : vector<8x256xf32>
    %270 = arith.divf %268, %269 : vector<8x256xf32>
    %cst_102 = arith.constant 2.000000e+00 : f32
    %271 = vector.broadcast %cst_102 : f32 to vector<8x256xf32>
    %272 = arith.mulf %271, %270 : vector<8x256xf32>
    %cst_103 = arith.constant 1.000000e+00 : f32
    %273 = vector.broadcast %cst_103 : f32 to vector<8x256xf32>
    %274 = arith.subf %272, %273 : vector<8x256xf32>
    %275 = arith.select %15, %274, %270 : vector<8x256xi1>, vector<8x256xf32>
    %276 = vector.extract_strided_slice %275 {offsets = [0, 0], sizes = [8, 64], strides = [1, 1]} : vector<8x256xf32> to vector<8x64xf32>
    %277 = vector.extract_strided_slice %275 {offsets = [0, 64], sizes = [8, 64], strides = [1, 1]} : vector<8x256xf32> to vector<8x64xf32>
    %278 = vector.extract_strided_slice %275 {offsets = [0, 128], sizes = [8, 64], strides = [1, 1]} : vector<8x256xf32> to vector<8x64xf32>
    %279 = vector.extract_strided_slice %275 {offsets = [0, 192], sizes = [8, 64], strides = [1, 1]} : vector<8x256xf32> to vector<8x64xf32>
    %280 = arith.mulf %277, %253 : vector<8x64xf32>
    %281 = arith.mulf %276, %278 : vector<8x64xf32>
    %282 = arith.addf %280, %281 : vector<8x64xf32>
    %283 = math.tanh %282 : vector<8x64xf32>
    %284 = arith.mulf %279, %283 : vector<8x64xf32>
    %285 = arith.select %43, %284, %252 : vector<8x64xi1>, vector<8x64xf32>
    %286 = arith.select %43, %282, %253 : vector<8x64xi1>, vector<8x64xf32>
    %cst_104 = arith.constant 0.000000e+00 : f32
    %287 = vector.broadcast %cst_104 : f32 to vector<8x64xf32>
    %288 = arith.select %43, %284, %287 : vector<8x64xi1>, vector<8x64xf32>
    %289 = vector.extract_strided_slice %288 {offsets = [0, 0], sizes = [8, 32], strides = [1, 1]} : vector<8x64xf32> to vector<8x32xf32>
    %c48_105 = arith.constant 48 : index
    %c0_106 = arith.constant 0 : index
    %290 = vector.load %arg8[%c48_105, %c0_106] : memref<64x64xf32, #tpu.memory_space<vmem>>, vector<8x32xf32>
    tpu.vector_store %arg8[%c48_105, %c0_106], %289 {strides = array<i32>} : memref<64x64xf32, #tpu.memory_space<vmem>>, vector<8x32xf32>,
    %291 = vector.extract_strided_slice %288 {offsets = [0, 32], sizes = [8, 32], strides = [1, 1]} : vector<8x64xf32> to vector<8x32xf32>
    %c8_107 = arith.constant 8 : index
    %c32_108 = arith.constant 32 : index
    %292 = vector.load %arg8[%c8_107, %c32_108] : memref<64x64xf32, #tpu.memory_space<vmem>>, vector<8x32xf32>
    tpu.vector_store %arg8[%c8_107, %c32_108], %291 {strides = array<i32>} : memref<64x64xf32, #tpu.memory_space<vmem>>, vector<8x32xf32>,
    %293 = arith.truncf %285 : vector<8x64xf32> to vector<8x64xbf16>
    %cst_109 = arith.constant dense<0.000000e+00> : vector<8x256xf32>
    %294 = tpu.matmul %293, %51, %cst_109 {dimension_numbers = #tpu.dot_dimension_numbers<[1], [0], [0], [1], [0, 0, 1, 1], [], []>} : vector<8x64xbf16>, vector<64x256xbf16>, vector<8x256xf32> -> vector<8x256xf32>
    %c56_110 = arith.constant 56 : index
    %c0_111 = arith.constant 0 : index
    %295 = vector.load %arg10[%c56_110, %c0_111] : memref<64x256xf32, #tpu.memory_space<vmem>>, vector<8x256xf32>
    %c0_112 = arith.constant 0 : index
    %c0_113 = arith.constant 0 : index
    %296 = vector.load %arg10[%c0_112, %c0_113] : memref<64x256xf32, #tpu.memory_space<vmem>>, vector<8x256xf32>
    %297 = arith.select %10, %295, %296 : vector<8x256xi1>, vector<8x256xf32>
    %298 = arith.addf %297, %294 : vector<8x256xf32>
    %299 = arith.negf %298 : vector<8x256xf32>
    %300 = math.exp %299 : vector<8x256xf32>
    %cst_114 = arith.constant 1.000000e+00 : f32
    %301 = vector.broadcast %cst_114 : f32 to vector<8x256xf32>
    %302 = arith.addf %301, %300 : vector<8x256xf32>
    %303 = arith.divf %301, %302 : vector<8x256xf32>
    %cst_115 = arith.constant 2.000000e+00 : f32
    %304 = vector.broadcast %cst_115 : f32 to vector<8x256xf32>
    %305 = arith.mulf %304, %303 : vector<8x256xf32>
    %cst_116 = arith.constant 1.000000e+00 : f32
    %306 = vector.broadcast %cst_116 : f32 to vector<8x256xf32>
    %307 = arith.subf %305, %306 : vector<8x256xf32>
    %308 = arith.select %15, %307, %303 : vector<8x256xi1>, vector<8x256xf32>
    %309 = vector.extract_strided_slice %308 {offsets = [0, 0], sizes = [8, 64], strides = [1, 1]} : vector<8x256xf32> to vector<8x64xf32>
    %310 = vector.extract_strided_slice %308 {offsets = [0, 64], sizes = [8, 64], strides = [1, 1]} : vector<8x256xf32> to vector<8x64xf32>
    %311 = vector.extract_strided_slice %308 {offsets = [0, 128], sizes = [8, 64], strides = [1, 1]} : vector<8x256xf32> to vector<8x64xf32>
    %312 = vector.extract_strided_slice %308 {offsets = [0, 192], sizes = [8, 64], strides = [1, 1]} : vector<8x256xf32> to vector<8x64xf32>
    %313 = arith.mulf %310, %286 : vector<8x64xf32>
    %314 = arith.mulf %309, %311 : vector<8x64xf32>
    %315 = arith.addf %313, %314 : vector<8x64xf32>
    %316 = math.tanh %315 : vector<8x64xf32>
    %317 = arith.mulf %312, %316 : vector<8x64xf32>
    %cst_117 = arith.constant 0.000000e+00 : f32
    %318 = vector.broadcast %cst_117 : f32 to vector<8x64xf32>
    %319 = arith.select %47, %317, %318 : vector<8x64xi1>, vector<8x64xf32>
    %320 = vector.extract_strided_slice %319 {offsets = [0, 0], sizes = [8, 32], strides = [1, 1]} : vector<8x64xf32> to vector<8x32xf32>
    %c56_118 = arith.constant 56 : index
    %c0_119 = arith.constant 0 : index
    %321 = vector.load %arg8[%c56_118, %c0_119] : memref<64x64xf32, #tpu.memory_space<vmem>>, vector<8x32xf32>
    tpu.vector_store %arg8[%c56_118, %c0_119], %320 {strides = array<i32>} : memref<64x64xf32, #tpu.memory_space<vmem>>, vector<8x32xf32>,
    %322 = vector.extract_strided_slice %319 {offsets = [0, 32], sizes = [8, 32], strides = [1, 1]} : vector<8x64xf32> to vector<8x32xf32>
    %c0_120 = arith.constant 0 : index
    %c32_121 = arith.constant 32 : index
    %323 = vector.load %arg8[%c0_120, %c32_121] : memref<64x64xf32, #tpu.memory_space<vmem>>, vector<8x32xf32>
    tpu.vector_store %arg8[%c0_120, %c32_121], %322 {strides = array<i32>} : memref<64x64xf32, #tpu.memory_space<vmem>>, vector<8x32xf32>,
    %c1 = arith.constant 1 : index
    %c0_122 = arith.constant 0 : index
    %c0_123 = arith.constant 0 : index
    %324 = vector.load %arg2[%c1, %c0_122, %c0_123] : memref<3x64x256xbf16, #tpu.memory_space<vmem>>, vector<1x64x256xbf16>
    %325 = vector.shape_cast %324 : vector<1x64x256xbf16> to vector<64x256xbf16>
    %c1_124 = arith.constant 1 : index
    %c0_125 = arith.constant 0 : index
    %c0_126 = arith.constant 0 : index
    %326 = vector.load %arg3[%c1_124, %c0_125, %c0_126] : memref<3x64x256xbf16, #tpu.memory_space<vmem>>, vector<1x64x256xbf16>
    %327 = vector.shape_cast %326 : vector<1x64x256xbf16> to vector<64x256xbf16>
    %c1_127 = arith.constant 1 : index
    %c0_128 = arith.constant 0 : index
    %c0_129 = arith.constant 0 : index
    %328 = vector.load %arg4[%c1_127, %c0_128, %c0_129] : memref<3x1x256xf32, #tpu.memory_space<vmem>>, vector<1x1x256xf32>
    %329 = vector.shape_cast %328 : vector<1x1x256xf32> to vector<1x256xf32>
    %c0_130 = arith.constant 0 : index
    %c0_131 = arith.constant 0 : index
    %330 = vector.load %arg8[%c0_130, %c0_131] : memref<64x64xf32, #tpu.memory_space<vmem>>, vector<64x64xf32>
    %331 = arith.truncf %330 : vector<64x64xf32> to vector<64x64xbf16>
    %cst_132 = arith.constant dense<0.000000e+00> : vector<64x256xf32>
    %332 = tpu.matmul %331, %325, %cst_132 {dimension_numbers = #tpu.dot_dimension_numbers<[1], [0], [0], [1], [0, 0, 1, 1], [], []>} : vector<64x64xbf16>, vector<64x256xbf16>, vector<64x256xf32> -> vector<64x256xf32>
    %333 = vector.broadcast %329 : vector<1x256xf32> to vector<64x256xf32>
    %334 = arith.addf %332, %333 : vector<64x256xf32>
    %c0_133 = arith.constant 0 : index
    %c0_134 = arith.constant 0 : index
    %335 = vector.load %arg10[%c0_133, %c0_134] : memref<64x256xf32, #tpu.memory_space<vmem>>, vector<64x256xf32>
    tpu.vector_store %arg10[%c0_133, %c0_134], %334 {strides = array<i32>} : memref<64x256xf32, #tpu.memory_space<vmem>>, vector<64x256xf32>,
    %cst_135 = arith.constant 0.000000e+00 : f32
    %336 = vector.broadcast %cst_135 : f32 to vector<8x64xf32>
    %cst_136 = arith.constant 0.000000e+00 : f32
    %337 = vector.broadcast %cst_136 : f32 to vector<8x64xf32>
    %338 = arith.truncf %336 : vector<8x64xf32> to vector<8x64xbf16>
    %cst_137 = arith.constant dense<0.000000e+00> : vector<8x256xf32>
    %339 = tpu.matmul %338, %327, %cst_137 {dimension_numbers = #tpu.dot_dimension_numbers<[1], [0], [0], [1], [0, 0, 1, 1], [], []>} : vector<8x64xbf16>, vector<64x256xbf16>, vector<8x256xf32> -> vector<8x256xf32>
    %c0_138 = arith.constant 0 : index
    %c0_139 = arith.constant 0 : index
    %340 = vector.load %arg10[%c0_138, %c0_139] : memref<64x256xf32, #tpu.memory_space<vmem>>, vector<8x256xf32>
    %c56_140 = arith.constant 56 : index
    %c0_141 = arith.constant 0 : index
    %341 = vector.load %arg10[%c56_140, %c0_141] : memref<64x256xf32, #tpu.memory_space<vmem>>, vector<8x256xf32>
    %342 = arith.select %10, %340, %341 : vector<8x256xi1>, vector<8x256xf32>
    %343 = arith.addf %342, %339 : vector<8x256xf32>
    %344 = arith.negf %343 : vector<8x256xf32>
    %345 = math.exp %344 : vector<8x256xf32>
    %cst_142 = arith.constant 1.000000e+00 : f32
    %346 = vector.broadcast %cst_142 : f32 to vector<8x256xf32>
    %347 = arith.addf %346, %345 : vector<8x256xf32>
    %348 = arith.divf %346, %347 : vector<8x256xf32>
    %cst_143 = arith.constant 2.000000e+00 : f32
    %349 = vector.broadcast %cst_143 : f32 to vector<8x256xf32>
    %350 = arith.mulf %349, %348 : vector<8x256xf32>
    %cst_144 = arith.constant 1.000000e+00 : f32
    %351 = vector.broadcast %cst_144 : f32 to vector<8x256xf32>
    %352 = arith.subf %350, %351 : vector<8x256xf32>
    %353 = arith.select %15, %352, %348 : vector<8x256xi1>, vector<8x256xf32>
    %354 = vector.extract_strided_slice %353 {offsets = [0, 0], sizes = [8, 64], strides = [1, 1]} : vector<8x256xf32> to vector<8x64xf32>
    %355 = vector.extract_strided_slice %353 {offsets = [0, 64], sizes = [8, 64], strides = [1, 1]} : vector<8x256xf32> to vector<8x64xf32>
    %356 = vector.extract_strided_slice %353 {offsets = [0, 128], sizes = [8, 64], strides = [1, 1]} : vector<8x256xf32> to vector<8x64xf32>
    %357 = vector.extract_strided_slice %353 {offsets = [0, 192], sizes = [8, 64], strides = [1, 1]} : vector<8x256xf32> to vector<8x64xf32>
    %358 = arith.mulf %355, %337 : vector<8x64xf32>
    %359 = arith.mulf %354, %356 : vector<8x64xf32>
    %360 = arith.addf %358, %359 : vector<8x64xf32>
    %361 = math.tanh %360 : vector<8x64xf32>
    %362 = arith.mulf %357, %361 : vector<8x64xf32>
    %363 = arith.select %19, %362, %336 : vector<8x64xi1>, vector<8x64xf32>
    %364 = arith.select %19, %360, %337 : vector<8x64xi1>, vector<8x64xf32>
    %cst_145 = arith.constant 0.000000e+00 : f32
    %365 = vector.broadcast %cst_145 : f32 to vector<8x64xf32>
    %366 = arith.select %19, %362, %365 : vector<8x64xi1>, vector<8x64xf32>
    %367 = vector.extract_strided_slice %366 {offsets = [0, 0], sizes = [8, 32], strides = [1, 1]} : vector<8x64xf32> to vector<8x32xf32>
    %c0_146 = arith.constant 0 : index
    %c0_147 = arith.constant 0 : index
    %368 = vector.load %arg9[%c0_146, %c0_147] : memref<64x64xf32, #tpu.memory_space<vmem>>, vector<8x32xf32>
    tpu.vector_store %arg9[%c0_146, %c0_147], %367 {strides = array<i32>} : memref<64x64xf32, #tpu.memory_space<vmem>>, vector<8x32xf32>,
    %369 = vector.extract_strided_slice %366 {offsets = [0, 32], sizes = [8, 32], strides = [1, 1]} : vector<8x64xf32> to vector<8x32xf32>
    %c56_148 = arith.constant 56 : index
    %c32_149 = arith.constant 32 : index
    %370 = vector.load %arg9[%c56_148, %c32_149] : memref<64x64xf32, #tpu.memory_space<vmem>>, vector<8x32xf32>
    tpu.vector_store %arg9[%c56_148, %c32_149], %369 {strides = array<i32>} : memref<64x64xf32, #tpu.memory_space<vmem>>, vector<8x32xf32>,
    %371 = arith.truncf %363 : vector<8x64xf32> to vector<8x64xbf16>
    %cst_150 = arith.constant dense<0.000000e+00> : vector<8x256xf32>
    %372 = tpu.matmul %371, %327, %cst_150 {dimension_numbers = #tpu.dot_dimension_numbers<[1], [0], [0], [1], [0, 0, 1, 1], [], []>} : vector<8x64xbf16>, vector<64x256xbf16>, vector<8x256xf32> -> vector<8x256xf32>
    %c8_151 = arith.constant 8 : index
    %c0_152 = arith.constant 0 : index
    %373 = vector.load %arg10[%c8_151, %c0_152] : memref<64x256xf32, #tpu.memory_space<vmem>>, vector<8x256xf32>
    %c48_153 = arith.constant 48 : index
    %c0_154 = arith.constant 0 : index
    %374 = vector.load %arg10[%c48_153, %c0_154] : memref<64x256xf32, #tpu.memory_space<vmem>>, vector<8x256xf32>
    %375 = arith.select %10, %373, %374 : vector<8x256xi1>, vector<8x256xf32>
    %376 = arith.addf %375, %372 : vector<8x256xf32>
    %377 = arith.negf %376 : vector<8x256xf32>
    %378 = math.exp %377 : vector<8x256xf32>
    %cst_155 = arith.constant 1.000000e+00 : f32
    %379 = vector.broadcast %cst_155 : f32 to vector<8x256xf32>
    %380 = arith.addf %379, %378 : vector<8x256xf32>
    %381 = arith.divf %379, %380 : vector<8x256xf32>
    %cst_156 = arith.constant 2.000000e+00 : f32
    %382 = vector.broadcast %cst_156 : f32 to vector<8x256xf32>
    %383 = arith.mulf %382, %381 : vector<8x256xf32>
    %cst_157 = arith.constant 1.000000e+00 : f32
    %384 = vector.broadcast %cst_157 : f32 to vector<8x256xf32>
    %385 = arith.subf %383, %384 : vector<8x256xf32>
    %386 = arith.select %15, %385, %381 : vector<8x256xi1>, vector<8x256xf32>
    %387 = vector.extract_strided_slice %386 {offsets = [0, 0], sizes = [8, 64], strides = [1, 1]} : vector<8x256xf32> to vector<8x64xf32>
    %388 = vector.extract_strided_slice %386 {offsets = [0, 64], sizes = [8, 64], strides = [1, 1]} : vector<8x256xf32> to vector<8x64xf32>
    %389 = vector.extract_strided_slice %386 {offsets = [0, 128], sizes = [8, 64], strides = [1, 1]} : vector<8x256xf32> to vector<8x64xf32>
    %390 = vector.extract_strided_slice %386 {offsets = [0, 192], sizes = [8, 64], strides = [1, 1]} : vector<8x256xf32> to vector<8x64xf32>
    %391 = arith.mulf %388, %364 : vector<8x64xf32>
    %392 = arith.mulf %387, %389 : vector<8x64xf32>
    %393 = arith.addf %391, %392 : vector<8x64xf32>
    %394 = math.tanh %393 : vector<8x64xf32>
    %395 = arith.mulf %390, %394 : vector<8x64xf32>
    %396 = arith.select %23, %395, %363 : vector<8x64xi1>, vector<8x64xf32>
    %397 = arith.select %23, %393, %364 : vector<8x64xi1>, vector<8x64xf32>
    %cst_158 = arith.constant 0.000000e+00 : f32
    %398 = vector.broadcast %cst_158 : f32 to vector<8x64xf32>
    %399 = arith.select %23, %395, %398 : vector<8x64xi1>, vector<8x64xf32>
    %400 = vector.extract_strided_slice %399 {offsets = [0, 0], sizes = [8, 32], strides = [1, 1]} : vector<8x64xf32> to vector<8x32xf32>
    %c8_159 = arith.constant 8 : index
    %c0_160 = arith.constant 0 : index
    %401 = vector.load %arg9[%c8_159, %c0_160] : memref<64x64xf32, #tpu.memory_space<vmem>>, vector<8x32xf32>
    tpu.vector_store %arg9[%c8_159, %c0_160], %400 {strides = array<i32>} : memref<64x64xf32, #tpu.memory_space<vmem>>, vector<8x32xf32>,
    %402 = vector.extract_strided_slice %399 {offsets = [0, 32], sizes = [8, 32], strides = [1, 1]} : vector<8x64xf32> to vector<8x32xf32>
    %c48_161 = arith.constant 48 : index
    %c32_162 = arith.constant 32 : index
    %403 = vector.load %arg9[%c48_161, %c32_162] : memref<64x64xf32, #tpu.memory_space<vmem>>, vector<8x32xf32>
    tpu.vector_store %arg9[%c48_161, %c32_162], %402 {strides = array<i32>} : memref<64x64xf32, #tpu.memory_space<vmem>>, vector<8x32xf32>,
    %404 = arith.truncf %396 : vector<8x64xf32> to vector<8x64xbf16>
    %cst_163 = arith.constant dense<0.000000e+00> : vector<8x256xf32>
    %405 = tpu.matmul %404, %327, %cst_163 {dimension_numbers = #tpu.dot_dimension_numbers<[1], [0], [0], [1], [0, 0, 1, 1], [], []>} : vector<8x64xbf16>, vector<64x256xbf16>, vector<8x256xf32> -> vector<8x256xf32>
    %c16_164 = arith.constant 16 : index
    %c0_165 = arith.constant 0 : index
    %406 = vector.load %arg10[%c16_164, %c0_165] : memref<64x256xf32, #tpu.memory_space<vmem>>, vector<8x256xf32>
    %c40_166 = arith.constant 40 : index
    %c0_167 = arith.constant 0 : index
    %407 = vector.load %arg10[%c40_166, %c0_167] : memref<64x256xf32, #tpu.memory_space<vmem>>, vector<8x256xf32>
    %408 = arith.select %10, %406, %407 : vector<8x256xi1>, vector<8x256xf32>
    %409 = arith.addf %408, %405 : vector<8x256xf32>
    %410 = arith.negf %409 : vector<8x256xf32>
    %411 = math.exp %410 : vector<8x256xf32>
    %cst_168 = arith.constant 1.000000e+00 : f32
    %412 = vector.broadcast %cst_168 : f32 to vector<8x256xf32>
    %413 = arith.addf %412, %411 : vector<8x256xf32>
    %414 = arith.divf %412, %413 : vector<8x256xf32>
    %cst_169 = arith.constant 2.000000e+00 : f32
    %415 = vector.broadcast %cst_169 : f32 to vector<8x256xf32>
    %416 = arith.mulf %415, %414 : vector<8x256xf32>
    %cst_170 = arith.constant 1.000000e+00 : f32
    %417 = vector.broadcast %cst_170 : f32 to vector<8x256xf32>
    %418 = arith.subf %416, %417 : vector<8x256xf32>
    %419 = arith.select %15, %418, %414 : vector<8x256xi1>, vector<8x256xf32>
    %420 = vector.extract_strided_slice %419 {offsets = [0, 0], sizes = [8, 64], strides = [1, 1]} : vector<8x256xf32> to vector<8x64xf32>
    %421 = vector.extract_strided_slice %419 {offsets = [0, 64], sizes = [8, 64], strides = [1, 1]} : vector<8x256xf32> to vector<8x64xf32>
    %422 = vector.extract_strided_slice %419 {offsets = [0, 128], sizes = [8, 64], strides = [1, 1]} : vector<8x256xf32> to vector<8x64xf32>
    %423 = vector.extract_strided_slice %419 {offsets = [0, 192], sizes = [8, 64], strides = [1, 1]} : vector<8x256xf32> to vector<8x64xf32>
    %424 = arith.mulf %421, %397 : vector<8x64xf32>
    %425 = arith.mulf %420, %422 : vector<8x64xf32>
    %426 = arith.addf %424, %425 : vector<8x64xf32>
    %427 = math.tanh %426 : vector<8x64xf32>
    %428 = arith.mulf %423, %427 : vector<8x64xf32>
    %429 = arith.select %27, %428, %396 : vector<8x64xi1>, vector<8x64xf32>
    %430 = arith.select %27, %426, %397 : vector<8x64xi1>, vector<8x64xf32>
    %cst_171 = arith.constant 0.000000e+00 : f32
    %431 = vector.broadcast %cst_171 : f32 to vector<8x64xf32>
    %432 = arith.select %27, %428, %431 : vector<8x64xi1>, vector<8x64xf32>
    %433 = vector.extract_strided_slice %432 {offsets = [0, 0], sizes = [8, 32], strides = [1, 1]} : vector<8x64xf32> to vector<8x32xf32>
    %c16_172 = arith.constant 16 : index
    %c0_173 = arith.constant 0 : index
    %434 = vector.load %arg9[%c16_172, %c0_173] : memref<64x64xf32, #tpu.memory_space<vmem>>, vector<8x32xf32>
    tpu.vector_store %arg9[%c16_172, %c0_173], %433 {strides = array<i32>} : memref<64x64xf32, #tpu.memory_space<vmem>>, vector<8x32xf32>,
    %435 = vector.extract_strided_slice %432 {offsets = [0, 32], sizes = [8, 32], strides = [1, 1]} : vector<8x64xf32> to vector<8x32xf32>
    %c40_174 = arith.constant 40 : index
    %c32_175 = arith.constant 32 : index
    %436 = vector.load %arg9[%c40_174, %c32_175] : memref<64x64xf32, #tpu.memory_space<vmem>>, vector<8x32xf32>
    tpu.vector_store %arg9[%c40_174, %c32_175], %435 {strides = array<i32>} : memref<64x64xf32, #tpu.memory_space<vmem>>, vector<8x32xf32>,
    %437 = arith.truncf %429 : vector<8x64xf32> to vector<8x64xbf16>
    %cst_176 = arith.constant dense<0.000000e+00> : vector<8x256xf32>
    %438 = tpu.matmul %437, %327, %cst_176 {dimension_numbers = #tpu.dot_dimension_numbers<[1], [0], [0], [1], [0, 0, 1, 1], [], []>} : vector<8x64xbf16>, vector<64x256xbf16>, vector<8x256xf32> -> vector<8x256xf32>
    %c24_177 = arith.constant 24 : index
    %c0_178 = arith.constant 0 : index
    %439 = vector.load %arg10[%c24_177, %c0_178] : memref<64x256xf32, #tpu.memory_space<vmem>>, vector<8x256xf32>
    %c32_179 = arith.constant 32 : index
    %c0_180 = arith.constant 0 : index
    %440 = vector.load %arg10[%c32_179, %c0_180] : memref<64x256xf32, #tpu.memory_space<vmem>>, vector<8x256xf32>
    %441 = arith.select %10, %439, %440 : vector<8x256xi1>, vector<8x256xf32>
    %442 = arith.addf %441, %438 : vector<8x256xf32>
    %443 = arith.negf %442 : vector<8x256xf32>
    %444 = math.exp %443 : vector<8x256xf32>
    %cst_181 = arith.constant 1.000000e+00 : f32
    %445 = vector.broadcast %cst_181 : f32 to vector<8x256xf32>
    %446 = arith.addf %445, %444 : vector<8x256xf32>
    %447 = arith.divf %445, %446 : vector<8x256xf32>
    %cst_182 = arith.constant 2.000000e+00 : f32
    %448 = vector.broadcast %cst_182 : f32 to vector<8x256xf32>
    %449 = arith.mulf %448, %447 : vector<8x256xf32>
    %cst_183 = arith.constant 1.000000e+00 : f32
    %450 = vector.broadcast %cst_183 : f32 to vector<8x256xf32>
    %451 = arith.subf %449, %450 : vector<8x256xf32>
    %452 = arith.select %15, %451, %447 : vector<8x256xi1>, vector<8x256xf32>
    %453 = vector.extract_strided_slice %452 {offsets = [0, 0], sizes = [8, 64], strides = [1, 1]} : vector<8x256xf32> to vector<8x64xf32>
    %454 = vector.extract_strided_slice %452 {offsets = [0, 64], sizes = [8, 64], strides = [1, 1]} : vector<8x256xf32> to vector<8x64xf32>
    %455 = vector.extract_strided_slice %452 {offsets = [0, 128], sizes = [8, 64], strides = [1, 1]} : vector<8x256xf32> to vector<8x64xf32>
    %456 = vector.extract_strided_slice %452 {offsets = [0, 192], sizes = [8, 64], strides = [1, 1]} : vector<8x256xf32> to vector<8x64xf32>
    %457 = arith.mulf %454, %430 : vector<8x64xf32>
    %458 = arith.mulf %453, %455 : vector<8x64xf32>
    %459 = arith.addf %457, %458 : vector<8x64xf32>
    %460 = math.tanh %459 : vector<8x64xf32>
    %461 = arith.mulf %456, %460 : vector<8x64xf32>
    %462 = arith.select %31, %461, %429 : vector<8x64xi1>, vector<8x64xf32>
    %463 = arith.select %31, %459, %430 : vector<8x64xi1>, vector<8x64xf32>
    %cst_184 = arith.constant 0.000000e+00 : f32
    %464 = vector.broadcast %cst_184 : f32 to vector<8x64xf32>
    %465 = arith.select %31, %461, %464 : vector<8x64xi1>, vector<8x64xf32>
    %466 = vector.extract_strided_slice %465 {offsets = [0, 0], sizes = [8, 32], strides = [1, 1]} : vector<8x64xf32> to vector<8x32xf32>
    %c24_185 = arith.constant 24 : index
    %c0_186 = arith.constant 0 : index
    %467 = vector.load %arg9[%c24_185, %c0_186] : memref<64x64xf32, #tpu.memory_space<vmem>>, vector<8x32xf32>
    tpu.vector_store %arg9[%c24_185, %c0_186], %466 {strides = array<i32>} : memref<64x64xf32, #tpu.memory_space<vmem>>, vector<8x32xf32>,
    %468 = vector.extract_strided_slice %465 {offsets = [0, 32], sizes = [8, 32], strides = [1, 1]} : vector<8x64xf32> to vector<8x32xf32>
    %c32_187 = arith.constant 32 : index
    %c32_188 = arith.constant 32 : index
    %469 = vector.load %arg9[%c32_187, %c32_188] : memref<64x64xf32, #tpu.memory_space<vmem>>, vector<8x32xf32>
    tpu.vector_store %arg9[%c32_187, %c32_188], %468 {strides = array<i32>} : memref<64x64xf32, #tpu.memory_space<vmem>>, vector<8x32xf32>,
    %470 = arith.truncf %462 : vector<8x64xf32> to vector<8x64xbf16>
    %cst_189 = arith.constant dense<0.000000e+00> : vector<8x256xf32>
    %471 = tpu.matmul %470, %327, %cst_189 {dimension_numbers = #tpu.dot_dimension_numbers<[1], [0], [0], [1], [0, 0, 1, 1], [], []>} : vector<8x64xbf16>, vector<64x256xbf16>, vector<8x256xf32> -> vector<8x256xf32>
    %c32_190 = arith.constant 32 : index
    %c0_191 = arith.constant 0 : index
    %472 = vector.load %arg10[%c32_190, %c0_191] : memref<64x256xf32, #tpu.memory_space<vmem>>, vector<8x256xf32>
    %c24_192 = arith.constant 24 : index
    %c0_193 = arith.constant 0 : index
    %473 = vector.load %arg10[%c24_192, %c0_193] : memref<64x256xf32, #tpu.memory_space<vmem>>, vector<8x256xf32>
    %474 = arith.select %10, %472, %473 : vector<8x256xi1>, vector<8x256xf32>
    %475 = arith.addf %474, %471 : vector<8x256xf32>
    %476 = arith.negf %475 : vector<8x256xf32>
    %477 = math.exp %476 : vector<8x256xf32>
    %cst_194 = arith.constant 1.000000e+00 : f32
    %478 = vector.broadcast %cst_194 : f32 to vector<8x256xf32>
    %479 = arith.addf %478, %477 : vector<8x256xf32>
    %480 = arith.divf %478, %479 : vector<8x256xf32>
    %cst_195 = arith.constant 2.000000e+00 : f32
    %481 = vector.broadcast %cst_195 : f32 to vector<8x256xf32>
    %482 = arith.mulf %481, %480 : vector<8x256xf32>
    %cst_196 = arith.constant 1.000000e+00 : f32
    %483 = vector.broadcast %cst_196 : f32 to vector<8x256xf32>
    %484 = arith.subf %482, %483 : vector<8x256xf32>
    %485 = arith.select %15, %484, %480 : vector<8x256xi1>, vector<8x256xf32>
    %486 = vector.extract_strided_slice %485 {offsets = [0, 0], sizes = [8, 64], strides = [1, 1]} : vector<8x256xf32> to vector<8x64xf32>
    %487 = vector.extract_strided_slice %485 {offsets = [0, 64], sizes = [8, 64], strides = [1, 1]} : vector<8x256xf32> to vector<8x64xf32>
    %488 = vector.extract_strided_slice %485 {offsets = [0, 128], sizes = [8, 64], strides = [1, 1]} : vector<8x256xf32> to vector<8x64xf32>
    %489 = vector.extract_strided_slice %485 {offsets = [0, 192], sizes = [8, 64], strides = [1, 1]} : vector<8x256xf32> to vector<8x64xf32>
    %490 = arith.mulf %487, %463 : vector<8x64xf32>
    %491 = arith.mulf %486, %488 : vector<8x64xf32>
    %492 = arith.addf %490, %491 : vector<8x64xf32>
    %493 = math.tanh %492 : vector<8x64xf32>
    %494 = arith.mulf %489, %493 : vector<8x64xf32>
    %495 = arith.select %35, %494, %462 : vector<8x64xi1>, vector<8x64xf32>
    %496 = arith.select %35, %492, %463 : vector<8x64xi1>, vector<8x64xf32>
    %cst_197 = arith.constant 0.000000e+00 : f32
    %497 = vector.broadcast %cst_197 : f32 to vector<8x64xf32>
    %498 = arith.select %35, %494, %497 : vector<8x64xi1>, vector<8x64xf32>
    %499 = vector.extract_strided_slice %498 {offsets = [0, 0], sizes = [8, 32], strides = [1, 1]} : vector<8x64xf32> to vector<8x32xf32>
    %c32_198 = arith.constant 32 : index
    %c0_199 = arith.constant 0 : index
    %500 = vector.load %arg9[%c32_198, %c0_199] : memref<64x64xf32, #tpu.memory_space<vmem>>, vector<8x32xf32>
    tpu.vector_store %arg9[%c32_198, %c0_199], %499 {strides = array<i32>} : memref<64x64xf32, #tpu.memory_space<vmem>>, vector<8x32xf32>,
    %501 = vector.extract_strided_slice %498 {offsets = [0, 32], sizes = [8, 32], strides = [1, 1]} : vector<8x64xf32> to vector<8x32xf32>
    %c24_200 = arith.constant 24 : index
    %c32_201 = arith.constant 32 : index
    %502 = vector.load %arg9[%c24_200, %c32_201] : memref<64x64xf32, #tpu.memory_space<vmem>>, vector<8x32xf32>
    tpu.vector_store %arg9[%c24_200, %c32_201], %501 {strides = array<i32>} : memref<64x64xf32, #tpu.memory_space<vmem>>, vector<8x32xf32>,
    %503 = arith.truncf %495 : vector<8x64xf32> to vector<8x64xbf16>
    %cst_202 = arith.constant dense<0.000000e+00> : vector<8x256xf32>
    %504 = tpu.matmul %503, %327, %cst_202 {dimension_numbers = #tpu.dot_dimension_numbers<[1], [0], [0], [1], [0, 0, 1, 1], [], []>} : vector<8x64xbf16>, vector<64x256xbf16>, vector<8x256xf32> -> vector<8x256xf32>
    %c40_203 = arith.constant 40 : index
    %c0_204 = arith.constant 0 : index
    %505 = vector.load %arg10[%c40_203, %c0_204] : memref<64x256xf32, #tpu.memory_space<vmem>>, vector<8x256xf32>
    %c16_205 = arith.constant 16 : index
    %c0_206 = arith.constant 0 : index
    %506 = vector.load %arg10[%c16_205, %c0_206] : memref<64x256xf32, #tpu.memory_space<vmem>>, vector<8x256xf32>
    %507 = arith.select %10, %505, %506 : vector<8x256xi1>, vector<8x256xf32>
    %508 = arith.addf %507, %504 : vector<8x256xf32>
    %509 = arith.negf %508 : vector<8x256xf32>
    %510 = math.exp %509 : vector<8x256xf32>
    %cst_207 = arith.constant 1.000000e+00 : f32
    %511 = vector.broadcast %cst_207 : f32 to vector<8x256xf32>
    %512 = arith.addf %511, %510 : vector<8x256xf32>
    %513 = arith.divf %511, %512 : vector<8x256xf32>
    %cst_208 = arith.constant 2.000000e+00 : f32
    %514 = vector.broadcast %cst_208 : f32 to vector<8x256xf32>
    %515 = arith.mulf %514, %513 : vector<8x256xf32>
    %cst_209 = arith.constant 1.000000e+00 : f32
    %516 = vector.broadcast %cst_209 : f32 to vector<8x256xf32>
    %517 = arith.subf %515, %516 : vector<8x256xf32>
    %518 = arith.select %15, %517, %513 : vector<8x256xi1>, vector<8x256xf32>
    %519 = vector.extract_strided_slice %518 {offsets = [0, 0], sizes = [8, 64], strides = [1, 1]} : vector<8x256xf32> to vector<8x64xf32>
    %520 = vector.extract_strided_slice %518 {offsets = [0, 64], sizes = [8, 64], strides = [1, 1]} : vector<8x256xf32> to vector<8x64xf32>
    %521 = vector.extract_strided_slice %518 {offsets = [0, 128], sizes = [8, 64], strides = [1, 1]} : vector<8x256xf32> to vector<8x64xf32>
    %522 = vector.extract_strided_slice %518 {offsets = [0, 192], sizes = [8, 64], strides = [1, 1]} : vector<8x256xf32> to vector<8x64xf32>
    %523 = arith.mulf %520, %496 : vector<8x64xf32>
    %524 = arith.mulf %519, %521 : vector<8x64xf32>
    %525 = arith.addf %523, %524 : vector<8x64xf32>
    %526 = math.tanh %525 : vector<8x64xf32>
    %527 = arith.mulf %522, %526 : vector<8x64xf32>
    %528 = arith.select %39, %527, %495 : vector<8x64xi1>, vector<8x64xf32>
    %529 = arith.select %39, %525, %496 : vector<8x64xi1>, vector<8x64xf32>
    %cst_210 = arith.constant 0.000000e+00 : f32
    %530 = vector.broadcast %cst_210 : f32 to vector<8x64xf32>
    %531 = arith.select %39, %527, %530 : vector<8x64xi1>, vector<8x64xf32>
    %532 = vector.extract_strided_slice %531 {offsets = [0, 0], sizes = [8, 32], strides = [1, 1]} : vector<8x64xf32> to vector<8x32xf32>
    %c40_211 = arith.constant 40 : index
    %c0_212 = arith.constant 0 : index
    %533 = vector.load %arg9[%c40_211, %c0_212] : memref<64x64xf32, #tpu.memory_space<vmem>>, vector<8x32xf32>
    tpu.vector_store %arg9[%c40_211, %c0_212], %532 {strides = array<i32>} : memref<64x64xf32, #tpu.memory_space<vmem>>, vector<8x32xf32>,
    %534 = vector.extract_strided_slice %531 {offsets = [0, 32], sizes = [8, 32], strides = [1, 1]} : vector<8x64xf32> to vector<8x32xf32>
    %c16_213 = arith.constant 16 : index
    %c32_214 = arith.constant 32 : index
    %535 = vector.load %arg9[%c16_213, %c32_214] : memref<64x64xf32, #tpu.memory_space<vmem>>, vector<8x32xf32>
    tpu.vector_store %arg9[%c16_213, %c32_214], %534 {strides = array<i32>} : memref<64x64xf32, #tpu.memory_space<vmem>>, vector<8x32xf32>,
    %536 = arith.truncf %528 : vector<8x64xf32> to vector<8x64xbf16>
    %cst_215 = arith.constant dense<0.000000e+00> : vector<8x256xf32>
    %537 = tpu.matmul %536, %327, %cst_215 {dimension_numbers = #tpu.dot_dimension_numbers<[1], [0], [0], [1], [0, 0, 1, 1], [], []>} : vector<8x64xbf16>, vector<64x256xbf16>, vector<8x256xf32> -> vector<8x256xf32>
    %c48_216 = arith.constant 48 : index
    %c0_217 = arith.constant 0 : index
    %538 = vector.load %arg10[%c48_216, %c0_217] : memref<64x256xf32, #tpu.memory_space<vmem>>, vector<8x256xf32>
    %c8_218 = arith.constant 8 : index
    %c0_219 = arith.constant 0 : index
    %539 = vector.load %arg10[%c8_218, %c0_219] : memref<64x256xf32, #tpu.memory_space<vmem>>, vector<8x256xf32>
    %540 = arith.select %10, %538, %539 : vector<8x256xi1>, vector<8x256xf32>
    %541 = arith.addf %540, %537 : vector<8x256xf32>
    %542 = arith.negf %541 : vector<8x256xf32>
    %543 = math.exp %542 : vector<8x256xf32>
    %cst_220 = arith.constant 1.000000e+00 : f32
    %544 = vector.broadcast %cst_220 : f32 to vector<8x256xf32>
    %545 = arith.addf %544, %543 : vector<8x256xf32>
    %546 = arith.divf %544, %545 : vector<8x256xf32>
    %cst_221 = arith.constant 2.000000e+00 : f32
    %547 = vector.broadcast %cst_221 : f32 to vector<8x256xf32>
    %548 = arith.mulf %547, %546 : vector<8x256xf32>
    %cst_222 = arith.constant 1.000000e+00 : f32
    %549 = vector.broadcast %cst_222 : f32 to vector<8x256xf32>
    %550 = arith.subf %548, %549 : vector<8x256xf32>
    %551 = arith.select %15, %550, %546 : vector<8x256xi1>, vector<8x256xf32>
    %552 = vector.extract_strided_slice %551 {offsets = [0, 0], sizes = [8, 64], strides = [1, 1]} : vector<8x256xf32> to vector<8x64xf32>
    %553 = vector.extract_strided_slice %551 {offsets = [0, 64], sizes = [8, 64], strides = [1, 1]} : vector<8x256xf32> to vector<8x64xf32>
    %554 = vector.extract_strided_slice %551 {offsets = [0, 128], sizes = [8, 64], strides = [1, 1]} : vector<8x256xf32> to vector<8x64xf32>
    %555 = vector.extract_strided_slice %551 {offsets = [0, 192], sizes = [8, 64], strides = [1, 1]} : vector<8x256xf32> to vector<8x64xf32>
    %556 = arith.mulf %553, %529 : vector<8x64xf32>
    %557 = arith.mulf %552, %554 : vector<8x64xf32>
    %558 = arith.addf %556, %557 : vector<8x64xf32>
    %559 = math.tanh %558 : vector<8x64xf32>
    %560 = arith.mulf %555, %559 : vector<8x64xf32>
    %561 = arith.select %43, %560, %528 : vector<8x64xi1>, vector<8x64xf32>
    %562 = arith.select %43, %558, %529 : vector<8x64xi1>, vector<8x64xf32>
    %cst_223 = arith.constant 0.000000e+00 : f32
    %563 = vector.broadcast %cst_223 : f32 to vector<8x64xf32>
    %564 = arith.select %43, %560, %563 : vector<8x64xi1>, vector<8x64xf32>
    %565 = vector.extract_strided_slice %564 {offsets = [0, 0], sizes = [8, 32], strides = [1, 1]} : vector<8x64xf32> to vector<8x32xf32>
    %c48_224 = arith.constant 48 : index
    %c0_225 = arith.constant 0 : index
    %566 = vector.load %arg9[%c48_224, %c0_225] : memref<64x64xf32, #tpu.memory_space<vmem>>, vector<8x32xf32>
    tpu.vector_store %arg9[%c48_224, %c0_225], %565 {strides = array<i32>} : memref<64x64xf32, #tpu.memory_space<vmem>>, vector<8x32xf32>,
    %567 = vector.extract_strided_slice %564 {offsets = [0, 32], sizes = [8, 32], strides = [1, 1]} : vector<8x64xf32> to vector<8x32xf32>
    %c8_226 = arith.constant 8 : index
    %c32_227 = arith.constant 32 : index
    %568 = vector.load %arg9[%c8_226, %c32_227] : memref<64x64xf32, #tpu.memory_space<vmem>>, vector<8x32xf32>
    tpu.vector_store %arg9[%c8_226, %c32_227], %567 {strides = array<i32>} : memref<64x64xf32, #tpu.memory_space<vmem>>, vector<8x32xf32>,
    %569 = arith.truncf %561 : vector<8x64xf32> to vector<8x64xbf16>
    %cst_228 = arith.constant dense<0.000000e+00> : vector<8x256xf32>
    %570 = tpu.matmul %569, %327, %cst_228 {dimension_numbers = #tpu.dot_dimension_numbers<[1], [0], [0], [1], [0, 0, 1, 1], [], []>} : vector<8x64xbf16>, vector<64x256xbf16>, vector<8x256xf32> -> vector<8x256xf32>
    %c56_229 = arith.constant 56 : index
    %c0_230 = arith.constant 0 : index
    %571 = vector.load %arg10[%c56_229, %c0_230] : memref<64x256xf32, #tpu.memory_space<vmem>>, vector<8x256xf32>
    %c0_231 = arith.constant 0 : index
    %c0_232 = arith.constant 0 : index
    %572 = vector.load %arg10[%c0_231, %c0_232] : memref<64x256xf32, #tpu.memory_space<vmem>>, vector<8x256xf32>
    %573 = arith.select %10, %571, %572 : vector<8x256xi1>, vector<8x256xf32>
    %574 = arith.addf %573, %570 : vector<8x256xf32>
    %575 = arith.negf %574 : vector<8x256xf32>
    %576 = math.exp %575 : vector<8x256xf32>
    %cst_233 = arith.constant 1.000000e+00 : f32
    %577 = vector.broadcast %cst_233 : f32 to vector<8x256xf32>
    %578 = arith.addf %577, %576 : vector<8x256xf32>
    %579 = arith.divf %577, %578 : vector<8x256xf32>
    %cst_234 = arith.constant 2.000000e+00 : f32
    %580 = vector.broadcast %cst_234 : f32 to vector<8x256xf32>
    %581 = arith.mulf %580, %579 : vector<8x256xf32>
    %cst_235 = arith.constant 1.000000e+00 : f32
    %582 = vector.broadcast %cst_235 : f32 to vector<8x256xf32>
    %583 = arith.subf %581, %582 : vector<8x256xf32>
    %584 = arith.select %15, %583, %579 : vector<8x256xi1>, vector<8x256xf32>
    %585 = vector.extract_strided_slice %584 {offsets = [0, 0], sizes = [8, 64], strides = [1, 1]} : vector<8x256xf32> to vector<8x64xf32>
    %586 = vector.extract_strided_slice %584 {offsets = [0, 64], sizes = [8, 64], strides = [1, 1]} : vector<8x256xf32> to vector<8x64xf32>
    %587 = vector.extract_strided_slice %584 {offsets = [0, 128], sizes = [8, 64], strides = [1, 1]} : vector<8x256xf32> to vector<8x64xf32>
    %588 = vector.extract_strided_slice %584 {offsets = [0, 192], sizes = [8, 64], strides = [1, 1]} : vector<8x256xf32> to vector<8x64xf32>
    %589 = arith.mulf %586, %562 : vector<8x64xf32>
    %590 = arith.mulf %585, %587 : vector<8x64xf32>
    %591 = arith.addf %589, %590 : vector<8x64xf32>
    %592 = math.tanh %591 : vector<8x64xf32>
    %593 = arith.mulf %588, %592 : vector<8x64xf32>
    %cst_236 = arith.constant 0.000000e+00 : f32
    %594 = vector.broadcast %cst_236 : f32 to vector<8x64xf32>
    %595 = arith.select %47, %593, %594 : vector<8x64xi1>, vector<8x64xf32>
    %596 = vector.extract_strided_slice %595 {offsets = [0, 0], sizes = [8, 32], strides = [1, 1]} : vector<8x64xf32> to vector<8x32xf32>
    %c56_237 = arith.constant 56 : index
    %c0_238 = arith.constant 0 : index
    %597 = vector.load %arg9[%c56_237, %c0_238] : memref<64x64xf32, #tpu.memory_space<vmem>>, vector<8x32xf32>
    tpu.vector_store %arg9[%c56_237, %c0_238], %596 {strides = array<i32>} : memref<64x64xf32, #tpu.memory_space<vmem>>, vector<8x32xf32>,
    %598 = vector.extract_strided_slice %595 {offsets = [0, 32], sizes = [8, 32], strides = [1, 1]} : vector<8x64xf32> to vector<8x32xf32>
    %c0_239 = arith.constant 0 : index
    %c32_240 = arith.constant 32 : index
    %599 = vector.load %arg9[%c0_239, %c32_240] : memref<64x64xf32, #tpu.memory_space<vmem>>, vector<8x32xf32>
    tpu.vector_store %arg9[%c0_239, %c32_240], %598 {strides = array<i32>} : memref<64x64xf32, #tpu.memory_space<vmem>>, vector<8x32xf32>,
    %c2 = arith.constant 2 : index
    %c0_241 = arith.constant 0 : index
    %c0_242 = arith.constant 0 : index
    %600 = vector.load %arg2[%c2, %c0_241, %c0_242] : memref<3x64x256xbf16, #tpu.memory_space<vmem>>, vector<1x64x256xbf16>
    %601 = vector.shape_cast %600 : vector<1x64x256xbf16> to vector<64x256xbf16>
    %c2_243 = arith.constant 2 : index
    %c0_244 = arith.constant 0 : index
    %c0_245 = arith.constant 0 : index
    %602 = vector.load %arg3[%c2_243, %c0_244, %c0_245] : memref<3x64x256xbf16, #tpu.memory_space<vmem>>, vector<1x64x256xbf16>
    %603 = vector.shape_cast %602 : vector<1x64x256xbf16> to vector<64x256xbf16>
    %c2_246 = arith.constant 2 : index
    %c0_247 = arith.constant 0 : index
    %c0_248 = arith.constant 0 : index
    %604 = vector.load %arg4[%c2_246, %c0_247, %c0_248] : memref<3x1x256xf32, #tpu.memory_space<vmem>>, vector<1x1x256xf32>
    %605 = vector.shape_cast %604 : vector<1x1x256xf32> to vector<1x256xf32>
    %c0_249 = arith.constant 0 : index
    %c0_250 = arith.constant 0 : index
    %606 = vector.load %arg9[%c0_249, %c0_250] : memref<64x64xf32, #tpu.memory_space<vmem>>, vector<64x64xf32>
    %607 = arith.truncf %606 : vector<64x64xf32> to vector<64x64xbf16>
    %cst_251 = arith.constant dense<0.000000e+00> : vector<64x256xf32>
    %608 = tpu.matmul %607, %601, %cst_251 {dimension_numbers = #tpu.dot_dimension_numbers<[1], [0], [0], [1], [0, 0, 1, 1], [], []>} : vector<64x64xbf16>, vector<64x256xbf16>, vector<64x256xf32> -> vector<64x256xf32>
    %609 = vector.broadcast %605 : vector<1x256xf32> to vector<64x256xf32>
    %610 = arith.addf %608, %609 : vector<64x256xf32>
    %c0_252 = arith.constant 0 : index
    %c0_253 = arith.constant 0 : index
    %611 = vector.load %arg10[%c0_252, %c0_253] : memref<64x256xf32, #tpu.memory_space<vmem>>, vector<64x256xf32>
    tpu.vector_store %arg10[%c0_252, %c0_253], %610 {strides = array<i32>} : memref<64x256xf32, #tpu.memory_space<vmem>>, vector<64x256xf32>,
    %cst_254 = arith.constant 0.000000e+00 : f32
    %612 = vector.broadcast %cst_254 : f32 to vector<8x64xf32>
    %cst_255 = arith.constant 0.000000e+00 : f32
    %613 = vector.broadcast %cst_255 : f32 to vector<8x64xf32>
    %614 = arith.truncf %612 : vector<8x64xf32> to vector<8x64xbf16>
    %cst_256 = arith.constant dense<0.000000e+00> : vector<8x256xf32>
    %615 = tpu.matmul %614, %603, %cst_256 {dimension_numbers = #tpu.dot_dimension_numbers<[1], [0], [0], [1], [0, 0, 1, 1], [], []>} : vector<8x64xbf16>, vector<64x256xbf16>, vector<8x256xf32> -> vector<8x256xf32>
    %c0_257 = arith.constant 0 : index
    %c0_258 = arith.constant 0 : index
    %616 = vector.load %arg10[%c0_257, %c0_258] : memref<64x256xf32, #tpu.memory_space<vmem>>, vector<8x256xf32>
    %c56_259 = arith.constant 56 : index
    %c0_260 = arith.constant 0 : index
    %617 = vector.load %arg10[%c56_259, %c0_260] : memref<64x256xf32, #tpu.memory_space<vmem>>, vector<8x256xf32>
    %618 = arith.select %10, %616, %617 : vector<8x256xi1>, vector<8x256xf32>
    %619 = arith.addf %618, %615 : vector<8x256xf32>
    %620 = arith.negf %619 : vector<8x256xf32>
    %621 = math.exp %620 : vector<8x256xf32>
    %cst_261 = arith.constant 1.000000e+00 : f32
    %622 = vector.broadcast %cst_261 : f32 to vector<8x256xf32>
    %623 = arith.addf %622, %621 : vector<8x256xf32>
    %624 = arith.divf %622, %623 : vector<8x256xf32>
    %cst_262 = arith.constant 2.000000e+00 : f32
    %625 = vector.broadcast %cst_262 : f32 to vector<8x256xf32>
    %626 = arith.mulf %625, %624 : vector<8x256xf32>
    %cst_263 = arith.constant 1.000000e+00 : f32
    %627 = vector.broadcast %cst_263 : f32 to vector<8x256xf32>
    %628 = arith.subf %626, %627 : vector<8x256xf32>
    %629 = arith.select %15, %628, %624 : vector<8x256xi1>, vector<8x256xf32>
    %630 = vector.extract_strided_slice %629 {offsets = [0, 0], sizes = [8, 64], strides = [1, 1]} : vector<8x256xf32> to vector<8x64xf32>
    %631 = vector.extract_strided_slice %629 {offsets = [0, 64], sizes = [8, 64], strides = [1, 1]} : vector<8x256xf32> to vector<8x64xf32>
    %632 = vector.extract_strided_slice %629 {offsets = [0, 128], sizes = [8, 64], strides = [1, 1]} : vector<8x256xf32> to vector<8x64xf32>
    %633 = vector.extract_strided_slice %629 {offsets = [0, 192], sizes = [8, 64], strides = [1, 1]} : vector<8x256xf32> to vector<8x64xf32>
    %634 = arith.mulf %631, %613 : vector<8x64xf32>
    %635 = arith.mulf %630, %632 : vector<8x64xf32>
    %636 = arith.addf %634, %635 : vector<8x64xf32>
    %637 = math.tanh %636 : vector<8x64xf32>
    %638 = arith.mulf %633, %637 : vector<8x64xf32>
    %639 = arith.select %19, %638, %612 : vector<8x64xi1>, vector<8x64xf32>
    %640 = arith.select %19, %636, %613 : vector<8x64xi1>, vector<8x64xf32>
    %641 = arith.truncf %639 : vector<8x64xf32> to vector<8x64xbf16>
    %cst_264 = arith.constant dense<0.000000e+00> : vector<8x256xf32>
    %642 = tpu.matmul %641, %603, %cst_264 {dimension_numbers = #tpu.dot_dimension_numbers<[1], [0], [0], [1], [0, 0, 1, 1], [], []>} : vector<8x64xbf16>, vector<64x256xbf16>, vector<8x256xf32> -> vector<8x256xf32>
    %c8_265 = arith.constant 8 : index
    %c0_266 = arith.constant 0 : index
    %643 = vector.load %arg10[%c8_265, %c0_266] : memref<64x256xf32, #tpu.memory_space<vmem>>, vector<8x256xf32>
    %c48_267 = arith.constant 48 : index
    %c0_268 = arith.constant 0 : index
    %644 = vector.load %arg10[%c48_267, %c0_268] : memref<64x256xf32, #tpu.memory_space<vmem>>, vector<8x256xf32>
    %645 = arith.select %10, %643, %644 : vector<8x256xi1>, vector<8x256xf32>
    %646 = arith.addf %645, %642 : vector<8x256xf32>
    %647 = arith.negf %646 : vector<8x256xf32>
    %648 = math.exp %647 : vector<8x256xf32>
    %cst_269 = arith.constant 1.000000e+00 : f32
    %649 = vector.broadcast %cst_269 : f32 to vector<8x256xf32>
    %650 = arith.addf %649, %648 : vector<8x256xf32>
    %651 = arith.divf %649, %650 : vector<8x256xf32>
    %cst_270 = arith.constant 2.000000e+00 : f32
    %652 = vector.broadcast %cst_270 : f32 to vector<8x256xf32>
    %653 = arith.mulf %652, %651 : vector<8x256xf32>
    %cst_271 = arith.constant 1.000000e+00 : f32
    %654 = vector.broadcast %cst_271 : f32 to vector<8x256xf32>
    %655 = arith.subf %653, %654 : vector<8x256xf32>
    %656 = arith.select %15, %655, %651 : vector<8x256xi1>, vector<8x256xf32>
    %657 = vector.extract_strided_slice %656 {offsets = [0, 0], sizes = [8, 64], strides = [1, 1]} : vector<8x256xf32> to vector<8x64xf32>
    %658 = vector.extract_strided_slice %656 {offsets = [0, 64], sizes = [8, 64], strides = [1, 1]} : vector<8x256xf32> to vector<8x64xf32>
    %659 = vector.extract_strided_slice %656 {offsets = [0, 128], sizes = [8, 64], strides = [1, 1]} : vector<8x256xf32> to vector<8x64xf32>
    %660 = vector.extract_strided_slice %656 {offsets = [0, 192], sizes = [8, 64], strides = [1, 1]} : vector<8x256xf32> to vector<8x64xf32>
    %661 = arith.mulf %658, %640 : vector<8x64xf32>
    %662 = arith.mulf %657, %659 : vector<8x64xf32>
    %663 = arith.addf %661, %662 : vector<8x64xf32>
    %664 = math.tanh %663 : vector<8x64xf32>
    %665 = arith.mulf %660, %664 : vector<8x64xf32>
    %666 = arith.select %23, %665, %639 : vector<8x64xi1>, vector<8x64xf32>
    %667 = arith.select %23, %663, %640 : vector<8x64xi1>, vector<8x64xf32>
    %668 = arith.truncf %666 : vector<8x64xf32> to vector<8x64xbf16>
    %cst_272 = arith.constant dense<0.000000e+00> : vector<8x256xf32>
    %669 = tpu.matmul %668, %603, %cst_272 {dimension_numbers = #tpu.dot_dimension_numbers<[1], [0], [0], [1], [0, 0, 1, 1], [], []>} : vector<8x64xbf16>, vector<64x256xbf16>, vector<8x256xf32> -> vector<8x256xf32>
    %c16_273 = arith.constant 16 : index
    %c0_274 = arith.constant 0 : index
    %670 = vector.load %arg10[%c16_273, %c0_274] : memref<64x256xf32, #tpu.memory_space<vmem>>, vector<8x256xf32>
    %c40_275 = arith.constant 40 : index
    %c0_276 = arith.constant 0 : index
    %671 = vector.load %arg10[%c40_275, %c0_276] : memref<64x256xf32, #tpu.memory_space<vmem>>, vector<8x256xf32>
    %672 = arith.select %10, %670, %671 : vector<8x256xi1>, vector<8x256xf32>
    %673 = arith.addf %672, %669 : vector<8x256xf32>
    %674 = arith.negf %673 : vector<8x256xf32>
    %675 = math.exp %674 : vector<8x256xf32>
    %cst_277 = arith.constant 1.000000e+00 : f32
    %676 = vector.broadcast %cst_277 : f32 to vector<8x256xf32>
    %677 = arith.addf %676, %675 : vector<8x256xf32>
    %678 = arith.divf %676, %677 : vector<8x256xf32>
    %cst_278 = arith.constant 2.000000e+00 : f32
    %679 = vector.broadcast %cst_278 : f32 to vector<8x256xf32>
    %680 = arith.mulf %679, %678 : vector<8x256xf32>
    %cst_279 = arith.constant 1.000000e+00 : f32
    %681 = vector.broadcast %cst_279 : f32 to vector<8x256xf32>
    %682 = arith.subf %680, %681 : vector<8x256xf32>
    %683 = arith.select %15, %682, %678 : vector<8x256xi1>, vector<8x256xf32>
    %684 = vector.extract_strided_slice %683 {offsets = [0, 0], sizes = [8, 64], strides = [1, 1]} : vector<8x256xf32> to vector<8x64xf32>
    %685 = vector.extract_strided_slice %683 {offsets = [0, 64], sizes = [8, 64], strides = [1, 1]} : vector<8x256xf32> to vector<8x64xf32>
    %686 = vector.extract_strided_slice %683 {offsets = [0, 128], sizes = [8, 64], strides = [1, 1]} : vector<8x256xf32> to vector<8x64xf32>
    %687 = vector.extract_strided_slice %683 {offsets = [0, 192], sizes = [8, 64], strides = [1, 1]} : vector<8x256xf32> to vector<8x64xf32>
    %688 = arith.mulf %685, %667 : vector<8x64xf32>
    %689 = arith.mulf %684, %686 : vector<8x64xf32>
    %690 = arith.addf %688, %689 : vector<8x64xf32>
    %691 = math.tanh %690 : vector<8x64xf32>
    %692 = arith.mulf %687, %691 : vector<8x64xf32>
    %693 = arith.select %27, %692, %666 : vector<8x64xi1>, vector<8x64xf32>
    %694 = arith.select %27, %690, %667 : vector<8x64xi1>, vector<8x64xf32>
    %695 = arith.truncf %693 : vector<8x64xf32> to vector<8x64xbf16>
    %cst_280 = arith.constant dense<0.000000e+00> : vector<8x256xf32>
    %696 = tpu.matmul %695, %603, %cst_280 {dimension_numbers = #tpu.dot_dimension_numbers<[1], [0], [0], [1], [0, 0, 1, 1], [], []>} : vector<8x64xbf16>, vector<64x256xbf16>, vector<8x256xf32> -> vector<8x256xf32>
    %c24_281 = arith.constant 24 : index
    %c0_282 = arith.constant 0 : index
    %697 = vector.load %arg10[%c24_281, %c0_282] : memref<64x256xf32, #tpu.memory_space<vmem>>, vector<8x256xf32>
    %c32_283 = arith.constant 32 : index
    %c0_284 = arith.constant 0 : index
    %698 = vector.load %arg10[%c32_283, %c0_284] : memref<64x256xf32, #tpu.memory_space<vmem>>, vector<8x256xf32>
    %699 = arith.select %10, %697, %698 : vector<8x256xi1>, vector<8x256xf32>
    %700 = arith.addf %699, %696 : vector<8x256xf32>
    %701 = arith.negf %700 : vector<8x256xf32>
    %702 = math.exp %701 : vector<8x256xf32>
    %cst_285 = arith.constant 1.000000e+00 : f32
    %703 = vector.broadcast %cst_285 : f32 to vector<8x256xf32>
    %704 = arith.addf %703, %702 : vector<8x256xf32>
    %705 = arith.divf %703, %704 : vector<8x256xf32>
    %cst_286 = arith.constant 2.000000e+00 : f32
    %706 = vector.broadcast %cst_286 : f32 to vector<8x256xf32>
    %707 = arith.mulf %706, %705 : vector<8x256xf32>
    %cst_287 = arith.constant 1.000000e+00 : f32
    %708 = vector.broadcast %cst_287 : f32 to vector<8x256xf32>
    %709 = arith.subf %707, %708 : vector<8x256xf32>
    %710 = arith.select %15, %709, %705 : vector<8x256xi1>, vector<8x256xf32>
    %711 = vector.extract_strided_slice %710 {offsets = [0, 0], sizes = [8, 64], strides = [1, 1]} : vector<8x256xf32> to vector<8x64xf32>
    %712 = vector.extract_strided_slice %710 {offsets = [0, 64], sizes = [8, 64], strides = [1, 1]} : vector<8x256xf32> to vector<8x64xf32>
    %713 = vector.extract_strided_slice %710 {offsets = [0, 128], sizes = [8, 64], strides = [1, 1]} : vector<8x256xf32> to vector<8x64xf32>
    %714 = vector.extract_strided_slice %710 {offsets = [0, 192], sizes = [8, 64], strides = [1, 1]} : vector<8x256xf32> to vector<8x64xf32>
    %715 = arith.mulf %712, %694 : vector<8x64xf32>
    %716 = arith.mulf %711, %713 : vector<8x64xf32>
    %717 = arith.addf %715, %716 : vector<8x64xf32>
    %718 = math.tanh %717 : vector<8x64xf32>
    %719 = arith.mulf %714, %718 : vector<8x64xf32>
    %720 = arith.select %31, %719, %693 : vector<8x64xi1>, vector<8x64xf32>
    %721 = arith.select %31, %717, %694 : vector<8x64xi1>, vector<8x64xf32>
    %722 = arith.truncf %720 : vector<8x64xf32> to vector<8x64xbf16>
    %cst_288 = arith.constant dense<0.000000e+00> : vector<8x256xf32>
    %723 = tpu.matmul %722, %603, %cst_288 {dimension_numbers = #tpu.dot_dimension_numbers<[1], [0], [0], [1], [0, 0, 1, 1], [], []>} : vector<8x64xbf16>, vector<64x256xbf16>, vector<8x256xf32> -> vector<8x256xf32>
    %c32_289 = arith.constant 32 : index
    %c0_290 = arith.constant 0 : index
    %724 = vector.load %arg10[%c32_289, %c0_290] : memref<64x256xf32, #tpu.memory_space<vmem>>, vector<8x256xf32>
    %c24_291 = arith.constant 24 : index
    %c0_292 = arith.constant 0 : index
    %725 = vector.load %arg10[%c24_291, %c0_292] : memref<64x256xf32, #tpu.memory_space<vmem>>, vector<8x256xf32>
    %726 = arith.select %10, %724, %725 : vector<8x256xi1>, vector<8x256xf32>
    %727 = arith.addf %726, %723 : vector<8x256xf32>
    %728 = arith.negf %727 : vector<8x256xf32>
    %729 = math.exp %728 : vector<8x256xf32>
    %cst_293 = arith.constant 1.000000e+00 : f32
    %730 = vector.broadcast %cst_293 : f32 to vector<8x256xf32>
    %731 = arith.addf %730, %729 : vector<8x256xf32>
    %732 = arith.divf %730, %731 : vector<8x256xf32>
    %cst_294 = arith.constant 2.000000e+00 : f32
    %733 = vector.broadcast %cst_294 : f32 to vector<8x256xf32>
    %734 = arith.mulf %733, %732 : vector<8x256xf32>
    %cst_295 = arith.constant 1.000000e+00 : f32
    %735 = vector.broadcast %cst_295 : f32 to vector<8x256xf32>
    %736 = arith.subf %734, %735 : vector<8x256xf32>
    %737 = arith.select %15, %736, %732 : vector<8x256xi1>, vector<8x256xf32>
    %738 = vector.extract_strided_slice %737 {offsets = [0, 0], sizes = [8, 64], strides = [1, 1]} : vector<8x256xf32> to vector<8x64xf32>
    %739 = vector.extract_strided_slice %737 {offsets = [0, 64], sizes = [8, 64], strides = [1, 1]} : vector<8x256xf32> to vector<8x64xf32>
    %740 = vector.extract_strided_slice %737 {offsets = [0, 128], sizes = [8, 64], strides = [1, 1]} : vector<8x256xf32> to vector<8x64xf32>
    %741 = vector.extract_strided_slice %737 {offsets = [0, 192], sizes = [8, 64], strides = [1, 1]} : vector<8x256xf32> to vector<8x64xf32>
    %742 = arith.mulf %739, %721 : vector<8x64xf32>
    %743 = arith.mulf %738, %740 : vector<8x64xf32>
    %744 = arith.addf %742, %743 : vector<8x64xf32>
    %745 = math.tanh %744 : vector<8x64xf32>
    %746 = arith.mulf %741, %745 : vector<8x64xf32>
    %747 = arith.select %35, %746, %720 : vector<8x64xi1>, vector<8x64xf32>
    %748 = arith.select %35, %744, %721 : vector<8x64xi1>, vector<8x64xf32>
    %749 = arith.truncf %747 : vector<8x64xf32> to vector<8x64xbf16>
    %cst_296 = arith.constant dense<0.000000e+00> : vector<8x256xf32>
    %750 = tpu.matmul %749, %603, %cst_296 {dimension_numbers = #tpu.dot_dimension_numbers<[1], [0], [0], [1], [0, 0, 1, 1], [], []>} : vector<8x64xbf16>, vector<64x256xbf16>, vector<8x256xf32> -> vector<8x256xf32>
    %c40_297 = arith.constant 40 : index
    %c0_298 = arith.constant 0 : index
    %751 = vector.load %arg10[%c40_297, %c0_298] : memref<64x256xf32, #tpu.memory_space<vmem>>, vector<8x256xf32>
    %c16_299 = arith.constant 16 : index
    %c0_300 = arith.constant 0 : index
    %752 = vector.load %arg10[%c16_299, %c0_300] : memref<64x256xf32, #tpu.memory_space<vmem>>, vector<8x256xf32>
    %753 = arith.select %10, %751, %752 : vector<8x256xi1>, vector<8x256xf32>
    %754 = arith.addf %753, %750 : vector<8x256xf32>
    %755 = arith.negf %754 : vector<8x256xf32>
    %756 = math.exp %755 : vector<8x256xf32>
    %cst_301 = arith.constant 1.000000e+00 : f32
    %757 = vector.broadcast %cst_301 : f32 to vector<8x256xf32>
    %758 = arith.addf %757, %756 : vector<8x256xf32>
    %759 = arith.divf %757, %758 : vector<8x256xf32>
    %cst_302 = arith.constant 2.000000e+00 : f32
    %760 = vector.broadcast %cst_302 : f32 to vector<8x256xf32>
    %761 = arith.mulf %760, %759 : vector<8x256xf32>
    %cst_303 = arith.constant 1.000000e+00 : f32
    %762 = vector.broadcast %cst_303 : f32 to vector<8x256xf32>
    %763 = arith.subf %761, %762 : vector<8x256xf32>
    %764 = arith.select %15, %763, %759 : vector<8x256xi1>, vector<8x256xf32>
    %765 = vector.extract_strided_slice %764 {offsets = [0, 0], sizes = [8, 64], strides = [1, 1]} : vector<8x256xf32> to vector<8x64xf32>
    %766 = vector.extract_strided_slice %764 {offsets = [0, 64], sizes = [8, 64], strides = [1, 1]} : vector<8x256xf32> to vector<8x64xf32>
    %767 = vector.extract_strided_slice %764 {offsets = [0, 128], sizes = [8, 64], strides = [1, 1]} : vector<8x256xf32> to vector<8x64xf32>
    %768 = vector.extract_strided_slice %764 {offsets = [0, 192], sizes = [8, 64], strides = [1, 1]} : vector<8x256xf32> to vector<8x64xf32>
    %769 = arith.mulf %766, %748 : vector<8x64xf32>
    %770 = arith.mulf %765, %767 : vector<8x64xf32>
    %771 = arith.addf %769, %770 : vector<8x64xf32>
    %772 = math.tanh %771 : vector<8x64xf32>
    %773 = arith.mulf %768, %772 : vector<8x64xf32>
    %774 = arith.select %39, %773, %747 : vector<8x64xi1>, vector<8x64xf32>
    %775 = arith.select %39, %771, %748 : vector<8x64xi1>, vector<8x64xf32>
    %776 = arith.truncf %774 : vector<8x64xf32> to vector<8x64xbf16>
    %cst_304 = arith.constant dense<0.000000e+00> : vector<8x256xf32>
    %777 = tpu.matmul %776, %603, %cst_304 {dimension_numbers = #tpu.dot_dimension_numbers<[1], [0], [0], [1], [0, 0, 1, 1], [], []>} : vector<8x64xbf16>, vector<64x256xbf16>, vector<8x256xf32> -> vector<8x256xf32>
    %c48_305 = arith.constant 48 : index
    %c0_306 = arith.constant 0 : index
    %778 = vector.load %arg10[%c48_305, %c0_306] : memref<64x256xf32, #tpu.memory_space<vmem>>, vector<8x256xf32>
    %c8_307 = arith.constant 8 : index
    %c0_308 = arith.constant 0 : index
    %779 = vector.load %arg10[%c8_307, %c0_308] : memref<64x256xf32, #tpu.memory_space<vmem>>, vector<8x256xf32>
    %780 = arith.select %10, %778, %779 : vector<8x256xi1>, vector<8x256xf32>
    %781 = arith.addf %780, %777 : vector<8x256xf32>
    %782 = arith.negf %781 : vector<8x256xf32>
    %783 = math.exp %782 : vector<8x256xf32>
    %cst_309 = arith.constant 1.000000e+00 : f32
    %784 = vector.broadcast %cst_309 : f32 to vector<8x256xf32>
    %785 = arith.addf %784, %783 : vector<8x256xf32>
    %786 = arith.divf %784, %785 : vector<8x256xf32>
    %cst_310 = arith.constant 2.000000e+00 : f32
    %787 = vector.broadcast %cst_310 : f32 to vector<8x256xf32>
    %788 = arith.mulf %787, %786 : vector<8x256xf32>
    %cst_311 = arith.constant 1.000000e+00 : f32
    %789 = vector.broadcast %cst_311 : f32 to vector<8x256xf32>
    %790 = arith.subf %788, %789 : vector<8x256xf32>
    %791 = arith.select %15, %790, %786 : vector<8x256xi1>, vector<8x256xf32>
    %792 = vector.extract_strided_slice %791 {offsets = [0, 0], sizes = [8, 64], strides = [1, 1]} : vector<8x256xf32> to vector<8x64xf32>
    %793 = vector.extract_strided_slice %791 {offsets = [0, 64], sizes = [8, 64], strides = [1, 1]} : vector<8x256xf32> to vector<8x64xf32>
    %794 = vector.extract_strided_slice %791 {offsets = [0, 128], sizes = [8, 64], strides = [1, 1]} : vector<8x256xf32> to vector<8x64xf32>
    %795 = vector.extract_strided_slice %791 {offsets = [0, 192], sizes = [8, 64], strides = [1, 1]} : vector<8x256xf32> to vector<8x64xf32>
    %796 = arith.mulf %793, %775 : vector<8x64xf32>
    %797 = arith.mulf %792, %794 : vector<8x64xf32>
    %798 = arith.addf %796, %797 : vector<8x64xf32>
    %799 = math.tanh %798 : vector<8x64xf32>
    %800 = arith.mulf %795, %799 : vector<8x64xf32>
    %801 = arith.select %43, %800, %774 : vector<8x64xi1>, vector<8x64xf32>
    %802 = arith.select %43, %798, %775 : vector<8x64xi1>, vector<8x64xf32>
    %803 = arith.truncf %801 : vector<8x64xf32> to vector<8x64xbf16>
    %cst_312 = arith.constant dense<0.000000e+00> : vector<8x256xf32>
    %804 = tpu.matmul %803, %603, %cst_312 {dimension_numbers = #tpu.dot_dimension_numbers<[1], [0], [0], [1], [0, 0, 1, 1], [], []>} : vector<8x64xbf16>, vector<64x256xbf16>, vector<8x256xf32> -> vector<8x256xf32>
    %c56_313 = arith.constant 56 : index
    %c0_314 = arith.constant 0 : index
    %805 = vector.load %arg10[%c56_313, %c0_314] : memref<64x256xf32, #tpu.memory_space<vmem>>, vector<8x256xf32>
    %c0_315 = arith.constant 0 : index
    %c0_316 = arith.constant 0 : index
    %806 = vector.load %arg10[%c0_315, %c0_316] : memref<64x256xf32, #tpu.memory_space<vmem>>, vector<8x256xf32>
    %807 = arith.select %10, %805, %806 : vector<8x256xi1>, vector<8x256xf32>
    %808 = arith.addf %807, %804 : vector<8x256xf32>
    %809 = arith.negf %808 : vector<8x256xf32>
    %810 = math.exp %809 : vector<8x256xf32>
    %cst_317 = arith.constant 1.000000e+00 : f32
    %811 = vector.broadcast %cst_317 : f32 to vector<8x256xf32>
    %812 = arith.addf %811, %810 : vector<8x256xf32>
    %813 = arith.divf %811, %812 : vector<8x256xf32>
    %cst_318 = arith.constant 2.000000e+00 : f32
    %814 = vector.broadcast %cst_318 : f32 to vector<8x256xf32>
    %815 = arith.mulf %814, %813 : vector<8x256xf32>
    %cst_319 = arith.constant 1.000000e+00 : f32
    %816 = vector.broadcast %cst_319 : f32 to vector<8x256xf32>
    %817 = arith.subf %815, %816 : vector<8x256xf32>
    %818 = arith.select %15, %817, %813 : vector<8x256xi1>, vector<8x256xf32>
    %819 = vector.extract_strided_slice %818 {offsets = [0, 0], sizes = [8, 64], strides = [1, 1]} : vector<8x256xf32> to vector<8x64xf32>
    %820 = vector.extract_strided_slice %818 {offsets = [0, 64], sizes = [8, 64], strides = [1, 1]} : vector<8x256xf32> to vector<8x64xf32>
    %821 = vector.extract_strided_slice %818 {offsets = [0, 128], sizes = [8, 64], strides = [1, 1]} : vector<8x256xf32> to vector<8x64xf32>
    %822 = vector.extract_strided_slice %818 {offsets = [0, 192], sizes = [8, 64], strides = [1, 1]} : vector<8x256xf32> to vector<8x64xf32>
    %823 = arith.mulf %820, %802 : vector<8x64xf32>
    %824 = arith.mulf %819, %821 : vector<8x64xf32>
    %825 = arith.addf %823, %824 : vector<8x64xf32>
    %826 = math.tanh %825 : vector<8x64xf32>
    %827 = arith.mulf %822, %826 : vector<8x64xf32>
    %828 = arith.select %47, %827, %801 : vector<8x64xi1>, vector<8x64xf32>
    %829 = arith.truncf %828 : vector<8x64xf32> to vector<8x64xbf16>
    %c0_320 = arith.constant 0 : index
    %c0_321 = arith.constant 0 : index
    %830 = vector.load %arg5[%c0_320, %c0_321] : memref<64x128xbf16, #tpu.memory_space<vmem>>, vector<64x128xbf16>
    %cst_322 = arith.constant dense<0.000000e+00> : vector<8x128xf32>
    %831 = tpu.matmul %829, %830, %cst_322 {dimension_numbers = #tpu.dot_dimension_numbers<[1], [0], [0], [1], [0, 0, 1, 1], [], []>} : vector<8x64xbf16>, vector<64x128xbf16>, vector<8x128xf32> -> vector<8x128xf32>
    %c0_323 = arith.constant 0 : index
    %c0_324 = arith.constant 0 : index
    %832 = vector.load %arg6[%c0_323, %c0_324] : memref<1x128xf32, #tpu.memory_space<vmem>>, vector<1x128xf32>
    %833 = vector.broadcast %832 : vector<1x128xf32> to vector<8x128xf32>
    %834 = arith.addf %831, %833 : vector<8x128xf32>
    %c0_325 = arith.constant 0 : index
    %c0_326 = arith.constant 0 : index
    %835 = vector.load %arg7[%c0_325, %c0_326] : memref<8x128xf32, #tpu.memory_space<vmem>>, vector<8x128xf32>
    tpu.vector_store %arg7[%c0_325, %c0_326], %834 {strides = array<i32>} : memref<8x128xf32, #tpu.memory_space<vmem>>, vector<8x128xf32>,
    return
  }
}

</mosaic_0001>

<llo_original>
// kernel: lstm_forward.1
$region0: #{lstm_forward.1}
  #allocation0 [shape = 'u32[]', space=smem, size = 0x4, offset = 0x4, fixed_abs, tag = 'smem constant byte address 0x4 - core index']
  #allocation1 [shape = 'u32[72,128]{1,0:T(1,128)}', space=vmem, size = 0x9000, scoped, tag = 'internal scratch']
  #allocation2 [shape = 'f32[64,64]{1,0:T(8,128)}', space=vmem, size = 0x8000, scoped, tag = 'scratch operand']
  #allocation3 [shape = 'f32[64,64]{1,0:T(8,128)}', space=vmem, size = 0x8000, scoped, tag = 'scratch operand']
  #allocation4 [shape = 'f32[64,256]{1,0:T(8,128)}', space=vmem, size = 0x10000, scoped, tag = 'scratch operand']
  %s0 = inlined_call_operand.vmem [shape: f32[64,64], index: 0, kind: input, shape index: {}]
  %s1 = inlined_call_operand.vmem [shape: s32[8,1], index: 1, kind: input, shape index: {}]
  %s2 = inlined_call_operand.vmem [shape: bf16[3,64,256], index: 2, kind: input, shape index: {}]
  %s3 = inlined_call_operand.hbm [shape: bf16[3,64,256], index: 3, kind: input, shape index: {}]
  %s4 = inlined_call_operand.vmem [shape: f32[3,1,256], index: 4, kind: input, shape index: {}]
  %s5 = inlined_call_operand.vmem [shape: bf16[64,128], index: 5, kind: input, shape index: {}]
  %s6 = inlined_call_operand.vmem [shape: f32[1,128], index: 6, kind: input, shape index: {}]
  %s7 = inlined_call_operand.vmem [shape: f32[8,128], index: 7, kind: output, shape index: {}]
  %s8 = sld [smem:[#allocation0]]
  $region42: #{lstm_forward.1} parent=0
    _
  %s10 = ssub.s32 1, %s8
  %s11 = scalar_select 0, %s10, %s8
  $region1: #{lstm_forward.1} parent=0
    #allocation5 [shape = 'u8[98304]{0}', space=vmem, size = 0x18000, scoped, tag = 'input window, operand 3, single buffered']
    #allocation6 [shape = 's32[1]{0}', space=sflag, size = 0x4, scoped, tag = 'scoped memory for lstm_forward.1']
    %12 = vsyncpa [#allocation6], 0
    // Predicated region
    $region2: #{lstm_forward.1} parent=1 // pred_check
      _
    $region3: #{lstm_forward.1} parent=1 // pred_check_branch
      %14 = sbr.rel (0) target = $region5
    $region4: #{lstm_forward.1} parent=1 // pred_region
      _
    $region5: #{lstm_forward.1} parent=1 // pred_fallthru
      _
    // Predicated region
    $region6: #{lstm_forward.1} parent=1 // pred_check
      _
    $region7: #{lstm_forward.1} parent=1 // pred_check_branch
      %16 = sbr.rel (0) target = $region9
    $region8: #{lstm_forward.1} parent=1 // pred_region
      _
    $region9: #{lstm_forward.1} parent=1 // pred_fallthru
      _
    // Predicated region
    $region10: #{lstm_forward.1} parent=1 // pred_check
      _
    $region11: #{lstm_forward.1} parent=1 // pred_check_branch
      %18 = sbr.rel (0) target = $region13
    $region12: #{lstm_forward.1} parent=1 // pred_region
      _
    $region13: #{lstm_forward.1} parent=1 // pred_fallthru
      _
    // Predicated region
    $region14: #{lstm_forward.1} parent=1 // pred_check
      _
    $region15: #{lstm_forward.1} parent=1 // pred_check_branch
      %20 = sbr.rel (0) target = $region17
    $region16: #{lstm_forward.1} parent=1 // pred_region
      %22 = vsyncadd [#allocation6], 0
      %s23 = sshll.u32 %s3, 4
      %s24 = int_to_ptr.hbm [resolvable:$true] %s23
      %s25 = sshll.u32 [#allocation5], 4
      %s26 = int_to_ptr.vmem [resolvable:$true] %s25
      %31 = dma.hbm_to_vmem [thread:$0]  %s24, 3072, %s26, [#allocation6], 128, 128, 8
    $region17: #{lstm_forward.1} parent=1 // pred_fallthru
      _
    // Predicated region
    $region18: #{lstm_forward.1} parent=1 // pred_check
      _
    $region19: #{lstm_forward.1} parent=1 // pred_check_branch
      %33 = sbr.rel (0) target = $region21
    $region20: #{lstm_forward.1} parent=1 // pred_region
      _
    $region21: #{lstm_forward.1} parent=1 // pred_fallthru
      _
    // Predicated region
    $region22: #{lstm_forward.1} parent=1 // pred_check
      _
    $region23: #{lstm_forward.1} parent=1 // pred_check_branch
      %35 = sbr.rel (0) target = $region25
    $region24: #{lstm_forward.1} parent=1 // pred_region
      _
    $region25: #{lstm_forward.1} parent=1 // pred_fallthru
      _
    // Predicated region
    $region26: #{lstm_forward.1} parent=1 // pred_check
      _
    $region27: #{lstm_forward.1} parent=1 // pred_check_branch
      %37 = sbr.rel (0) target = $region29
    $region28: #{lstm_forward.1} parent=1 // pred_region
      _
    $region29: #{lstm_forward.1} parent=1 // pred_fallthru
      _
    // Predicated region
    $region30: #{lstm_forward.1} parent=1 // pred_check
      _
    $region31: #{lstm_forward.1} parent=1 // pred_check_branch
      %39 = sbr.rel (0) target = $region33
    $region32: #{lstm_forward.1} parent=1 // pred_region
      %41 = dma.done [#allocation6], 3072
    $region33: #{lstm_forward.1} parent=1 // pred_fallthru
      _
    %v43 = vld [vmem:[%s1] sm:$0xff]
    %v44 = vlaneseq
    %v45 = vand.u32 %v44, 127
    %vm46 = vcmp.lt.s32.totalorder %v45, 32
    %47 = vset.pattern.permute.xlu0 0
    %48 = vperm.xlu0 %47, %v43
    %v49 = vpop.permute.xlu0 %48
    %v50 = vadd.s32 %v45, 128
    %v51 = vand.u32 %v45, 63
    %v52 = vand.u32 %v50, 63
    %vm53 = vcmp.lt.s32.totalorder %v51, 32
    %vm54 = vcmp.lt.s32.totalorder %v52, 32
    %vm55 = vcmp.ge.s32.totalorder %v45, 128
    %vm56 = vcmp.ge.s32.totalorder %v50, 128
    %vm57 = vcmp.lt.s32.totalorder %v45, 192
    %vm58 = vcmp.lt.s32.totalorder %v50, 192
    %vm59 = vmand %vm55, %vm57
    %vm60 = vmand %vm56, %vm58
    %v61 = vsel %vm46, 0, 7
    %vm62 = vcmp.gt.s32.totalorder %v49, %v61
    %v63 = vsel %vm46, 1, 6
    %vm64 = vcmp.gt.s32.totalorder %v49, %v63
    %v65 = vsel %vm46, 2, 5
    %vm66 = vcmp.gt.s32.totalorder %v49, %v65
    %v67 = vsel %vm46, 3, 4
    %vm68 = vcmp.gt.s32.totalorder %v49, %v67
    %v69 = vsel %vm46, 4, 3
    %vm70 = vcmp.gt.s32.totalorder %v49, %v69
    %v71 = vsel %vm46, 5, 2
    %vm72 = vcmp.gt.s32.totalorder %v49, %v71
    %v73 = vsel %vm46, 6, 1
    %vm74 = vcmp.gt.s32.totalorder %v49, %v73
    %v75 = vsel %vm46, 7, 0
    %vm76 = vcmp.gt.s32.totalorder %v49, %v75
    %v77 = vld [vmem:[%s2] sm:$0xff]
    %v78 = vld [vmem:[%s2 + $0x8] sm:$0xff]
    %v79 = vld [vmem:[%s2 + $0x10] sm:$0xff]
    %v80 = vld [vmem:[%s2 + $0x18] sm:$0xff]
    %v81 = vld [vmem:[%s2 + $0x20] sm:$0xff]
    %v82 = vld [vmem:[%s2 + $0x28] sm:$0xff]
    %v83 = vld [vmem:[%s2 + $0x30] sm:$0xff]
    %v84 = vld [vmem:[%s2 + $0x38] sm:$0xff]
    %v85 = vld [vmem:[#allocation5] sm:$0xff]
    %v86 = vld [vmem:[#allocation5 + $0x8] sm:$0xff]
    %v87 = vld [vmem:[#allocation5 + $0x10] sm:$0xff]
    %v88 = vld [vmem:[#allocation5 + $0x18] sm:$0xff]
    %v89 = vld [vmem:[#allocation5 + $0x20] sm:$0xff]
    %v90 = vld [vmem:[#allocation5 + $0x28] sm:$0xff]
    %v91 = vld [vmem:[#allocation5 + $0x30] sm:$0xff]
    %v92 = vld [vmem:[#allocation5 + $0x38] sm:$0xff]
    %v93 = vld [vmem:[%s4] sm:$0x3]
    %v94 = vld [vmem:[%s0] sm:$0xff]
    %v95 = vld [vmem:[%s0 + $0x8] sm:$0xff]
    %v96 = vld [vmem:[%s0 + $0x10] sm:$0xff]
    %v97 = vld [vmem:[%s0 + $0x18] sm:$0xff]
    %v98 = vld [vmem:[%s0 + $0x20] sm:$0xff]
    %v99 = vld [vmem:[%s0 + $0x28] sm:$0xff]
    %v100 = vld [vmem:[%s0 + $0x30] sm:$0xff]
    %v101 = vld [vmem:[%s0 + $0x38] sm:$0xff]
    %v102 = vpack.c.bf16 %v95, %v94
    %v103 = vpack.c.bf16 %v97, %v96
    %v104 = vpack.c.bf16 %v99, %v98
    %v105 = vpack.c.bf16 %v101, %v100
    %v107 = vperm.slane %v93, 0
    %v108 = vperm.slane %v93, 1
    %v119 = vunpack.c.l.b16 %v77
    %v120 = vunpack.c.h.b16 %v77
    %v121 = vunpack.c.l.b16 %v78
    %v122 = vunpack.c.h.b16 %v78
    %v123 = vunpack.c.l.b16 %v79
    %v124 = vunpack.c.h.b16 %v79
    %v125 = vunpack.c.l.b16 %v80
    %v126 = vunpack.c.h.b16 %v80
    %v127 = vunpack.c.l.b16 %v81
    %v128 = vunpack.c.h.b16 %v81
    %v129 = vunpack.c.l.b16 %v82
    %v130 = vunpack.c.h.b16 %v82
    %v131 = vunpack.c.l.b16 %v83
    %v132 = vunpack.c.h.b16 %v83
    %v133 = vunpack.c.l.b16 %v84
    %v134 = vunpack.c.h.b16 %v84
    %v135 = vpack.c.b16 %v121, %v119
    %v136 = vpack.c.b16 %v122, %v120
    %v137 = vpack.c.b16 %v125, %v123
    %v138 = vpack.c.b16 %v126, %v124
    %v139 = vpack.c.b16 %v129, %v127
    %v140 = vpack.c.b16 %v130, %v128
    %v141 = vpack.c.b16 %v133, %v131
    %v142 = vpack.c.b16 %v134, %v132
    %vm151 = vcmask 523264
    %v153 = vsel %vm151, %v102, 0
    %v156 = vsel %vm151, %v103, 0
    %v159 = vsel %vm151, %v104, 0
    %v162 = vsel %vm151, %v105, 0
    %164 = vmatpush.bf16.msra.mxu0 0
    %165 = vmatpush.bf16.msra.mxu0 0
    %166 = vmatpush.bf16.msra.mxu0 0
    %167 = vmatpush.bf16.msra.mxu0 0
    %168 = vmatpush.bf16.msra.mxu0 %v141
    %169 = vmatpush.bf16.msra.mxu0 %v139
    %170 = vmatpush.bf16.msra.mxu0 %v137
    %171 = vmatpush.bf16.msra.mxu0 %v135
    %172 = vmatmul.bf16.gmra.mxu0 %v153
    %v173 = vpop.f32.mrf.mxu0
    %v174 = vadd.f32 %v107, %v173
    %v175 = vpop.f32.mrf.mxu0
    %v176 = vadd.f32 %v107, %v175
    %177 = vmatmul.bf16.gmra.mxu0 %v156
    %v178 = vpop.f32.mrf.mxu0
    %v179 = vadd.f32 %v107, %v178
    %v180 = vpop.f32.mrf.mxu0
    %v181 = vadd.f32 %v107, %v180
    %182 = vmatmul.bf16.gmra.mxu0 %v159
    %v183 = vpop.f32.mrf.mxu0
    %v184 = vadd.f32 %v107, %v183
    %v185 = vpop.f32.mrf.mxu0
    %v186 = vadd.f32 %v107, %v185
    %187 = vmatmul.bf16.gmra.mxu0 %v162
    %v188 = vpop.f32.mrf.mxu0
    %v189 = vadd.f32 %v107, %v188
    %v190 = vpop.f32.mrf.mxu0
    %v191 = vadd.f32 %v107, %v190
    %192 = vdwg.mxu0
    %193 = vmatpush.bf16.msra.mxu0 0
    %194 = vmatpush.bf16.msra.mxu0 0
    %195 = vmatpush.bf16.msra.mxu0 0
    %196 = vmatpush.bf16.msra.mxu0 0
    %197 = vmatpush.bf16.msra.mxu0 %v142
    %198 = vmatpush.bf16.msra.mxu0 %v140
    %199 = vmatpush.bf16.msra.mxu0 %v138
    %200 = vmatpush.bf16.msra.mxu0 %v136
    %201 = vmatmul.bf16.gmra.mxu0 %v153
    %v202 = vpop.f32.mrf.mxu0
    %v203 = vadd.f32 %v108, %v202
    %v204 = vpop.f32.mrf.mxu0
    %v205 = vadd.f32 %v108, %v204
    %206 = vmatmul.bf16.gmra.mxu0 %v156
    %v207 = vpop.f32.mrf.mxu0
    %v208 = vadd.f32 %v108, %v207
    %v209 = vpop.f32.mrf.mxu0
    %v210 = vadd.f32 %v108, %v209
    %211 = vmatmul.bf16.gmra.mxu0 %v159
    %v212 = vpop.f32.mrf.mxu0
    %v213 = vadd.f32 %v108, %v212
    %v214 = vpop.f32.mrf.mxu0
    %v215 = vadd.f32 %v108, %v214
    %216 = vmatmul.bf16.gmra.mxu0 %v162
    %v217 = vpop.f32.mrf.mxu0
    %v218 = vadd.f32 %v108, %v217
    %v219 = vpop.f32.mrf.mxu0
    %v220 = vadd.f32 %v108, %v219
    %221 = vdwg.mxu0
    %222 = vst [vmem:[#allocation4] sm:$0xff] %v174
    %223 = vst [vmem:[#allocation4 + $0x8] sm:$0xff] %v203
    %224 = vst [vmem:[#allocation4 + $0x10] sm:$0xff] %v176
    %225 = vst [vmem:[#allocation4 + $0x18] sm:$0xff] %v205
    %226 = vst [vmem:[#allocation4 + $0x20] sm:$0xff] %v179
    %227 = vst [vmem:[#allocation4 + $0x28] sm:$0xff] %v208
    %228 = vst [vmem:[#allocation4 + $0x30] sm:$0xff] %v181
    %229 = vst [vmem:[#allocation4 + $0x38] sm:$0xff] %v210
    %230 = vst [vmem:[#allocation4 + $0x40] sm:$0xff] %v184
    %231 = vst [vmem:[#allocation4 + $0x48] sm:$0xff] %v213
    %232 = vst [vmem:[#allocation4 + $0x50] sm:$0xff] %v186
    %233 = vst [vmem:[#allocation4 + $0x58] sm:$0xff] %v215
    %234 = vst [vmem:[#allocation4 + $0x60] sm:$0xff] %v189
    %235 = vst [vmem:[#allocation4 + $0x68] sm:$0xff] %v218
    %236 = vst [vmem:[#allocation4 + $0x70] sm:$0xff] %v191
    %237 = vst [vmem:[#allocation4 + $0x78] sm:$0xff] %v220
    %v246 = vunpack.c.l.b16 %v85
    %v247 = vunpack.c.h.b16 %v85
    %v248 = vunpack.c.l.b16 %v86
    %v249 = vunpack.c.h.b16 %v86
    %v250 = vunpack.c.l.b16 %v87
    %v251 = vunpack.c.h.b16 %v87
    %v252 = vunpack.c.l.b16 %v88
    %v253 = vunpack.c.h.b16 %v88
    %v254 = vunpack.c.l.b16 %v89
    %v255 = vunpack.c.h.b16 %v89
    %v256 = vunpack.c.l.b16 %v90
    %v257 = vunpack.c.h.b16 %v90
    %v258 = vunpack.c.l.b16 %v91
    %v259 = vunpack.c.h.b16 %v91
    %v260 = vunpack.c.l.b16 %v92
    %v261 = vunpack.c.h.b16 %v92
    %v262 = vpack.c.b16 %v248, %v246
    %v263 = vpack.c.b16 %v249, %v247
    %v264 = vpack.c.b16 %v252, %v250
    %v265 = vpack.c.b16 %v253, %v251
    %v266 = vpack.c.b16 %v256, %v254
    %v267 = vpack.c.b16 %v257, %v255
    %v268 = vpack.c.b16 %v260, %v258
    %v269 = vpack.c.b16 %v261, %v259
    %v279 = vsel %vm151, 0, 0
    %281 = vmatpush.bf16.msra.mxu0 0
    %282 = vmatpush.bf16.msra.mxu0 0
    %283 = vmatpush.bf16.msra.mxu0 0
    %284 = vmatpush.bf16.msra.mxu0 0
    %285 = vmatpush.bf16.msra.mxu0 %v268
    %286 = vmatpush.bf16.msra.mxu0 %v266
    %287 = vmatpush.bf16.msra.mxu0 %v264
    %288 = vmatpush.bf16.msra.mxu0 %v262
    %289 = vmatmul.bf16.gmra.mxu0 %v279
    %v290 = vpop.f32.mrf.mxu0
    %v291 = vadd.f32 0.0, %v290
    %v292 = vpop.f32.mrf.mxu0
    %293 = vdwg.mxu0
    %294 = vmatpush.bf16.msra.mxu0 0
    %295 = vmatpush.bf16.msra.mxu0 0
    %296 = vmatpush.bf16.msra.mxu0 0
    %297 = vmatpush.bf16.msra.mxu0 0
    %298 = vmatpush.bf16.msra.mxu0 %v269
    %299 = vmatpush.bf16.msra.mxu0 %v267
    %300 = vmatpush.bf16.msra.mxu0 %v265
    %301 = vmatpush.bf16.msra.mxu0 %v263
    %302 = vmatmul.bf16.gmra.mxu0 %v279
    %v303 = vpop.f32.mrf.mxu0
    %v304 = vadd.f32 0.0, %v303
    %v305 = vpop.f32.mrf.mxu0
    %306 = vdwg.mxu0
    %v307 = vld [vmem:[#allocation4] sm:$0xff]
    %v308 = vld [vmem:[#allocation4 + $0x8] sm:$0xff]
    %v309 = vld [vmem:[#allocation4 + $0x70] sm:$0xff]
    %v310 = vld [vmem:[#allocation4 + $0x78] sm:$0xff]
    %v311 = vsel %vm53, %v307, %v309
    %v312 = vsel %vm54, %v308, %v310
    %v313 = vadd.f32 %v311, %v291
    %v314 = vadd.f32 %v312, %v304
    %v315 = vxor.u32 %v313, 2147483648
    %v316 = vxor.u32 %v314, 2147483648
    %v317 = vmul.f32 %v315, 1.442695
    %v318 = vpow.pop %v317
    %v319 = vmul.f32 %v316, 1.442695
    %v320 = vpow.pop %v319
    %v321 = vadd.f32 %v318, 1.0
    %v322 = vadd.f32 %v320, 1.0
    %v323 = vrcp.pop %v321
    %v324 = vmul.f32 %v321, %v323
    %v325 = vsub.f32 1.0, %v324
    %v326 = vmul.f32 %v323, %v325
    %v327 = vadd.f32 %v323, %v326
    %vm328 = vweird.f32 %v321
    %vm329 = vweird.f32 %v323
    %vm330 = vmor %vm328, %vm329
    %v331 = vsel %vm330, %v323, %v327
    %v332 = vand.u32 2147483647, %v321
    %vm333 = vcmp.eq.f32.partialorder %v332, 8.507059e+37
    %v334 = vand.u32 %v321, 2147483648
    %v335 = vor.u32 1.1754944e-38, %v334
    %v336 = vsel %vm333, %v335, %v331
    %v337 = vmul.f32 1.0, %v336
    %v338 = vrcp.pop %v322
    %v339 = vmul.f32 %v322, %v338
    %v340 = vsub.f32 1.0, %v339
    %v341 = vmul.f32 %v338, %v340
    %v342 = vadd.f32 %v338, %v341
    %vm343 = vweird.f32 %v322
    %vm344 = vweird.f32 %v338
    %vm345 = vmor %vm343, %vm344
    %v346 = vsel %vm345, %v338, %v342
    %v347 = vand.u32 2147483647, %v322
    %vm348 = vcmp.eq.f32.partialorder %v347, 8.507059e+37
    %v349 = vand.u32 %v322, 2147483648
    %v350 = vor.u32 1.1754944e-38, %v349
    %v351 = vsel %vm348, %v350, %v346
    %v352 = vmul.f32 1.0, %v351
    %v353 = vmul.f32 %v337, 2.0
    %v354 = vmul.f32 %v352, 2.0
    %v355 = vsub.f32 %v353, 1.0
    %v356 = vsub.f32 %v354, 1.0
    %v357 = vsel %vm59, %v355, %v337
    %v358 = vsel %vm60, %v356, %v352
    %v359 = vmul.f32 %v357, 0.0
    %v360 = vmul.f32 %v357, %v358
    %362 = vrot.lane.b32.xlu0 %v360, 64
    %v363 = vpop.permute.xlu0 %362
    %v365 = vadd.f32 %v359, %v363
    %v366 = vtanh.pop %v365
    %v367 = vmul.f32 %v358, %v366
    %369 = vrot.lane.b32.xlu0 %v367, 64
    %v370 = vpop.permute.xlu0 %369
    %v372 = vsel %vm62, %v370, 0.0
    %374 = vrot.lane.b32.xlu0 %v365, 64
    %v375 = vpop.permute.xlu0 %374
    %v377 = vsel %vm62, %v375, 0.0
    %vm378 = vcmask 261120
    %379 = vst.msk [vmem:[#allocation2] sm:$0xff] %vm378, %v372
    %vm380 = vcmask 523520
    %381 = vst.msk [vmem:[#allocation2 + $0x38] sm:$0xff] %vm380, %v372
    %v382 = vpack.c.bf16 %v372, %v372
    %v384 = vsel %vm151, %v382, 0
    %386 = vmatpush.bf16.msra.mxu0 0
    %387 = vmatpush.bf16.msra.mxu0 0
    %388 = vmatpush.bf16.msra.mxu0 0
    %389 = vmatpush.bf16.msra.mxu0 0
    %390 = vmatpush.bf16.msra.mxu0 %v268
    %391 = vmatpush.bf16.msra.mxu0 %v266
    %392 = vmatpush.bf16.msra.mxu0 %v264
    %393 = vmatpush.bf16.msra.mxu0 %v262
    %394 = vmatmul.bf16.gmra.mxu0 %v384
    %v395 = vpop.f32.mrf.mxu0
    %v396 = vadd.f32 0.0, %v395
    %v397 = vpop.f32.mrf.mxu0
    %398 = vdwg.mxu0
    %399 = vmatpush.bf16.msra.mxu0 0
    %400 = vmatpush.bf16.msra.mxu0 0
    %401 = vmatpush.bf16.msra.mxu0 0
    %402 = vmatpush.bf16.msra.mxu0 0
    %403 = vmatpush.bf16.msra.mxu0 %v269
    %404 = vmatpush.bf16.msra.mxu0 %v267
    %405 = vmatpush.bf16.msra.mxu0 %v265
    %406 = vmatpush.bf16.msra.mxu0 %v263
    %407 = vmatmul.bf16.gmra.mxu0 %v384
    %v408 = vpop.f32.mrf.mxu0
    %v409 = vadd.f32 0.0, %v408
    %v410 = vpop.f32.mrf.mxu0
    %411 = vdwg.mxu0
    %v412 = vld [vmem:[#allocation4 + $0x10] sm:$0xff]
    %v413 = vld [vmem:[#allocation4 + $0x18] sm:$0xff]
    %v414 = vld [vmem:[#allocation4 + $0x60] sm:$0xff]
    %v415 = vld [vmem:[#allocation4 + $0x68] sm:$0xff]
    %v416 = vsel %vm53, %v412, %v414
    %v417 = vsel %vm54, %v413, %v415
    %v418 = vadd.f32 %v416, %v396
    %v419 = vadd.f32 %v417, %v409
    %v420 = vxor.u32 %v418, 2147483648
    %v421 = vxor.u32 %v419, 2147483648
    %v422 = vmul.f32 %v420, 1.442695
    %v423 = vpow.pop %v422
    %v424 = vmul.f32 %v421, 1.442695
    %v425 = vpow.pop %v424
    %v426 = vadd.f32 %v423, 1.0
    %v427 = vadd.f32 %v425, 1.0
    %v428 = vrcp.pop %v426
    %v429 = vmul.f32 %v426, %v428
    %v430 = vsub.f32 1.0, %v429
    %v431 = vmul.f32 %v428, %v430
    %v432 = vadd.f32 %v428, %v431
    %vm433 = vweird.f32 %v426
    %vm434 = vweird.f32 %v428
    %vm435 = vmor %vm433, %vm434
    %v436 = vsel %vm435, %v428, %v432
    %v437 = vand.u32 2147483647, %v426
    %vm438 = vcmp.eq.f32.partialorder %v437, 8.507059e+37
    %v439 = vand.u32 %v426, 2147483648
    %v440 = vor.u32 1.1754944e-38, %v439
    %v441 = vsel %vm438, %v440, %v436
    %v442 = vmul.f32 1.0, %v441
    %v443 = vrcp.pop %v427
    %v444 = vmul.f32 %v427, %v443
    %v445 = vsub.f32 1.0, %v444
    %v446 = vmul.f32 %v443, %v445
    %v447 = vadd.f32 %v443, %v446
    %vm448 = vweird.f32 %v427
    %vm449 = vweird.f32 %v443
    %vm450 = vmor %vm448, %vm449
    %v451 = vsel %vm450, %v443, %v447
    %v452 = vand.u32 2147483647, %v427
    %vm453 = vcmp.eq.f32.partialorder %v452, 8.507059e+37
    %v454 = vand.u32 %v427, 2147483648
    %v455 = vor.u32 1.1754944e-38, %v454
    %v456 = vsel %vm453, %v455, %v451
    %v457 = vmul.f32 1.0, %v456
    %v458 = vmul.f32 %v442, 2.0
    %v459 = vmul.f32 %v457, 2.0
    %v460 = vsub.f32 %v458, 1.0
    %v461 = vsub.f32 %v459, 1.0
    %v462 = vsel %vm59, %v460, %v442
    %v463 = vsel %vm60, %v461, %v457
    %465 = vrot.lane.b32.xlu0 %v377, 64
    %v466 = vpop.permute.xlu0 %465
    %v468 = vmul.f32 %v462, %v466
    %v469 = vmul.f32 %v462, %v463
    %471 = vrot.lane.b32.xlu0 %v469, 64
    %v472 = vpop.permute.xlu0 %471
    %v474 = vadd.f32 %v468, %v472
    %v475 = vtanh.pop %v474
    %v476 = vmul.f32 %v463, %v475
    %478 = vrot.lane.b32.xlu0 %v476, 64
    %v479 = vpop.permute.xlu0 %478
    %v481 = vsel %vm64, %v479, %v372
    %483 = vrot.lane.b32.xlu0 %v474, 64
    %v484 = vpop.permute.xlu0 %483
    %v486 = vsel %vm64, %v484, %v377
    %v487 = vsel %vm64, %v479, 0.0
    %488 = vst.msk [vmem:[#allocation2 + $0x8] sm:$0xff] %vm378, %v487
    %489 = vst.msk [vmem:[#allocation2 + $0x30] sm:$0xff] %vm380, %v487
    %v490 = vpack.c.bf16 %v481, %v481
    %v492 = vsel %vm151, %v490, 0
    %494 = vmatpush.bf16.msra.mxu0 0
    %495 = vmatpush.bf16.msra.mxu0 0
    %496 = vmatpush.bf16.msra.mxu0 0
    %497 = vmatpush.bf16.msra.mxu0 0
    %498 = vmatpush.bf16.msra.mxu0 %v268
    %499 = vmatpush.bf16.msra.mxu0 %v266
    %500 = vmatpush.bf16.msra.mxu0 %v264
    %501 = vmatpush.bf16.msra.mxu0 %v262
    %502 = vmatmul.bf16.gmra.mxu0 %v492
    %v503 = vpop.f32.mrf.mxu0
    %v504 = vadd.f32 0.0, %v503
    %v505 = vpop.f32.mrf.mxu0
    %506 = vdwg.mxu0
    %507 = vmatpush.bf16.msra.mxu0 0
    %508 = vmatpush.bf16.msra.mxu0 0
    %509 = vmatpush.bf16.msra.mxu0 0
    %510 = vmatpush.bf16.msra.mxu0 0
    %511 = vmatpush.bf16.msra.mxu0 %v269
    %512 = vmatpush.bf16.msra.mxu0 %v267
    %513 = vmatpush.bf16.msra.mxu0 %v265
    %514 = vmatpush.bf16.msra.mxu0 %v263
    %515 = vmatmul.bf16.gmra.mxu0 %v492
    %v516 = vpop.f32.mrf.mxu0
    %v517 = vadd.f32 0.0, %v516
    %v518 = vpop.f32.mrf.mxu0
    %519 = vdwg.mxu0
    %v520 = vld [vmem:[#allocation4 + $0x20] sm:$0xff]
    %v521 = vld [vmem:[#allocation4 + $0x28] sm:$0xff]
    %v522 = vld [vmem:[#allocation4 + $0x50] sm:$0xff]
    %v523 = vld [vmem:[#allocation4 + $0x58] sm:$0xff]
    %v524 = vsel %vm53, %v520, %v522
    %v525 = vsel %vm54, %v521, %v523
    %v526 = vadd.f32 %v524, %v504
    %v527 = vadd.f32 %v525, %v517
    %v528 = vxor.u32 %v526, 2147483648
    %v529 = vxor.u32 %v527, 2147483648
    %v530 = vmul.f32 %v528, 1.442695
    %v531 = vpow.pop %v530
    %v532 = vmul.f32 %v529, 1.442695
    %v533 = vpow.pop %v532
    %v534 = vadd.f32 %v531, 1.0
    %v535 = vadd.f32 %v533, 1.0
    %v536 = vrcp.pop %v534
    %v537 = vmul.f32 %v534, %v536
    %v538 = vsub.f32 1.0, %v537
    %v539 = vmul.f32 %v536, %v538
    %v540 = vadd.f32 %v536, %v539
    %vm541 = vweird.f32 %v534
    %vm542 = vweird.f32 %v536
    %vm543 = vmor %vm541, %vm542
    %v544 = vsel %vm543, %v536, %v540
    %v545 = vand.u32 2147483647, %v534
    %vm546 = vcmp.eq.f32.partialorder %v545, 8.507059e+37
    %v547 = vand.u32 %v534, 2147483648
    %v548 = vor.u32 1.1754944e-38, %v547
    %v549 = vsel %vm546, %v548, %v544
    %v550 = vmul.f32 1.0, %v549
    %v551 = vrcp.pop %v535
    %v552 = vmul.f32 %v535, %v551
    %v553 = vsub.f32 1.0, %v552
    %v554 = vmul.f32 %v551, %v553
    %v555 = vadd.f32 %v551, %v554
    %vm556 = vweird.f32 %v535
    %vm557 = vweird.f32 %v551
    %vm558 = vmor %vm556, %vm557
    %v559 = vsel %vm558, %v551, %v555
    %v560 = vand.u32 2147483647, %v535
    %vm561 = vcmp.eq.f32.partialorder %v560, 8.507059e+37
    %v562 = vand.u32 %v535, 2147483648
    %v563 = vor.u32 1.1754944e-38, %v562
    %v564 = vsel %vm561, %v563, %v559
    %v565 = vmul.f32 1.0, %v564
    %v566 = vmul.f32 %v550, 2.0
    %v567 = vmul.f32 %v565, 2.0
    %v568 = vsub.f32 %v566, 1.0
    %v569 = vsub.f32 %v567, 1.0
    %v570 = vsel %vm59, %v568, %v550
    %v571 = vsel %vm60, %v569, %v565
    %573 = vrot.lane.b32.xlu0 %v486, 64
    %v574 = vpop.permute.xlu0 %573
    %v576 = vmul.f32 %v570, %v574
    %v577 = vmul.f32 %v570, %v571
    %579 = vrot.lane.b32.xlu0 %v577, 64
    %v580 = vpop.permute.xlu0 %579
    %v582 = vadd.f32 %v576, %v580
    %v583 = vtanh.pop %v582
    %v584 = vmul.f32 %v571, %v583
    %586 = vrot.lane.b32.xlu0 %v584, 64
    %v587 = vpop.permute.xlu0 %586
    %v589 = vsel %vm66, %v587, %v481
    %591 = vrot.lane.b32.xlu0 %v582, 64
    %v592 = vpop.permute.xlu0 %591
    %v594 = vsel %vm66, %v592, %v486
    %v595 = vsel %vm66, %v587, 0.0
    %596 = vst.msk [vmem:[#allocation2 + $0x10] sm:$0xff] %vm378, %v595
    %597 = vst.msk [vmem:[#allocation2 + $0x28] sm:$0xff] %vm380, %v595
    %v598 = vpack.c.bf16 %v589, %v589
    %v600 = vsel %vm151, %v598, 0
    %602 = vmatpush.bf16.msra.mxu0 0
    %603 = vmatpush.bf16.msra.mxu0 0
    %604 = vmatpush.bf16.msra.mxu0 0
    %605 = vmatpush.bf16.msra.mxu0 0
    %606 = vmatpush.bf16.msra.mxu0 %v268
    %607 = vmatpush.bf16.msra.mxu0 %v266
    %608 = vmatpush.bf16.msra.mxu0 %v264
    %609 = vmatpush.bf16.msra.mxu0 %v262
    %610 = vmatmul.bf16.gmra.mxu0 %v600
    %v611 = vpop.f32.mrf.mxu0
    %v612 = vadd.f32 0.0, %v611
    %v613 = vpop.f32.mrf.mxu0
    %614 = vdwg.mxu0
    %615 = vmatpush.bf16.msra.mxu0 0
    %616 = vmatpush.bf16.msra.mxu0 0
    %617 = vmatpush.bf16.msra.mxu0 0
    %618 = vmatpush.bf16.msra.mxu0 0
    %619 = vmatpush.bf16.msra.mxu0 %v269
    %620 = vmatpush.bf16.msra.mxu0 %v267
    %621 = vmatpush.bf16.msra.mxu0 %v265
    %622 = vmatpush.bf16.msra.mxu0 %v263
    %623 = vmatmul.bf16.gmra.mxu0 %v600
    %v624 = vpop.f32.mrf.mxu0
    %v625 = vadd.f32 0.0, %v624
    %v626 = vpop.f32.mrf.mxu0
    %627 = vdwg.mxu0
    %v628 = vld [vmem:[#allocation4 + $0x30] sm:$0xff]
    %v629 = vld [vmem:[#allocation4 + $0x38] sm:$0xff]
    %v630 = vld [vmem:[#allocation4 + $0x40] sm:$0xff]
    %v631 = vld [vmem:[#allocation4 + $0x48] sm:$0xff]
    %v632 = vsel %vm53, %v628, %v630
    %v633 = vsel %vm54, %v629, %v631
    %v634 = vadd.f32 %v632, %v612
    %v635 = vadd.f32 %v633, %v625
    %v636 = vxor.u32 %v634, 2147483648
    %v637 = vxor.u32 %v635, 2147483648
    %v638 = vmul.f32 %v636, 1.442695
    %v639 = vpow.pop %v638
    %v640 = vmul.f32 %v637, 1.442695
    %v641 = vpow.pop %v640
    %v642 = vadd.f32 %v639, 1.0
    %v643 = vadd.f32 %v641, 1.0
    %v644 = vrcp.pop %v642
    %v645 = vmul.f32 %v642, %v644
    %v646 = vsub.f32 1.0, %v645
    %v647 = vmul.f32 %v644, %v646
    %v648 = vadd.f32 %v644, %v647
    %vm649 = vweird.f32 %v642
    %vm650 = vweird.f32 %v644
    %vm651 = vmor %vm649, %vm650
    %v652 = vsel %vm651, %v644, %v648
    %v653 = vand.u32 2147483647, %v642
    %vm654 = vcmp.eq.f32.partialorder %v653, 8.507059e+37
    %v655 = vand.u32 %v642, 2147483648
    %v656 = vor.u32 1.1754944e-38, %v655
    %v657 = vsel %vm654, %v656, %v652
    %v658 = vmul.f32 1.0, %v657
    %v659 = vrcp.pop %v643
    %v660 = vmul.f32 %v643, %v659
    %v661 = vsub.f32 1.0, %v660
    %v662 = vmul.f32 %v659, %v661
    %v663 = vadd.f32 %v659, %v662
    %vm664 = vweird.f32 %v643
    %vm665 = vweird.f32 %v659
    %vm666 = vmor %vm664, %vm665
    %v667 = vsel %vm666, %v659, %v663
    %v668 = vand.u32 2147483647, %v643
    %vm669 = vcmp.eq.f32.partialorder %v668, 8.507059e+37
    %v670 = vand.u32 %v643, 2147483648
    %v671 = vor.u32 1.1754944e-38, %v670
    %v672 = vsel %vm669, %v671, %v667
    %v673 = vmul.f32 1.0, %v672
    %v674 = vmul.f32 %v658, 2.0
    %v675 = vmul.f32 %v673, 2.0
    %v676 = vsub.f32 %v674, 1.0
    %v677 = vsub.f32 %v675, 1.0
    %v678 = vsel %vm59, %v676, %v658
    %v679 = vsel %vm60, %v677, %v673
    %681 = vrot.lane.b32.xlu0 %v594, 64
    %v682 = vpop.permute.xlu0 %681
    %v684 = vmul.f32 %v678, %v682
    %v685 = vmul.f32 %v678, %v679
    %687 = vrot.lane.b32.xlu0 %v685, 64
    %v688 = vpop.permute.xlu0 %687
    %v690 = vadd.f32 %v684, %v688
    %v691 = vtanh.pop %v690
    %v692 = vmul.f32 %v679, %v691
    %694 = vrot.lane.b32.xlu0 %v692, 64
    %v695 = vpop.permute.xlu0 %694
    %v697 = vsel %vm68, %v695, %v589
    %699 = vrot.lane.b32.xlu0 %v690, 64
    %v700 = vpop.permute.xlu0 %699
    %v702 = vsel %vm68, %v700, %v594
    %v703 = vsel %vm68, %v695, 0.0
    %704 = vst.msk [vmem:[#allocation2 + $0x18] sm:$0xff] %vm378, %v703
    %705 = vst.msk [vmem:[#allocation2 + $0x20] sm:$0xff] %vm380, %v703
    %v706 = vpack.c.bf16 %v697, %v697
    %v708 = vsel %vm151, %v706, 0
    %710 = vmatpush.bf16.msra.mxu0 0
    %711 = vmatpush.bf16.msra.mxu0 0
    %712 = vmatpush.bf16.msra.mxu0 0
    %713 = vmatpush.bf16.msra.mxu0 0
    %714 = vmatpush.bf16.msra.mxu0 %v268
    %715 = vmatpush.bf16.msra.mxu0 %v266
    %716 = vmatpush.bf16.msra.mxu0 %v264
    %717 = vmatpush.bf16.msra.mxu0 %v262
    %718 = vmatmul.bf16.gmra.mxu0 %v708
    %v719 = vpop.f32.mrf.mxu0
    %v720 = vadd.f32 0.0, %v719
    %v721 = vpop.f32.mrf.mxu0
    %722 = vdwg.mxu0
    %723 = vmatpush.bf16.msra.mxu0 0
    %724 = vmatpush.bf16.msra.mxu0 0
    %725 = vmatpush.bf16.msra.mxu0 0
    %726 = vmatpush.bf16.msra.mxu0 0
    %727 = vmatpush.bf16.msra.mxu0 %v269
    %728 = vmatpush.bf16.msra.mxu0 %v267
    %729 = vmatpush.bf16.msra.mxu0 %v265
    %730 = vmatpush.bf16.msra.mxu0 %v263
    %731 = vmatmul.bf16.gmra.mxu0 %v708
    %v732 = vpop.f32.mrf.mxu0
    %v733 = vadd.f32 0.0, %v732
    %v734 = vpop.f32.mrf.mxu0
    %735 = vdwg.mxu0
    %v736 = vld [vmem:[#allocation4 + $0x40] sm:$0xff]
    %v737 = vld [vmem:[#allocation4 + $0x48] sm:$0xff]
    %v738 = vld [vmem:[#allocation4 + $0x30] sm:$0xff]
    %v739 = vld [vmem:[#allocation4 + $0x38] sm:$0xff]
    %v740 = vsel %vm53, %v736, %v738
    %v741 = vsel %vm54, %v737, %v739
    %v742 = vadd.f32 %v740, %v720
    %v743 = vadd.f32 %v741, %v733
    %v744 = vxor.u32 %v742, 2147483648
    %v745 = vxor.u32 %v743, 2147483648
    %v746 = vmul.f32 %v744, 1.442695
    %v747 = vpow.pop %v746
    %v748 = vmul.f32 %v745, 1.442695
    %v749 = vpow.pop %v748
    %v750 = vadd.f32 %v747, 1.0
    %v751 = vadd.f32 %v749, 1.0
    %v752 = vrcp.pop %v750
    %v753 = vmul.f32 %v750, %v752
    %v754 = vsub.f32 1.0, %v753
    %v755 = vmul.f32 %v752, %v754
    %v756 = vadd.f32 %v752, %v755
    %vm757 = vweird.f32 %v750
    %vm758 = vweird.f32 %v752
    %vm759 = vmor %vm757, %vm758
    %v760 = vsel %vm759, %v752, %v756
    %v761 = vand.u32 2147483647, %v750
    %vm762 = vcmp.eq.f32.partialorder %v761, 8.507059e+37
    %v763 = vand.u32 %v750, 2147483648
    %v764 = vor.u32 1.1754944e-38, %v763
    %v765 = vsel %vm762, %v764, %v760
    %v766 = vmul.f32 1.0, %v765
    %v767 = vrcp.pop %v751
    %v768 = vmul.f32 %v751, %v767
    %v769 = vsub.f32 1.0, %v768
    %v770 = vmul.f32 %v767, %v769
    %v771 = vadd.f32 %v767, %v770
    %vm772 = vweird.f32 %v751
    %vm773 = vweird.f32 %v767
    %vm774 = vmor %vm772, %vm773
    %v775 = vsel %vm774, %v767, %v771
    %v776 = vand.u32 2147483647, %v751
    %vm777 = vcmp.eq.f32.partialorder %v776, 8.507059e+37
    %v778 = vand.u32 %v751, 2147483648
    %v779 = vor.u32 1.1754944e-38, %v778
    %v780 = vsel %vm777, %v779, %v775
    %v781 = vmul.f32 1.0, %v780
    %v782 = vmul.f32 %v766, 2.0
    %v783 = vmul.f32 %v781, 2.0
    %v784 = vsub.f32 %v782, 1.0
    %v785 = vsub.f32 %v783, 1.0
    %v786 = vsel %vm59, %v784, %v766
    %v787 = vsel %vm60, %v785, %v781
    %789 = vrot.lane.b32.xlu0 %v702, 64
    %v790 = vpop.permute.xlu0 %789
    %v792 = vmul.f32 %v786, %v790
    %v793 = vmul.f32 %v786, %v787
    %795 = vrot.lane.b32.xlu0 %v793, 64
    %v796 = vpop.permute.xlu0 %795
    %v798 = vadd.f32 %v792, %v796
    %v799 = vtanh.pop %v798
    %v800 = vmul.f32 %v787, %v799
    %802 = vrot.lane.b32.xlu0 %v800, 64
    %v803 = vpop.permute.xlu0 %802
    %v805 = vsel %vm70, %v803, %v697
    %807 = vrot.lane.b32.xlu0 %v798, 64
    %v808 = vpop.permute.xlu0 %807
    %v810 = vsel %vm70, %v808, %v702
    %v811 = vsel %vm70, %v803, 0.0
    %812 = vst.msk [vmem:[#allocation2 + $0x20] sm:$0xff] %vm378, %v811
    %813 = vst.msk [vmem:[#allocation2 + $0x18] sm:$0xff] %vm380, %v811
    %v814 = vpack.c.bf16 %v805, %v805
    %v816 = vsel %vm151, %v814, 0
    %818 = vmatpush.bf16.msra.mxu0 0
    %819 = vmatpush.bf16.msra.mxu0 0
    %820 = vmatpush.bf16.msra.mxu0 0
    %821 = vmatpush.bf16.msra.mxu0 0
    %822 = vmatpush.bf16.msra.mxu0 %v268
    %823 = vmatpush.bf16.msra.mxu0 %v266
    %824 = vmatpush.bf16.msra.mxu0 %v264
    %825 = vmatpush.bf16.msra.mxu0 %v262
    %826 = vmatmul.bf16.gmra.mxu0 %v816
    %v827 = vpop.f32.mrf.mxu0
    %v828 = vadd.f32 0.0, %v827
    %v829 = vpop.f32.mrf.mxu0
    %830 = vdwg.mxu0
    %831 = vmatpush.bf16.msra.mxu0 0
    %832 = vmatpush.bf16.msra.mxu0 0
    %833 = vmatpush.bf16.msra.mxu0 0
    %834 = vmatpush.bf16.msra.mxu0 0
    %835 = vmatpush.bf16.msra.mxu0 %v269
    %836 = vmatpush.bf16.msra.mxu0 %v267
    %837 = vmatpush.bf16.msra.mxu0 %v265
    %838 = vmatpush.bf16.msra.mxu0 %v263
    %839 = vmatmul.bf16.gmra.mxu0 %v816
    %v840 = vpop.f32.mrf.mxu0
    %v841 = vadd.f32 0.0, %v840
    %v842 = vpop.f32.mrf.mxu0
    %843 = vdwg.mxu0
    %v844 = vld [vmem:[#allocation4 + $0x50] sm:$0xff]
    %v845 = vld [vmem:[#allocation4 + $0x58] sm:$0xff]
    %v846 = vld [vmem:[#allocation4 + $0x20] sm:$0xff]
    %v847 = vld [vmem:[#allocation4 + $0x28] sm:$0xff]
    %v848 = vsel %vm53, %v844, %v846
    %v849 = vsel %vm54, %v845, %v847
    %v850 = vadd.f32 %v848, %v828
    %v851 = vadd.f32 %v849, %v841
    %v852 = vxor.u32 %v850, 2147483648
    %v853 = vxor.u32 %v851, 2147483648
    %v854 = vmul.f32 %v852, 1.442695
    %v855 = vpow.pop %v854
    %v856 = vmul.f32 %v853, 1.442695
    %v857 = vpow.pop %v856
    %v858 = vadd.f32 %v855, 1.0
    %v859 = vadd.f32 %v857, 1.0
    %v860 = vrcp.pop %v858
    %v861 = vmul.f32 %v858, %v860
    %v862 = vsub.f32 1.0, %v861
    %v863 = vmul.f32 %v860, %v862
    %v864 = vadd.f32 %v860, %v863
    %vm865 = vweird.f32 %v858
    %vm866 = vweird.f32 %v860
    %vm867 = vmor %vm865, %vm866
    %v868 = vsel %vm867, %v860, %v864
    %v869 = vand.u32 2147483647, %v858
    %vm870 = vcmp.eq.f32.partialorder %v869, 8.507059e+37
    %v871 = vand.u32 %v858, 2147483648
    %v872 = vor.u32 1.1754944e-38, %v871
    %v873 = vsel %vm870, %v872, %v868
    %v874 = vmul.f32 1.0, %v873
    %v875 = vrcp.pop %v859
    %v876 = vmul.f32 %v859, %v875
    %v877 = vsub.f32 1.0, %v876
    %v878 = vmul.f32 %v875, %v877
    %v879 = vadd.f32 %v875, %v878
    %vm880 = vweird.f32 %v859
    %vm881 = vweird.f32 %v875
    %vm882 = vmor %vm880, %vm881
    %v883 = vsel %vm882, %v875, %v879
    %v884 = vand.u32 2147483647, %v859
    %vm885 = vcmp.eq.f32.partialorder %v884, 8.507059e+37
    %v886 = vand.u32 %v859, 2147483648
    %v887 = vor.u32 1.1754944e-38, %v886
    %v888 = vsel %vm885, %v887, %v883
    %v889 = vmul.f32 1.0, %v888
    %v890 = vmul.f32 %v874, 2.0
    %v891 = vmul.f32 %v889, 2.0
    %v892 = vsub.f32 %v890, 1.0
    %v893 = vsub.f32 %v891, 1.0
    %v894 = vsel %vm59, %v892, %v874
    %v895 = vsel %vm60, %v893, %v889
    %897 = vrot.lane.b32.xlu0 %v810, 64
    %v898 = vpop.permute.xlu0 %897
    %v900 = vmul.f32 %v894, %v898
    %v901 = vmul.f32 %v894, %v895
    %903 = vrot.lane.b32.xlu0 %v901, 64
    %v904 = vpop.permute.xlu0 %903
    %v906 = vadd.f32 %v900, %v904
    %v907 = vtanh.pop %v906
    %v908 = vmul.f32 %v895, %v907
    %910 = vrot.lane.b32.xlu0 %v908, 64
    %v911 = vpop.permute.xlu0 %910
    %v913 = vsel %vm72, %v911, %v805
    %915 = vrot.lane.b32.xlu0 %v906, 64
    %v916 = vpop.permute.xlu0 %915
    %v918 = vsel %vm72, %v916, %v810
    %v919 = vsel %vm72, %v911, 0.0
    %920 = vst.msk [vmem:[#allocation2 + $0x28] sm:$0xff] %vm378, %v919
    %921 = vst.msk [vmem:[#allocation2 + $0x10] sm:$0xff] %vm380, %v919
    %v922 = vpack.c.bf16 %v913, %v913
    %v924 = vsel %vm151, %v922, 0
    %926 = vmatpush.bf16.msra.mxu0 0
    %927 = vmatpush.bf16.msra.mxu0 0
    %928 = vmatpush.bf16.msra.mxu0 0
    %929 = vmatpush.bf16.msra.mxu0 0
    %930 = vmatpush.bf16.msra.mxu0 %v268
    %931 = vmatpush.bf16.msra.mxu0 %v266
    %932 = vmatpush.bf16.msra.mxu0 %v264
    %933 = vmatpush.bf16.msra.mxu0 %v262
    %934 = vmatmul.bf16.gmra.mxu0 %v924
    %v935 = vpop.f32.mrf.mxu0
    %v936 = vadd.f32 0.0, %v935
    %v937 = vpop.f32.mrf.mxu0
    %938 = vdwg.mxu0
    %939 = vmatpush.bf16.msra.mxu0 0
    %940 = vmatpush.bf16.msra.mxu0 0
    %941 = vmatpush.bf16.msra.mxu0 0
    %942 = vmatpush.bf16.msra.mxu0 0
    %943 = vmatpush.bf16.msra.mxu0 %v269
    %944 = vmatpush.bf16.msra.mxu0 %v267
    %945 = vmatpush.bf16.msra.mxu0 %v265
    %946 = vmatpush.bf16.msra.mxu0 %v263
    %947 = vmatmul.bf16.gmra.mxu0 %v924
    %v948 = vpop.f32.mrf.mxu0
    %v949 = vadd.f32 0.0, %v948
    %v950 = vpop.f32.mrf.mxu0
    %951 = vdwg.mxu0
    %v952 = vld [vmem:[#allocation4 + $0x60] sm:$0xff]
    %v953 = vld [vmem:[#allocation4 + $0x68] sm:$0xff]
    %v954 = vld [vmem:[#allocation4 + $0x10] sm:$0xff]
    %v955 = vld [vmem:[#allocation4 + $0x18] sm:$0xff]
    %v956 = vsel %vm53, %v952, %v954
    %v957 = vsel %vm54, %v953, %v955
    %v958 = vadd.f32 %v956, %v936
    %v959 = vadd.f32 %v957, %v949
    %v960 = vxor.u32 %v958, 2147483648
    %v961 = vxor.u32 %v959, 2147483648
    %v962 = vmul.f32 %v960, 1.442695
    %v963 = vpow.pop %v962
    %v964 = vmul.f32 %v961, 1.442695
    %v965 = vpow.pop %v964
    %v966 = vadd.f32 %v963, 1.0
    %v967 = vadd.f32 %v965, 1.0
    %v968 = vrcp.pop %v966
    %v969 = vmul.f32 %v966, %v968
    %v970 = vsub.f32 1.0, %v969
    %v971 = vmul.f32 %v968, %v970
    %v972 = vadd.f32 %v968, %v971
    %vm973 = vweird.f32 %v966
    %vm974 = vweird.f32 %v968
    %vm975 = vmor %vm973, %vm974
    %v976 = vsel %vm975, %v968, %v972
    %v977 = vand.u32 2147483647, %v966
    %vm978 = vcmp.eq.f32.partialorder %v977, 8.507059e+37
    %v979 = vand.u32 %v966, 2147483648
    %v980 = vor.u32 1.1754944e-38, %v979
    %v981 = vsel %vm978, %v980, %v976
    %v982 = vmul.f32 1.0, %v981
    %v983 = vrcp.pop %v967
    %v984 = vmul.f32 %v967, %v983
    %v985 = vsub.f32 1.0, %v984
    %v986 = vmul.f32 %v983, %v985
    %v987 = vadd.f32 %v983, %v986
    %vm988 = vweird.f32 %v967
    %vm989 = vweird.f32 %v983
    %vm990 = vmor %vm988, %vm989
    %v991 = vsel %vm990, %v983, %v987
    %v992 = vand.u32 2147483647, %v967
    %vm993 = vcmp.eq.f32.partialorder %v992, 8.507059e+37
    %v994 = vand.u32 %v967, 2147483648
    %v995 = vor.u32 1.1754944e-38, %v994
    %v996 = vsel %vm993, %v995, %v991
    %v997 = vmul.f32 1.0, %v996
    %v998 = vmul.f32 %v982, 2.0
    %v999 = vmul.f32 %v997, 2.0
    %v1000 = vsub.f32 %v998, 1.0
    %v1001 = vsub.f32 %v999, 1.0
    %v1002 = vsel %vm59, %v1000, %v982
    %v1003 = vsel %vm60, %v1001, %v997
    %1005 = vrot.lane.b32.xlu0 %v918, 64
    %v1006 = vpop.permute.xlu0 %1005
    %v1008 = vmul.f32 %v1002, %v1006
    %v1009 = vmul.f32 %v1002, %v1003
    %1011 = vrot.lane.b32.xlu0 %v1009, 64
    %v1012 = vpop.permute.xlu0 %1011
    %v1014 = vadd.f32 %v1008, %v1012
    %v1015 = vtanh.pop %v1014
    %v1016 = vmul.f32 %v1003, %v1015
    %1018 = vrot.lane.b32.xlu0 %v1016, 64
    %v1019 = vpop.permute.xlu0 %1018
    %v1021 = vsel %vm74, %v1019, %v913
    %1023 = vrot.lane.b32.xlu0 %v1014, 64
    %v1024 = vpop.permute.xlu0 %1023
    %v1026 = vsel %vm74, %v1024, %v918
    %v1027 = vsel %vm74, %v1019, 0.0
    %1028 = vst.msk [vmem:[#allocation2 + $0x30] sm:$0xff] %vm378, %v1027
    %1029 = vst.msk [vmem:[#allocation2 + $0x8] sm:$0xff] %vm380, %v1027
    %v1030 = vpack.c.bf16 %v1021, %v1021
    %v1032 = vsel %vm151, %v1030, 0
    %1034 = vmatpush.bf16.msra.mxu0 0
    %1035 = vmatpush.bf16.msra.mxu0 0
    %1036 = vmatpush.bf16.msra.mxu0 0
    %1037 = vmatpush.bf16.msra.mxu0 0
    %1038 = vmatpush.bf16.msra.mxu0 %v268
    %1039 = vmatpush.bf16.msra.mxu0 %v266
    %1040 = vmatpush.bf16.msra.mxu0 %v264
    %1041 = vmatpush.bf16.msra.mxu0 %v262
    %1042 = vmatmul.bf16.gmra.mxu0 %v1032
    %v1043 = vpop.f32.mrf.mxu0
    %v1044 = vadd.f32 0.0, %v1043
    %v1045 = vpop.f32.mrf.mxu0
    %1046 = vdwg.mxu0
    %1047 = vmatpush.bf16.msra.mxu0 0
    %1048 = vmatpush.bf16.msra.mxu0 0
    %1049 = vmatpush.bf16.msra.mxu0 0
    %1050 = vmatpush.bf16.msra.mxu0 0
    %1051 = vmatpush.bf16.msra.mxu0 %v269
    %1052 = vmatpush.bf16.msra.mxu0 %v267
    %1053 = vmatpush.bf16.msra.mxu0 %v265
    %1054 = vmatpush.bf16.msra.mxu0 %v263
    %1055 = vmatmul.bf16.gmra.mxu0 %v1032
    %v1056 = vpop.f32.mrf.mxu0
    %v1057 = vadd.f32 0.0, %v1056
    %v1058 = vpop.f32.mrf.mxu0
    %1059 = vdwg.mxu0
    %v1060 = vld [vmem:[#allocation4 + $0x70] sm:$0xff]
    %v1061 = vld [vmem:[#allocation4 + $0x78] sm:$0xff]
    %v1062 = vld [vmem:[#allocation4] sm:$0xff]
    %v1063 = vld [vmem:[#allocation4 + $0x8] sm:$0xff]
    %v1064 = vsel %vm53, %v1060, %v1062
    %v1065 = vsel %vm54, %v1061, %v1063
    %v1066 = vadd.f32 %v1064, %v1044
    %v1067 = vadd.f32 %v1065, %v1057
    %v1068 = vxor.u32 %v1066, 2147483648
    %v1069 = vxor.u32 %v1067, 2147483648
    %v1070 = vmul.f32 %v1068, 1.442695
    %v1071 = vpow.pop %v1070
    %v1072 = vmul.f32 %v1069, 1.442695
    %v1073 = vpow.pop %v1072
    %v1074 = vadd.f32 %v1071, 1.0
    %v1075 = vadd.f32 %v1073, 1.0
    %v1076 = vrcp.pop %v1074
    %v1077 = vmul.f32 %v1074, %v1076
    %v1078 = vsub.f32 1.0, %v1077
    %v1079 = vmul.f32 %v1076, %v1078
    %v1080 = vadd.f32 %v1076, %v1079
    %vm1081 = vweird.f32 %v1074
    %vm1082 = vweird.f32 %v1076
    %vm1083 = vmor %vm1081, %vm1082
    %v1084 = vsel %vm1083, %v1076, %v1080
    %v1085 = vand.u32 2147483647, %v1074
    %vm1086 = vcmp.eq.f32.partialorder %v1085, 8.507059e+37
    %v1087 = vand.u32 %v1074, 2147483648
    %v1088 = vor.u32 1.1754944e-38, %v1087
    %v1089 = vsel %vm1086, %v1088, %v1084
    %v1090 = vmul.f32 1.0, %v1089
    %v1091 = vrcp.pop %v1075
    %v1092 = vmul.f32 %v1075, %v1091
    %v1093 = vsub.f32 1.0, %v1092
    %v1094 = vmul.f32 %v1091, %v1093
    %v1095 = vadd.f32 %v1091, %v1094
    %vm1096 = vweird.f32 %v1075
    %vm1097 = vweird.f32 %v1091
    %vm1098 = vmor %vm1096, %vm1097
    %v1099 = vsel %vm1098, %v1091, %v1095
    %v1100 = vand.u32 2147483647, %v1075
    %vm1101 = vcmp.eq.f32.partialorder %v1100, 8.507059e+37
    %v1102 = vand.u32 %v1075, 2147483648
    %v1103 = vor.u32 1.1754944e-38, %v1102
    %v1104 = vsel %vm1101, %v1103, %v1099
    %v1105 = vmul.f32 1.0, %v1104
    %v1106 = vmul.f32 %v1090, 2.0
    %v1107 = vmul.f32 %v1105, 2.0
    %v1108 = vsub.f32 %v1106, 1.0
    %v1109 = vsub.f32 %v1107, 1.0
    %v1110 = vsel %vm59, %v1108, %v1090
    %v1111 = vsel %vm60, %v1109, %v1105
    %1113 = vrot.lane.b32.xlu0 %v1026, 64
    %v1114 = vpop.permute.xlu0 %1113
    %v1116 = vmul.f32 %v1110, %v1114
    %v1117 = vmul.f32 %v1110, %v1111
    %1119 = vrot.lane.b32.xlu0 %v1117, 64
    %v1120 = vpop.permute.xlu0 %1119
    %v1122 = vadd.f32 %v1116, %v1120
    %v1123 = vtanh.pop %v1122
    %v1124 = vmul.f32 %v1111, %v1123
    %1126 = vrot.lane.b32.xlu0 %v1124, 64
    %v1127 = vpop.permute.xlu0 %1126
    %v1129 = vsel %vm76, %v1127, 0.0
    %1130 = vst.msk [vmem:[#allocation2 + $0x38] sm:$0xff] %vm378, %v1129
    %1131 = vst.msk [vmem:[#allocation2] sm:$0xff] %vm380, %v1129
    %s1132 = scalar_lea.vmem %s2, 64
    %v1133 = vld [vmem:[%s1132] sm:$0xff]
    %v1134 = vld [vmem:[%s1132 + $0x8] sm:$0xff]
    %v1135 = vld [vmem:[%s1132 + $0x10] sm:$0xff]
    %v1136 = vld [vmem:[%s1132 + $0x18] sm:$0xff]
    %v1137 = vld [vmem:[%s1132 + $0x20] sm:$0xff]
    %v1138 = vld [vmem:[%s1132 + $0x28] sm:$0xff]
    %v1139 = vld [vmem:[%s1132 + $0x30] sm:$0xff]
    %v1140 = vld [vmem:[%s1132 + $0x38] sm:$0xff]
    %s1141 = scalar_lea.vmem [#allocation5], 64
    %v1142 = vld [vmem:[%s1141] sm:$0xff]
    %v1143 = vld [vmem:[%s1141 + $0x8] sm:$0xff]
    %v1144 = vld [vmem:[%s1141 + $0x10] sm:$0xff]
    %v1145 = vld [vmem:[%s1141 + $0x18] sm:$0xff]
    %v1146 = vld [vmem:[%s1141 + $0x20] sm:$0xff]
    %v1147 = vld [vmem:[%s1141 + $0x28] sm:$0xff]
    %v1148 = vld [vmem:[%s1141 + $0x30] sm:$0xff]
    %v1149 = vld [vmem:[%s1141 + $0x38] sm:$0xff]
    %s1150 = scalar_lea.vmem %s4, 2
    %v1151 = vld [vmem:[%s1150] sm:$0x3]
    %v1152 = vld [vmem:[#allocation2] sm:$0xff]
    %v1153 = vld [vmem:[#allocation2 + $0x8] sm:$0xff]
    %v1154 = vld [vmem:[#allocation2 + $0x10] sm:$0xff]
    %v1155 = vld [vmem:[#allocation2 + $0x18] sm:$0xff]
    %v1156 = vld [vmem:[#allocation2 + $0x20] sm:$0xff]
    %v1157 = vld [vmem:[#allocation2 + $0x28] sm:$0xff]
    %v1158 = vld [vmem:[#allocation2 + $0x30] sm:$0xff]
    %v1159 = vld [vmem:[#allocation2 + $0x38] sm:$0xff]
    %v1160 = vpack.c.bf16 %v1153, %v1152
    %v1161 = vpack.c.bf16 %v1155, %v1154
    %v1162 = vpack.c.bf16 %v1157, %v1156
    %v1163 = vpack.c.bf16 %v1159, %v1158
    %v1165 = vperm.slane %v1151, 0
    %v1166 = vperm.slane %v1151, 1
    %v1177 = vunpack.c.l.b16 %v1133
    %v1178 = vunpack.c.h.b16 %v1133
    %v1179 = vunpack.c.l.b16 %v1134
    %v1180 = vunpack.c.h.b16 %v1134
    %v1181 = vunpack.c.l.b16 %v1135
    %v1182 = vunpack.c.h.b16 %v1135
    %v1183 = vunpack.c.l.b16 %v1136
    %v1184 = vunpack.c.h.b16 %v1136
    %v1185 = vunpack.c.l.b16 %v1137
    %v1186 = vunpack.c.h.b16 %v1137
    %v1187 = vunpack.c.l.b16 %v1138
    %v1188 = vunpack.c.h.b16 %v1138
    %v1189 = vunpack.c.l.b16 %v1139
    %v1190 = vunpack.c.h.b16 %v1139
    %v1191 = vunpack.c.l.b16 %v1140
    %v1192 = vunpack.c.h.b16 %v1140
    %v1193 = vpack.c.b16 %v1179, %v1177
    %v1194 = vpack.c.b16 %v1180, %v1178
    %v1195 = vpack.c.b16 %v1183, %v1181
    %v1196 = vpack.c.b16 %v1184, %v1182
    %v1197 = vpack.c.b16 %v1187, %v1185
    %v1198 = vpack.c.b16 %v1188, %v1186
    %v1199 = vpack.c.b16 %v1191, %v1189
    %v1200 = vpack.c.b16 %v1192, %v1190
    %v1210 = vsel %vm151, %v1160, 0
    %v1213 = vsel %vm151, %v1161, 0
    %v1216 = vsel %vm151, %v1162, 0
    %v1219 = vsel %vm151, %v1163, 0
    %1221 = vmatpush.bf16.msra.mxu0 0
    %1222 = vmatpush.bf16.msra.mxu0 0
    %1223 = vmatpush.bf16.msra.mxu0 0
    %1224 = vmatpush.bf16.msra.mxu0 0
    %1225 = vmatpush.bf16.msra.mxu0 %v1199
    %1226 = vmatpush.bf16.msra.mxu0 %v1197
    %1227 = vmatpush.bf16.msra.mxu0 %v1195
    %1228 = vmatpush.bf16.msra.mxu0 %v1193
    %1229 = vmatmul.bf16.gmra.mxu0 %v1210
    %v1230 = vpop.f32.mrf.mxu0
    %v1231 = vadd.f32 %v1165, %v1230
    %v1232 = vpop.f32.mrf.mxu0
    %v1233 = vadd.f32 %v1165, %v1232
    %1234 = vmatmul.bf16.gmra.mxu0 %v1213
    %v1235 = vpop.f32.mrf.mxu0
    %v1236 = vadd.f32 %v1165, %v1235
    %v1237 = vpop.f32.mrf.mxu0
    %v1238 = vadd.f32 %v1165, %v1237
    %1239 = vmatmul.bf16.gmra.mxu0 %v1216
    %v1240 = vpop.f32.mrf.mxu0
    %v1241 = vadd.f32 %v1165, %v1240
    %v1242 = vpop.f32.mrf.mxu0
    %v1243 = vadd.f32 %v1165, %v1242
    %1244 = vmatmul.bf16.gmra.mxu0 %v1219
    %v1245 = vpop.f32.mrf.mxu0
    %v1246 = vadd.f32 %v1165, %v1245
    %v1247 = vpop.f32.mrf.mxu0
    %v1248 = vadd.f32 %v1165, %v1247
    %1249 = vdwg.mxu0
    %1250 = vmatpush.bf16.msra.mxu0 0
    %1251 = vmatpush.bf16.msra.mxu0 0
    %1252 = vmatpush.bf16.msra.mxu0 0
    %1253 = vmatpush.bf16.msra.mxu0 0
    %1254 = vmatpush.bf16.msra.mxu0 %v1200
    %1255 = vmatpush.bf16.msra.mxu0 %v1198
    %1256 = vmatpush.bf16.msra.mxu0 %v1196
    %1257 = vmatpush.bf16.msra.mxu0 %v1194
    %1258 = vmatmul.bf16.gmra.mxu0 %v1210
    %v1259 = vpop.f32.mrf.mxu0
    %v1260 = vadd.f32 %v1166, %v1259
    %v1261 = vpop.f32.mrf.mxu0
    %v1262 = vadd.f32 %v1166, %v1261
    %1263 = vmatmul.bf16.gmra.mxu0 %v1213
    %v1264 = vpop.f32.mrf.mxu0
    %v1265 = vadd.f32 %v1166, %v1264
    %v1266 = vpop.f32.mrf.mxu0
    %v1267 = vadd.f32 %v1166, %v1266
    %1268 = vmatmul.bf16.gmra.mxu0 %v1216
    %v1269 = vpop.f32.mrf.mxu0
    %v1270 = vadd.f32 %v1166, %v1269
    %v1271 = vpop.f32.mrf.mxu0
    %v1272 = vadd.f32 %v1166, %v1271
    %1273 = vmatmul.bf16.gmra.mxu0 %v1219
    %v1274 = vpop.f32.mrf.mxu0
    %v1275 = vadd.f32 %v1166, %v1274
    %v1276 = vpop.f32.mrf.mxu0
    %v1277 = vadd.f32 %v1166, %v1276
    %1278 = vdwg.mxu0
    %1279 = vst [vmem:[#allocation4] sm:$0xff] %v1231
    %1280 = vst [vmem:[#allocation4 + $0x8] sm:$0xff] %v1260
    %1281 = vst [vmem:[#allocation4 + $0x10] sm:$0xff] %v1233
    %1282 = vst [vmem:[#allocation4 + $0x18] sm:$0xff] %v1262
    %1283 = vst [vmem:[#allocation4 + $0x20] sm:$0xff] %v1236
    %1284 = vst [vmem:[#allocation4 + $0x28] sm:$0xff] %v1265
    %1285 = vst [vmem:[#allocation4 + $0x30] sm:$0xff] %v1238
    %1286 = vst [vmem:[#allocation4 + $0x38] sm:$0xff] %v1267
    %1287 = vst [vmem:[#allocation4 + $0x40] sm:$0xff] %v1241
    %1288 = vst [vmem:[#allocation4 + $0x48] sm:$0xff] %v1270
    %1289 = vst [vmem:[#allocation4 + $0x50] sm:$0xff] %v1243
    %1290 = vst [vmem:[#allocation4 + $0x58] sm:$0xff] %v1272
    %1291 = vst [vmem:[#allocation4 + $0x60] sm:$0xff] %v1246
    %1292 = vst [vmem:[#allocation4 + $0x68] sm:$0xff] %v1275
    %1293 = vst [vmem:[#allocation4 + $0x70] sm:$0xff] %v1248
    %1294 = vst [vmem:[#allocation4 + $0x78] sm:$0xff] %v1277
    %v1303 = vunpack.c.l.b16 %v1142
    %v1304 = vunpack.c.h.b16 %v1142
    %v1305 = vunpack.c.l.b16 %v1143
    %v1306 = vunpack.c.h.b16 %v1143
    %v1307 = vunpack.c.l.b16 %v1144
    %v1308 = vunpack.c.h.b16 %v1144
    %v1309 = vunpack.c.l.b16 %v1145
    %v1310 = vunpack.c.h.b16 %v1145
    %v1311 = vunpack.c.l.b16 %v1146
    %v1312 = vunpack.c.h.b16 %v1146
    %v1313 = vunpack.c.l.b16 %v1147
    %v1314 = vunpack.c.h.b16 %v1147
    %v1315 = vunpack.c.l.b16 %v1148
    %v1316 = vunpack.c.h.b16 %v1148
    %v1317 = vunpack.c.l.b16 %v1149
    %v1318 = vunpack.c.h.b16 %v1149
    %v1319 = vpack.c.b16 %v1305, %v1303
    %v1320 = vpack.c.b16 %v1306, %v1304
    %v1321 = vpack.c.b16 %v1309, %v1307
    %v1322 = vpack.c.b16 %v1310, %v1308
    %v1323 = vpack.c.b16 %v1313, %v1311
    %v1324 = vpack.c.b16 %v1314, %v1312
    %v1325 = vpack.c.b16 %v1317, %v1315
    %v1326 = vpack.c.b16 %v1318, %v1316
    %1335 = vmatpush.bf16.msra.mxu0 0
    %1336 = vmatpush.bf16.msra.mxu0 0
    %1337 = vmatpush.bf16.msra.mxu0 0
    %1338 = vmatpush.bf16.msra.mxu0 0
    %1339 = vmatpush.bf16.msra.mxu0 %v1325
    %1340 = vmatpush.bf16.msra.mxu0 %v1323
    %1341 = vmatpush.bf16.msra.mxu0 %v1321
    %1342 = vmatpush.bf16.msra.mxu0 %v1319
    %1343 = vmatmul.bf16.gmra.mxu0 %v279
    %v1344 = vpop.f32.mrf.mxu0
    %v1345 = vadd.f32 0.0, %v1344
    %v1346 = vpop.f32.mrf.mxu0
    %1347 = vdwg.mxu0
    %1348 = vmatpush.bf16.msra.mxu0 0
    %1349 = vmatpush.bf16.msra.mxu0 0
    %1350 = vmatpush.bf16.msra.mxu0 0
    %1351 = vmatpush.bf16.msra.mxu0 0
    %1352 = vmatpush.bf16.msra.mxu0 %v1326
    %1353 = vmatpush.bf16.msra.mxu0 %v1324
    %1354 = vmatpush.bf16.msra.mxu0 %v1322
    %1355 = vmatpush.bf16.msra.mxu0 %v1320
    %1356 = vmatmul.bf16.gmra.mxu0 %v279
    %v1357 = vpop.f32.mrf.mxu0
    %v1358 = vadd.f32 0.0, %v1357
    %v1359 = vpop.f32.mrf.mxu0
    %1360 = vdwg.mxu0
    %v1361 = vld [vmem:[#allocation4] sm:$0xff]
    %v1362 = vld [vmem:[#allocation4 + $0x8] sm:$0xff]
    %v1363 = vld [vmem:[#allocation4 + $0x70] sm:$0xff]
    %v1364 = vld [vmem:[#allocation4 + $0x78] sm:$0xff]
    %v1365 = vsel %vm53, %v1361, %v1363
    %v1366 = vsel %vm54, %v1362, %v1364
    %v1367 = vadd.f32 %v1365, %v1345
    %v1368 = vadd.f32 %v1366, %v1358
    %v1369 = vxor.u32 %v1367, 2147483648
    %v1370 = vxor.u32 %v1368, 2147483648
    %v1371 = vmul.f32 %v1369, 1.442695
    %v1372 = vpow.pop %v1371
    %v1373 = vmul.f32 %v1370, 1.442695
    %v1374 = vpow.pop %v1373
    %v1375 = vadd.f32 %v1372, 1.0
    %v1376 = vadd.f32 %v1374, 1.0
    %v1377 = vrcp.pop %v1375
    %v1378 = vmul.f32 %v1375, %v1377
    %v1379 = vsub.f32 1.0, %v1378
    %v1380 = vmul.f32 %v1377, %v1379
    %v1381 = vadd.f32 %v1377, %v1380
    %vm1382 = vweird.f32 %v1375
    %vm1383 = vweird.f32 %v1377
    %vm1384 = vmor %vm1382, %vm1383
    %v1385 = vsel %vm1384, %v1377, %v1381
    %v1386 = vand.u32 2147483647, %v1375
    %vm1387 = vcmp.eq.f32.partialorder %v1386, 8.507059e+37
    %v1388 = vand.u32 %v1375, 2147483648
    %v1389 = vor.u32 1.1754944e-38, %v1388
    %v1390 = vsel %vm1387, %v1389, %v1385
    %v1391 = vmul.f32 1.0, %v1390
    %v1392 = vrcp.pop %v1376
    %v1393 = vmul.f32 %v1376, %v1392
    %v1394 = vsub.f32 1.0, %v1393
    %v1395 = vmul.f32 %v1392, %v1394
    %v1396 = vadd.f32 %v1392, %v1395
    %vm1397 = vweird.f32 %v1376
    %vm1398 = vweird.f32 %v1392
    %vm1399 = vmor %vm1397, %vm1398
    %v1400 = vsel %vm1399, %v1392, %v1396
    %v1401 = vand.u32 2147483647, %v1376
    %vm1402 = vcmp.eq.f32.partialorder %v1401, 8.507059e+37
    %v1403 = vand.u32 %v1376, 2147483648
    %v1404 = vor.u32 1.1754944e-38, %v1403
    %v1405 = vsel %vm1402, %v1404, %v1400
    %v1406 = vmul.f32 1.0, %v1405
    %v1407 = vmul.f32 %v1391, 2.0
    %v1408 = vmul.f32 %v1406, 2.0
    %v1409 = vsub.f32 %v1407, 1.0
    %v1410 = vsub.f32 %v1408, 1.0
    %v1411 = vsel %vm59, %v1409, %v1391
    %v1412 = vsel %vm60, %v1410, %v1406
    %v1413 = vmul.f32 %v1411, 0.0
    %v1414 = vmul.f32 %v1411, %v1412
    %1416 = vrot.lane.b32.xlu0 %v1414, 64
    %v1417 = vpop.permute.xlu0 %1416
    %v1419 = vadd.f32 %v1413, %v1417
    %v1420 = vtanh.pop %v1419
    %v1421 = vmul.f32 %v1412, %v1420
    %1423 = vrot.lane.b32.xlu0 %v1421, 64
    %v1424 = vpop.permute.xlu0 %1423
    %v1426 = vsel %vm62, %v1424, 0.0
    %1428 = vrot.lane.b32.xlu0 %v1419, 64
    %v1429 = vpop.permute.xlu0 %1428
    %v1431 = vsel %vm62, %v1429, 0.0
    %1432 = vst.msk [vmem:[#allocation3] sm:$0xff] %vm378, %v1426
    %1433 = vst.msk [vmem:[#allocation3 + $0x38] sm:$0xff] %vm380, %v1426
    %v1434 = vpack.c.bf16 %v1426, %v1426
    %v1436 = vsel %vm151, %v1434, 0
    %1438 = vmatpush.bf16.msra.mxu0 0
    %1439 = vmatpush.bf16.msra.mxu0 0
    %1440 = vmatpush.bf16.msra.mxu0 0
    %1441 = vmatpush.bf16.msra.mxu0 0
    %1442 = vmatpush.bf16.msra.mxu0 %v1325
    %1443 = vmatpush.bf16.msra.mxu0 %v1323
    %1444 = vmatpush.bf16.msra.mxu0 %v1321
    %1445 = vmatpush.bf16.msra.mxu0 %v1319
    %1446 = vmatmul.bf16.gmra.mxu0 %v1436
    %v1447 = vpop.f32.mrf.mxu0
    %v1448 = vadd.f32 0.0, %v1447
    %v1449 = vpop.f32.mrf.mxu0
    %1450 = vdwg.mxu0
    %1451 = vmatpush.bf16.msra.mxu0 0
    %1452 = vmatpush.bf16.msra.mxu0 0
    %1453 = vmatpush.bf16.msra.mxu0 0
    %1454 = vmatpush.bf16.msra.mxu0 0
    %1455 = vmatpush.bf16.msra.mxu0 %v1326
    %1456 = vmatpush.bf16.msra.mxu0 %v1324
    %1457 = vmatpush.bf16.msra.mxu0 %v1322
    %1458 = vmatpush.bf16.msra.mxu0 %v1320
    %1459 = vmatmul.bf16.gmra.mxu0 %v1436
    %v1460 = vpop.f32.mrf.mxu0
    %v1461 = vadd.f32 0.0, %v1460
    %v1462 = vpop.f32.mrf.mxu0
    %1463 = vdwg.mxu0
    %v1464 = vld [vmem:[#allocation4 + $0x10] sm:$0xff]
    %v1465 = vld [vmem:[#allocation4 + $0x18] sm:$0xff]
    %v1466 = vld [vmem:[#allocation4 + $0x60] sm:$0xff]
    %v1467 = vld [vmem:[#allocation4 + $0x68] sm:$0xff]
    %v1468 = vsel %vm53, %v1464, %v1466
    %v1469 = vsel %vm54, %v1465, %v1467
    %v1470 = vadd.f32 %v1468, %v1448
    %v1471 = vadd.f32 %v1469, %v1461
    %v1472 = vxor.u32 %v1470, 2147483648
    %v1473 = vxor.u32 %v1471, 2147483648
    %v1474 = vmul.f32 %v1472, 1.442695
    %v1475 = vpow.pop %v1474
    %v1476 = vmul.f32 %v1473, 1.442695
    %v1477 = vpow.pop %v1476
    %v1478 = vadd.f32 %v1475, 1.0
    %v1479 = vadd.f32 %v1477, 1.0
    %v1480 = vrcp.pop %v1478
    %v1481 = vmul.f32 %v1478, %v1480
    %v1482 = vsub.f32 1.0, %v1481
    %v1483 = vmul.f32 %v1480, %v1482
    %v1484 = vadd.f32 %v1480, %v1483
    %vm1485 = vweird.f32 %v1478
    %vm1486 = vweird.f32 %v1480
    %vm1487 = vmor %vm1485, %vm1486
    %v1488 = vsel %vm1487, %v1480, %v1484
    %v1489 = vand.u32 2147483647, %v1478
    %vm1490 = vcmp.eq.f32.partialorder %v1489, 8.507059e+37
    %v1491 = vand.u32 %v1478, 2147483648
    %v1492 = vor.u32 1.1754944e-38, %v1491
    %v1493 = vsel %vm1490, %v1492, %v1488
    %v1494 = vmul.f32 1.0, %v1493
    %v1495 = vrcp.pop %v1479
    %v1496 = vmul.f32 %v1479, %v1495
    %v1497 = vsub.f32 1.0, %v1496
    %v1498 = vmul.f32 %v1495, %v1497
    %v1499 = vadd.f32 %v1495, %v1498
    %vm1500 = vweird.f32 %v1479
    %vm1501 = vweird.f32 %v1495
    %vm1502 = vmor %vm1500, %vm1501
    %v1503 = vsel %vm1502, %v1495, %v1499
    %v1504 = vand.u32 2147483647, %v1479
    %vm1505 = vcmp.eq.f32.partialorder %v1504, 8.507059e+37
    %v1506 = vand.u32 %v1479, 2147483648
    %v1507 = vor.u32 1.1754944e-38, %v1506
    %v1508 = vsel %vm1505, %v1507, %v1503
    %v1509 = vmul.f32 1.0, %v1508
    %v1510 = vmul.f32 %v1494, 2.0
    %v1511 = vmul.f32 %v1509, 2.0
    %v1512 = vsub.f32 %v1510, 1.0
    %v1513 = vsub.f32 %v1511, 1.0
    %v1514 = vsel %vm59, %v1512, %v1494
    %v1515 = vsel %vm60, %v1513, %v1509
    %1517 = vrot.lane.b32.xlu0 %v1431, 64
    %v1518 = vpop.permute.xlu0 %1517
    %v1520 = vmul.f32 %v1514, %v1518
    %v1521 = vmul.f32 %v1514, %v1515
    %1523 = vrot.lane.b32.xlu0 %v1521, 64
    %v1524 = vpop.permute.xlu0 %1523
    %v1526 = vadd.f32 %v1520, %v1524
    %v1527 = vtanh.pop %v1526
    %v1528 = vmul.f32 %v1515, %v1527
    %1530 = vrot.lane.b32.xlu0 %v1528, 64
    %v1531 = vpop.permute.xlu0 %1530
    %v1533 = vsel %vm64, %v1531, %v1426
    %1535 = vrot.lane.b32.xlu0 %v1526, 64
    %v1536 = vpop.permute.xlu0 %1535
    %v1538 = vsel %vm64, %v1536, %v1431
    %v1539 = vsel %vm64, %v1531, 0.0
    %1540 = vst.msk [vmem:[#allocation3 + $0x8] sm:$0xff] %vm378, %v1539
    %1541 = vst.msk [vmem:[#allocation3 + $0x30] sm:$0xff] %vm380, %v1539
    %v1542 = vpack.c.bf16 %v1533, %v1533
    %v1544 = vsel %vm151, %v1542, 0
    %1546 = vmatpush.bf16.msra.mxu0 0
    %1547 = vmatpush.bf16.msra.mxu0 0
    %1548 = vmatpush.bf16.msra.mxu0 0
    %1549 = vmatpush.bf16.msra.mxu0 0
    %1550 = vmatpush.bf16.msra.mxu0 %v1325
    %1551 = vmatpush.bf16.msra.mxu0 %v1323
    %1552 = vmatpush.bf16.msra.mxu0 %v1321
    %1553 = vmatpush.bf16.msra.mxu0 %v1319
    %1554 = vmatmul.bf16.gmra.mxu0 %v1544
    %v1555 = vpop.f32.mrf.mxu0
    %v1556 = vadd.f32 0.0, %v1555
    %v1557 = vpop.f32.mrf.mxu0
    %1558 = vdwg.mxu0
    %1559 = vmatpush.bf16.msra.mxu0 0
    %1560 = vmatpush.bf16.msra.mxu0 0
    %1561 = vmatpush.bf16.msra.mxu0 0
    %1562 = vmatpush.bf16.msra.mxu0 0
    %1563 = vmatpush.bf16.msra.mxu0 %v1326
    %1564 = vmatpush.bf16.msra.mxu0 %v1324
    %1565 = vmatpush.bf16.msra.mxu0 %v1322
    %1566 = vmatpush.bf16.msra.mxu0 %v1320
    %1567 = vmatmul.bf16.gmra.mxu0 %v1544
    %v1568 = vpop.f32.mrf.mxu0
    %v1569 = vadd.f32 0.0, %v1568
    %v1570 = vpop.f32.mrf.mxu0
    %1571 = vdwg.mxu0
    %v1572 = vld [vmem:[#allocation4 + $0x20] sm:$0xff]
    %v1573 = vld [vmem:[#allocation4 + $0x28] sm:$0xff]
    %v1574 = vld [vmem:[#allocation4 + $0x50] sm:$0xff]
    %v1575 = vld [vmem:[#allocation4 + $0x58] sm:$0xff]
    %v1576 = vsel %vm53, %v1572, %v1574
    %v1577 = vsel %vm54, %v1573, %v1575
    %v1578 = vadd.f32 %v1576, %v1556
    %v1579 = vadd.f32 %v1577, %v1569
    %v1580 = vxor.u32 %v1578, 2147483648
    %v1581 = vxor.u32 %v1579, 2147483648
    %v1582 = vmul.f32 %v1580, 1.442695
    %v1583 = vpow.pop %v1582
    %v1584 = vmul.f32 %v1581, 1.442695
    %v1585 = vpow.pop %v1584
    %v1586 = vadd.f32 %v1583, 1.0
    %v1587 = vadd.f32 %v1585, 1.0
    %v1588 = vrcp.pop %v1586
    %v1589 = vmul.f32 %v1586, %v1588
    %v1590 = vsub.f32 1.0, %v1589
    %v1591 = vmul.f32 %v1588, %v1590
    %v1592 = vadd.f32 %v1588, %v1591
    %vm1593 = vweird.f32 %v1586
    %vm1594 = vweird.f32 %v1588
    %vm1595 = vmor %vm1593, %vm1594
    %v1596 = vsel %vm1595, %v1588, %v1592
    %v1597 = vand.u32 2147483647, %v1586
    %vm1598 = vcmp.eq.f32.partialorder %v1597, 8.507059e+37
    %v1599 = vand.u32 %v1586, 2147483648
    %v1600 = vor.u32 1.1754944e-38, %v1599
    %v1601 = vsel %vm1598, %v1600, %v1596
    %v1602 = vmul.f32 1.0, %v1601
    %v1603 = vrcp.pop %v1587
    %v1604 = vmul.f32 %v1587, %v1603
    %v1605 = vsub.f32 1.0, %v1604
    %v1606 = vmul.f32 %v1603, %v1605
    %v1607 = vadd.f32 %v1603, %v1606
    %vm1608 = vweird.f32 %v1587
    %vm1609 = vweird.f32 %v1603
    %vm1610 = vmor %vm1608, %vm1609
    %v1611 = vsel %vm1610, %v1603, %v1607
    %v1612 = vand.u32 2147483647, %v1587
    %vm1613 = vcmp.eq.f32.partialorder %v1612, 8.507059e+37
    %v1614 = vand.u32 %v1587, 2147483648
    %v1615 = vor.u32 1.1754944e-38, %v1614
    %v1616 = vsel %vm1613, %v1615, %v1611
    %v1617 = vmul.f32 1.0, %v1616
    %v1618 = vmul.f32 %v1602, 2.0
    %v1619 = vmul.f32 %v1617, 2.0
    %v1620 = vsub.f32 %v1618, 1.0
    %v1621 = vsub.f32 %v1619, 1.0
    %v1622 = vsel %vm59, %v1620, %v1602
    %v1623 = vsel %vm60, %v1621, %v1617
    %1625 = vrot.lane.b32.xlu0 %v1538, 64
    %v1626 = vpop.permute.xlu0 %1625
    %v1628 = vmul.f32 %v1622, %v1626
    %v1629 = vmul.f32 %v1622, %v1623
    %1631 = vrot.lane.b32.xlu0 %v1629, 64
    %v1632 = vpop.permute.xlu0 %1631
    %v1634 = vadd.f32 %v1628, %v1632
    %v1635 = vtanh.pop %v1634
    %v1636 = vmul.f32 %v1623, %v1635
    %1638 = vrot.lane.b32.xlu0 %v1636, 64
    %v1639 = vpop.permute.xlu0 %1638
    %v1641 = vsel %vm66, %v1639, %v1533
    %1643 = vrot.lane.b32.xlu0 %v1634, 64
    %v1644 = vpop.permute.xlu0 %1643
    %v1646 = vsel %vm66, %v1644, %v1538
    %v1647 = vsel %vm66, %v1639, 0.0
    %1648 = vst.msk [vmem:[#allocation3 + $0x10] sm:$0xff] %vm378, %v1647
    %1649 = vst.msk [vmem:[#allocation3 + $0x28] sm:$0xff] %vm380, %v1647
    %v1650 = vpack.c.bf16 %v1641, %v1641
    %v1652 = vsel %vm151, %v1650, 0
    %1654 = vmatpush.bf16.msra.mxu0 0
    %1655 = vmatpush.bf16.msra.mxu0 0
    %1656 = vmatpush.bf16.msra.mxu0 0
    %1657 = vmatpush.bf16.msra.mxu0 0
    %1658 = vmatpush.bf16.msra.mxu0 %v1325
    %1659 = vmatpush.bf16.msra.mxu0 %v1323
    %1660 = vmatpush.bf16.msra.mxu0 %v1321
    %1661 = vmatpush.bf16.msra.mxu0 %v1319
    %1662 = vmatmul.bf16.gmra.mxu0 %v1652
    %v1663 = vpop.f32.mrf.mxu0
    %v1664 = vadd.f32 0.0, %v1663
    %v1665 = vpop.f32.mrf.mxu0
    %1666 = vdwg.mxu0
    %1667 = vmatpush.bf16.msra.mxu0 0
    %1668 = vmatpush.bf16.msra.mxu0 0
    %1669 = vmatpush.bf16.msra.mxu0 0
    %1670 = vmatpush.bf16.msra.mxu0 0
    %1671 = vmatpush.bf16.msra.mxu0 %v1326
    %1672 = vmatpush.bf16.msra.mxu0 %v1324
    %1673 = vmatpush.bf16.msra.mxu0 %v1322
    %1674 = vmatpush.bf16.msra.mxu0 %v1320
    %1675 = vmatmul.bf16.gmra.mxu0 %v1652
    %v1676 = vpop.f32.mrf.mxu0
    %v1677 = vadd.f32 0.0, %v1676
    %v1678 = vpop.f32.mrf.mxu0
    %1679 = vdwg.mxu0
    %v1680 = vld [vmem:[#allocation4 + $0x30] sm:$0xff]
    %v1681 = vld [vmem:[#allocation4 + $0x38] sm:$0xff]
    %v1682 = vld [vmem:[#allocation4 + $0x40] sm:$0xff]
    %v1683 = vld [vmem:[#allocation4 + $0x48] sm:$0xff]
    %v1684 = vsel %vm53, %v1680, %v1682
    %v1685 = vsel %vm54, %v1681, %v1683
    %v1686 = vadd.f32 %v1684, %v1664
    %v1687 = vadd.f32 %v1685, %v1677
    %v1688 = vxor.u32 %v1686, 2147483648
    %v1689 = vxor.u32 %v1687, 2147483648
    %v1690 = vmul.f32 %v1688, 1.442695
    %v1691 = vpow.pop %v1690
    %v1692 = vmul.f32 %v1689, 1.442695
    %v1693 = vpow.pop %v1692
    %v1694 = vadd.f32 %v1691, 1.0
    %v1695 = vadd.f32 %v1693, 1.0
    %v1696 = vrcp.pop %v1694
    %v1697 = vmul.f32 %v1694, %v1696
    %v1698 = vsub.f32 1.0, %v1697
    %v1699 = vmul.f32 %v1696, %v1698
    %v1700 = vadd.f32 %v1696, %v1699
    %vm1701 = vweird.f32 %v1694
    %vm1702 = vweird.f32 %v1696
    %vm1703 = vmor %vm1701, %vm1702
    %v1704 = vsel %vm1703, %v1696, %v1700
    %v1705 = vand.u32 2147483647, %v1694
    %vm1706 = vcmp.eq.f32.partialorder %v1705, 8.507059e+37
    %v1707 = vand.u32 %v1694, 2147483648
    %v1708 = vor.u32 1.1754944e-38, %v1707
    %v1709 = vsel %vm1706, %v1708, %v1704
    %v1710 = vmul.f32 1.0, %v1709
    %v1711 = vrcp.pop %v1695
    %v1712 = vmul.f32 %v1695, %v1711
    %v1713 = vsub.f32 1.0, %v1712
    %v1714 = vmul.f32 %v1711, %v1713
    %v1715 = vadd.f32 %v1711, %v1714
    %vm1716 = vweird.f32 %v1695
    %vm1717 = vweird.f32 %v1711
    %vm1718 = vmor %vm1716, %vm1717
    %v1719 = vsel %vm1718, %v1711, %v1715
    %v1720 = vand.u32 2147483647, %v1695
    %vm1721 = vcmp.eq.f32.partialorder %v1720, 8.507059e+37
    %v1722 = vand.u32 %v1695, 2147483648
    %v1723 = vor.u32 1.1754944e-38, %v1722
    %v1724 = vsel %vm1721, %v1723, %v1719
    %v1725 = vmul.f32 1.0, %v1724
    %v1726 = vmul.f32 %v1710, 2.0
    %v1727 = vmul.f32 %v1725, 2.0
    %v1728 = vsub.f32 %v1726, 1.0
    %v1729 = vsub.f32 %v1727, 1.0
    %v1730 = vsel %vm59, %v1728, %v1710
    %v1731 = vsel %vm60, %v1729, %v1725
    %1733 = vrot.lane.b32.xlu0 %v1646, 64
    %v1734 = vpop.permute.xlu0 %1733
    %v1736 = vmul.f32 %v1730, %v1734
    %v1737 = vmul.f32 %v1730, %v1731
    %1739 = vrot.lane.b32.xlu0 %v1737, 64
    %v1740 = vpop.permute.xlu0 %1739
    %v1742 = vadd.f32 %v1736, %v1740
    %v1743 = vtanh.pop %v1742
    %v1744 = vmul.f32 %v1731, %v1743
    %1746 = vrot.lane.b32.xlu0 %v1744, 64
    %v1747 = vpop.permute.xlu0 %1746
    %v1749 = vsel %vm68, %v1747, %v1641
    %1751 = vrot.lane.b32.xlu0 %v1742, 64
    %v1752 = vpop.permute.xlu0 %1751
    %v1754 = vsel %vm68, %v1752, %v1646
    %v1755 = vsel %vm68, %v1747, 0.0
    %1756 = vst.msk [vmem:[#allocation3 + $0x18] sm:$0xff] %vm378, %v1755
    %1757 = vst.msk [vmem:[#allocation3 + $0x20] sm:$0xff] %vm380, %v1755
    %v1758 = vpack.c.bf16 %v1749, %v1749
    %v1760 = vsel %vm151, %v1758, 0
    %1762 = vmatpush.bf16.msra.mxu0 0
    %1763 = vmatpush.bf16.msra.mxu0 0
    %1764 = vmatpush.bf16.msra.mxu0 0
    %1765 = vmatpush.bf16.msra.mxu0 0
    %1766 = vmatpush.bf16.msra.mxu0 %v1325
    %1767 = vmatpush.bf16.msra.mxu0 %v1323
    %1768 = vmatpush.bf16.msra.mxu0 %v1321
    %1769 = vmatpush.bf16.msra.mxu0 %v1319
    %1770 = vmatmul.bf16.gmra.mxu0 %v1760
    %v1771 = vpop.f32.mrf.mxu0
    %v1772 = vadd.f32 0.0, %v1771
    %v1773 = vpop.f32.mrf.mxu0
    %1774 = vdwg.mxu0
    %1775 = vmatpush.bf16.msra.mxu0 0
    %1776 = vmatpush.bf16.msra.mxu0 0
    %1777 = vmatpush.bf16.msra.mxu0 0
    %1778 = vmatpush.bf16.msra.mxu0 0
    %1779 = vmatpush.bf16.msra.mxu0 %v1326
    %1780 = vmatpush.bf16.msra.mxu0 %v1324
    %1781 = vmatpush.bf16.msra.mxu0 %v1322
    %1782 = vmatpush.bf16.msra.mxu0 %v1320
    %1783 = vmatmul.bf16.gmra.mxu0 %v1760
    %v1784 = vpop.f32.mrf.mxu0
    %v1785 = vadd.f32 0.0, %v1784
    %v1786 = vpop.f32.mrf.mxu0
    %1787 = vdwg.mxu0
    %v1788 = vld [vmem:[#allocation4 + $0x40] sm:$0xff]
    %v1789 = vld [vmem:[#allocation4 + $0x48] sm:$0xff]
    %v1790 = vld [vmem:[#allocation4 + $0x30] sm:$0xff]
    %v1791 = vld [vmem:[#allocation4 + $0x38] sm:$0xff]
    %v1792 = vsel %vm53, %v1788, %v1790
    %v1793 = vsel %vm54, %v1789, %v1791
    %v1794 = vadd.f32 %v1792, %v1772
    %v1795 = vadd.f32 %v1793, %v1785
    %v1796 = vxor.u32 %v1794, 2147483648
    %v1797 = vxor.u32 %v1795, 2147483648
    %v1798 = vmul.f32 %v1796, 1.442695
    %v1799 = vpow.pop %v1798
    %v1800 = vmul.f32 %v1797, 1.442695
    %v1801 = vpow.pop %v1800
    %v1802 = vadd.f32 %v1799, 1.0
    %v1803 = vadd.f32 %v1801, 1.0
    %v1804 = vrcp.pop %v1802
    %v1805 = vmul.f32 %v1802, %v1804
    %v1806 = vsub.f32 1.0, %v1805
    %v1807 = vmul.f32 %v1804, %v1806
    %v1808 = vadd.f32 %v1804, %v1807
    %vm1809 = vweird.f32 %v1802
    %vm1810 = vweird.f32 %v1804
    %vm1811 = vmor %vm1809, %vm1810
    %v1812 = vsel %vm1811, %v1804, %v1808
    %v1813 = vand.u32 2147483647, %v1802
    %vm1814 = vcmp.eq.f32.partialorder %v1813, 8.507059e+37
    %v1815 = vand.u32 %v1802, 2147483648
    %v1816 = vor.u32 1.1754944e-38, %v1815
    %v1817 = vsel %vm1814, %v1816, %v1812
    %v1818 = vmul.f32 1.0, %v1817
    %v1819 = vrcp.pop %v1803
    %v1820 = vmul.f32 %v1803, %v1819
    %v1821 = vsub.f32 1.0, %v1820
    %v1822 = vmul.f32 %v1819, %v1821
    %v1823 = vadd.f32 %v1819, %v1822
    %vm1824 = vweird.f32 %v1803
    %vm1825 = vweird.f32 %v1819
    %vm1826 = vmor %vm1824, %vm1825
    %v1827 = vsel %vm1826, %v1819, %v1823
    %v1828 = vand.u32 2147483647, %v1803
    %vm1829 = vcmp.eq.f32.partialorder %v1828, 8.507059e+37
    %v1830 = vand.u32 %v1803, 2147483648
    %v1831 = vor.u32 1.1754944e-38, %v1830
    %v1832 = vsel %vm1829, %v1831, %v1827
    %v1833 = vmul.f32 1.0, %v1832
    %v1834 = vmul.f32 %v1818, 2.0
    %v1835 = vmul.f32 %v1833, 2.0
    %v1836 = vsub.f32 %v1834, 1.0
    %v1837 = vsub.f32 %v1835, 1.0
    %v1838 = vsel %vm59, %v1836, %v1818
    %v1839 = vsel %vm60, %v1837, %v1833
    %1841 = vrot.lane.b32.xlu0 %v1754, 64
    %v1842 = vpop.permute.xlu0 %1841
    %v1844 = vmul.f32 %v1838, %v1842
    %v1845 = vmul.f32 %v1838, %v1839
    %1847 = vrot.lane.b32.xlu0 %v1845, 64
    %v1848 = vpop.permute.xlu0 %1847
    %v1850 = vadd.f32 %v1844, %v1848
    %v1851 = vtanh.pop %v1850
    %v1852 = vmul.f32 %v1839, %v1851
    %1854 = vrot.lane.b32.xlu0 %v1852, 64
    %v1855 = vpop.permute.xlu0 %1854
    %v1857 = vsel %vm70, %v1855, %v1749
    %1859 = vrot.lane.b32.xlu0 %v1850, 64
    %v1860 = vpop.permute.xlu0 %1859
    %v1862 = vsel %vm70, %v1860, %v1754
    %v1863 = vsel %vm70, %v1855, 0.0
    %1864 = vst.msk [vmem:[#allocation3 + $0x20] sm:$0xff] %vm378, %v1863
    %1865 = vst.msk [vmem:[#allocation3 + $0x18] sm:$0xff] %vm380, %v1863
    %v1866 = vpack.c.bf16 %v1857, %v1857
    %v1868 = vsel %vm151, %v1866, 0
    %1870 = vmatpush.bf16.msra.mxu0 0
    %1871 = vmatpush.bf16.msra.mxu0 0
    %1872 = vmatpush.bf16.msra.mxu0 0
    %1873 = vmatpush.bf16.msra.mxu0 0
    %1874 = vmatpush.bf16.msra.mxu0 %v1325
    %1875 = vmatpush.bf16.msra.mxu0 %v1323
    %1876 = vmatpush.bf16.msra.mxu0 %v1321
    %1877 = vmatpush.bf16.msra.mxu0 %v1319
    %1878 = vmatmul.bf16.gmra.mxu0 %v1868
    %v1879 = vpop.f32.mrf.mxu0
    %v1880 = vadd.f32 0.0, %v1879
    %v1881 = vpop.f32.mrf.mxu0
    %1882 = vdwg.mxu0
    %1883 = vmatpush.bf16.msra.mxu0 0
    %1884 = vmatpush.bf16.msra.mxu0 0
    %1885 = vmatpush.bf16.msra.mxu0 0
    %1886 = vmatpush.bf16.msra.mxu0 0
    %1887 = vmatpush.bf16.msra.mxu0 %v1326
    %1888 = vmatpush.bf16.msra.mxu0 %v1324
    %1889 = vmatpush.bf16.msra.mxu0 %v1322
    %1890 = vmatpush.bf16.msra.mxu0 %v1320
    %1891 = vmatmul.bf16.gmra.mxu0 %v1868
    %v1892 = vpop.f32.mrf.mxu0
    %v1893 = vadd.f32 0.0, %v1892
    %v1894 = vpop.f32.mrf.mxu0
    %1895 = vdwg.mxu0
    %v1896 = vld [vmem:[#allocation4 + $0x50] sm:$0xff]
    %v1897 = vld [vmem:[#allocation4 + $0x58] sm:$0xff]
    %v1898 = vld [vmem:[#allocation4 + $0x20] sm:$0xff]
    %v1899 = vld [vmem:[#allocation4 + $0x28] sm:$0xff]
    %v1900 = vsel %vm53, %v1896, %v1898
    %v1901 = vsel %vm54, %v1897, %v1899
    %v1902 = vadd.f32 %v1900, %v1880
    %v1903 = vadd.f32 %v1901, %v1893
    %v1904 = vxor.u32 %v1902, 2147483648
    %v1905 = vxor.u32 %v1903, 2147483648
    %v1906 = vmul.f32 %v1904, 1.442695
    %v1907 = vpow.pop %v1906
    %v1908 = vmul.f32 %v1905, 1.442695
    %v1909 = vpow.pop %v1908
    %v1910 = vadd.f32 %v1907, 1.0
    %v1911 = vadd.f32 %v1909, 1.0
    %v1912 = vrcp.pop %v1910
    %v1913 = vmul.f32 %v1910, %v1912
    %v1914 = vsub.f32 1.0, %v1913
    %v1915 = vmul.f32 %v1912, %v1914
    %v1916 = vadd.f32 %v1912, %v1915
    %vm1917 = vweird.f32 %v1910
    %vm1918 = vweird.f32 %v1912
    %vm1919 = vmor %vm1917, %vm1918
    %v1920 = vsel %vm1919, %v1912, %v1916
    %v1921 = vand.u32 2147483647, %v1910
    %vm1922 = vcmp.eq.f32.partialorder %v1921, 8.507059e+37
    %v1923 = vand.u32 %v1910, 2147483648
    %v1924 = vor.u32 1.1754944e-38, %v1923
    %v1925 = vsel %vm1922, %v1924, %v1920
    %v1926 = vmul.f32 1.0, %v1925
    %v1927 = vrcp.pop %v1911
    %v1928 = vmul.f32 %v1911, %v1927
    %v1929 = vsub.f32 1.0, %v1928
    %v1930 = vmul.f32 %v1927, %v1929
    %v1931 = vadd.f32 %v1927, %v1930
    %vm1932 = vweird.f32 %v1911
    %vm1933 = vweird.f32 %v1927
    %vm1934 = vmor %vm1932, %vm1933
    %v1935 = vsel %vm1934, %v1927, %v1931
    %v1936 = vand.u32 2147483647, %v1911
    %vm1937 = vcmp.eq.f32.partialorder %v1936, 8.507059e+37
    %v1938 = vand.u32 %v1911, 2147483648
    %v1939 = vor.u32 1.1754944e-38, %v1938
    %v1940 = vsel %vm1937, %v1939, %v1935
    %v1941 = vmul.f32 1.0, %v1940
    %v1942 = vmul.f32 %v1926, 2.0
    %v1943 = vmul.f32 %v1941, 2.0
    %v1944 = vsub.f32 %v1942, 1.0
    %v1945 = vsub.f32 %v1943, 1.0
    %v1946 = vsel %vm59, %v1944, %v1926
    %v1947 = vsel %vm60, %v1945, %v1941
    %1949 = vrot.lane.b32.xlu0 %v1862, 64
    %v1950 = vpop.permute.xlu0 %1949
    %v1952 = vmul.f32 %v1946, %v1950
    %v1953 = vmul.f32 %v1946, %v1947
    %1955 = vrot.lane.b32.xlu0 %v1953, 64
    %v1956 = vpop.permute.xlu0 %1955
    %v1958 = vadd.f32 %v1952, %v1956
    %v1959 = vtanh.pop %v1958
    %v1960 = vmul.f32 %v1947, %v1959
    %1962 = vrot.lane.b32.xlu0 %v1960, 64
    %v1963 = vpop.permute.xlu0 %1962
    %v1965 = vsel %vm72, %v1963, %v1857
    %1967 = vrot.lane.b32.xlu0 %v1958, 64
    %v1968 = vpop.permute.xlu0 %1967
    %v1970 = vsel %vm72, %v1968, %v1862
    %v1971 = vsel %vm72, %v1963, 0.0
    %1972 = vst.msk [vmem:[#allocation3 + $0x28] sm:$0xff] %vm378, %v1971
    %1973 = vst.msk [vmem:[#allocation3 + $0x10] sm:$0xff] %vm380, %v1971
    %v1974 = vpack.c.bf16 %v1965, %v1965
    %v1976 = vsel %vm151, %v1974, 0
    %1978 = vmatpush.bf16.msra.mxu0 0
    %1979 = vmatpush.bf16.msra.mxu0 0
    %1980 = vmatpush.bf16.msra.mxu0 0
    %1981 = vmatpush.bf16.msra.mxu0 0
    %1982 = vmatpush.bf16.msra.mxu0 %v1325
    %1983 = vmatpush.bf16.msra.mxu0 %v1323
    %1984 = vmatpush.bf16.msra.mxu0 %v1321
    %1985 = vmatpush.bf16.msra.mxu0 %v1319
    %1986 = vmatmul.bf16.gmra.mxu0 %v1976
    %v1987 = vpop.f32.mrf.mxu0
    %v1988 = vadd.f32 0.0, %v1987
    %v1989 = vpop.f32.mrf.mxu0
    %1990 = vdwg.mxu0
    %1991 = vmatpush.bf16.msra.mxu0 0
    %1992 = vmatpush.bf16.msra.mxu0 0
    %1993 = vmatpush.bf16.msra.mxu0 0
    %1994 = vmatpush.bf16.msra.mxu0 0
    %1995 = vmatpush.bf16.msra.mxu0 %v1326
    %1996 = vmatpush.bf16.msra.mxu0 %v1324
    %1997 = vmatpush.bf16.msra.mxu0 %v1322
    %1998 = vmatpush.bf16.msra.mxu0 %v1320
    %1999 = vmatmul.bf16.gmra.mxu0 %v1976
    %v2000 = vpop.f32.mrf.mxu0
    %v2001 = vadd.f32 0.0, %v2000
    %v2002 = vpop.f32.mrf.mxu0
    %2003 = vdwg.mxu0
    %v2004 = vld [vmem:[#allocation4 + $0x60] sm:$0xff]
    %v2005 = vld [vmem:[#allocation4 + $0x68] sm:$0xff]
    %v2006 = vld [vmem:[#allocation4 + $0x10] sm:$0xff]
    %v2007 = vld [vmem:[#allocation4 + $0x18] sm:$0xff]
    %v2008 = vsel %vm53, %v2004, %v2006
    %v2009 = vsel %vm54, %v2005, %v2007
    %v2010 = vadd.f32 %v2008, %v1988
    %v2011 = vadd.f32 %v2009, %v2001
    %v2012 = vxor.u32 %v2010, 2147483648
    %v2013 = vxor.u32 %v2011, 2147483648
    %v2014 = vmul.f32 %v2012, 1.442695
    %v2015 = vpow.pop %v2014
    %v2016 = vmul.f32 %v2013, 1.442695
    %v2017 = vpow.pop %v2016
    %v2018 = vadd.f32 %v2015, 1.0
    %v2019 = vadd.f32 %v2017, 1.0
    %v2020 = vrcp.pop %v2018
    %v2021 = vmul.f32 %v2018, %v2020
    %v2022 = vsub.f32 1.0, %v2021
    %v2023 = vmul.f32 %v2020, %v2022
    %v2024 = vadd.f32 %v2020, %v2023
    %vm2025 = vweird.f32 %v2018
    %vm2026 = vweird.f32 %v2020
    %vm2027 = vmor %vm2025, %vm2026
    %v2028 = vsel %vm2027, %v2020, %v2024
    %v2029 = vand.u32 2147483647, %v2018
    %vm2030 = vcmp.eq.f32.partialorder %v2029, 8.507059e+37
    %v2031 = vand.u32 %v2018, 2147483648
    %v2032 = vor.u32 1.1754944e-38, %v2031
    %v2033 = vsel %vm2030, %v2032, %v2028
    %v2034 = vmul.f32 1.0, %v2033
    %v2035 = vrcp.pop %v2019
    %v2036 = vmul.f32 %v2019, %v2035
    %v2037 = vsub.f32 1.0, %v2036
    %v2038 = vmul.f32 %v2035, %v2037
    %v2039 = vadd.f32 %v2035, %v2038
    %vm2040 = vweird.f32 %v2019
    %vm2041 = vweird.f32 %v2035
    %vm2042 = vmor %vm2040, %vm2041
    %v2043 = vsel %vm2042, %v2035, %v2039
    %v2044 = vand.u32 2147483647, %v2019
    %vm2045 = vcmp.eq.f32.partialorder %v2044, 8.507059e+37
    %v2046 = vand.u32 %v2019, 2147483648
    %v2047 = vor.u32 1.1754944e-38, %v2046
    %v2048 = vsel %vm2045, %v2047, %v2043
    %v2049 = vmul.f32 1.0, %v2048
    %v2050 = vmul.f32 %v2034, 2.0
    %v2051 = vmul.f32 %v2049, 2.0
    %v2052 = vsub.f32 %v2050, 1.0
    %v2053 = vsub.f32 %v2051, 1.0
    %v2054 = vsel %vm59, %v2052, %v2034
    %v2055 = vsel %vm60, %v2053, %v2049
    %2057 = vrot.lane.b32.xlu0 %v1970, 64
    %v2058 = vpop.permute.xlu0 %2057
    %v2060 = vmul.f32 %v2054, %v2058
    %v2061 = vmul.f32 %v2054, %v2055
    %2063 = vrot.lane.b32.xlu0 %v2061, 64
    %v2064 = vpop.permute.xlu0 %2063
    %v2066 = vadd.f32 %v2060, %v2064
    %v2067 = vtanh.pop %v2066
    %v2068 = vmul.f32 %v2055, %v2067
    %2070 = vrot.lane.b32.xlu0 %v2068, 64
    %v2071 = vpop.permute.xlu0 %2070
    %v2073 = vsel %vm74, %v2071, %v1965
    %2075 = vrot.lane.b32.xlu0 %v2066, 64
    %v2076 = vpop.permute.xlu0 %2075
    %v2078 = vsel %vm74, %v2076, %v1970
    %v2079 = vsel %vm74, %v2071, 0.0
    %2080 = vst.msk [vmem:[#allocation3 + $0x30] sm:$0xff] %vm378, %v2079
    %2081 = vst.msk [vmem:[#allocation3 + $0x8] sm:$0xff] %vm380, %v2079
    %v2082 = vpack.c.bf16 %v2073, %v2073
    %v2084 = vsel %vm151, %v2082, 0
    %2086 = vmatpush.bf16.msra.mxu0 0
    %2087 = vmatpush.bf16.msra.mxu0 0
    %2088 = vmatpush.bf16.msra.mxu0 0
    %2089 = vmatpush.bf16.msra.mxu0 0
    %2090 = vmatpush.bf16.msra.mxu0 %v1325
    %2091 = vmatpush.bf16.msra.mxu0 %v1323
    %2092 = vmatpush.bf16.msra.mxu0 %v1321
    %2093 = vmatpush.bf16.msra.mxu0 %v1319
    %2094 = vmatmul.bf16.gmra.mxu0 %v2084
    %v2095 = vpop.f32.mrf.mxu0
    %v2096 = vadd.f32 0.0, %v2095
    %v2097 = vpop.f32.mrf.mxu0
    %2098 = vdwg.mxu0
    %2099 = vmatpush.bf16.msra.mxu0 0
    %2100 = vmatpush.bf16.msra.mxu0 0
    %2101 = vmatpush.bf16.msra.mxu0 0
    %2102 = vmatpush.bf16.msra.mxu0 0
    %2103 = vmatpush.bf16.msra.mxu0 %v1326
    %2104 = vmatpush.bf16.msra.mxu0 %v1324
    %2105 = vmatpush.bf16.msra.mxu0 %v1322
    %2106 = vmatpush.bf16.msra.mxu0 %v1320
    %2107 = vmatmul.bf16.gmra.mxu0 %v2084
    %v2108 = vpop.f32.mrf.mxu0
    %v2109 = vadd.f32 0.0, %v2108
    %v2110 = vpop.f32.mrf.mxu0
    %2111 = vdwg.mxu0
    %v2112 = vld [vmem:[#allocation4 + $0x70] sm:$0xff]
    %v2113 = vld [vmem:[#allocation4 + $0x78] sm:$0xff]
    %v2114 = vld [vmem:[#allocation4] sm:$0xff]
    %v2115 = vld [vmem:[#allocation4 + $0x8] sm:$0xff]
    %v2116 = vsel %vm53, %v2112, %v2114
    %v2117 = vsel %vm54, %v2113, %v2115
    %v2118 = vadd.f32 %v2116, %v2096
    %v2119 = vadd.f32 %v2117, %v2109
    %v2120 = vxor.u32 %v2118, 2147483648
    %v2121 = vxor.u32 %v2119, 2147483648
    %v2122 = vmul.f32 %v2120, 1.442695
    %v2123 = vpow.pop %v2122
    %v2124 = vmul.f32 %v2121, 1.442695
    %v2125 = vpow.pop %v2124
    %v2126 = vadd.f32 %v2123, 1.0
    %v2127 = vadd.f32 %v2125, 1.0
    %v2128 = vrcp.pop %v2126
    %v2129 = vmul.f32 %v2126, %v2128
    %v2130 = vsub.f32 1.0, %v2129
    %v2131 = vmul.f32 %v2128, %v2130
    %v2132 = vadd.f32 %v2128, %v2131
    %vm2133 = vweird.f32 %v2126
    %vm2134 = vweird.f32 %v2128
    %vm2135 = vmor %vm2133, %vm2134
    %v2136 = vsel %vm2135, %v2128, %v2132
    %v2137 = vand.u32 2147483647, %v2126
    %vm2138 = vcmp.eq.f32.partialorder %v2137, 8.507059e+37
    %v2139 = vand.u32 %v2126, 2147483648
    %v2140 = vor.u32 1.1754944e-38, %v2139
    %v2141 = vsel %vm2138, %v2140, %v2136
    %v2142 = vmul.f32 1.0, %v2141
    %v2143 = vrcp.pop %v2127
    %v2144 = vmul.f32 %v2127, %v2143
    %v2145 = vsub.f32 1.0, %v2144
    %v2146 = vmul.f32 %v2143, %v2145
    %v2147 = vadd.f32 %v2143, %v2146
    %vm2148 = vweird.f32 %v2127
    %vm2149 = vweird.f32 %v2143
    %vm2150 = vmor %vm2148, %vm2149
    %v2151 = vsel %vm2150, %v2143, %v2147
    %v2152 = vand.u32 2147483647, %v2127
    %vm2153 = vcmp.eq.f32.partialorder %v2152, 8.507059e+37
    %v2154 = vand.u32 %v2127, 2147483648
    %v2155 = vor.u32 1.1754944e-38, %v2154
    %v2156 = vsel %vm2153, %v2155, %v2151
    %v2157 = vmul.f32 1.0, %v2156
    %v2158 = vmul.f32 %v2142, 2.0
    %v2159 = vmul.f32 %v2157, 2.0
    %v2160 = vsub.f32 %v2158, 1.0
    %v2161 = vsub.f32 %v2159, 1.0
    %v2162 = vsel %vm59, %v2160, %v2142
    %v2163 = vsel %vm60, %v2161, %v2157
    %2165 = vrot.lane.b32.xlu0 %v2078, 64
    %v2166 = vpop.permute.xlu0 %2165
    %v2168 = vmul.f32 %v2162, %v2166
    %v2169 = vmul.f32 %v2162, %v2163
    %2171 = vrot.lane.b32.xlu0 %v2169, 64
    %v2172 = vpop.permute.xlu0 %2171
    %v2174 = vadd.f32 %v2168, %v2172
    %v2175 = vtanh.pop %v2174
    %v2176 = vmul.f32 %v2163, %v2175
    %2178 = vrot.lane.b32.xlu0 %v2176, 64
    %v2179 = vpop.permute.xlu0 %2178
    %v2181 = vsel %vm76, %v2179, 0.0
    %2182 = vst.msk [vmem:[#allocation3 + $0x38] sm:$0xff] %vm378, %v2181
    %2183 = vst.msk [vmem:[#allocation3] sm:$0xff] %vm380, %v2181
    %s2184 = scalar_lea.vmem %s2, 128
    %v2185 = vld [vmem:[%s2184] sm:$0xff]
    %v2186 = vld [vmem:[%s2184 + $0x8] sm:$0xff]
    %v2187 = vld [vmem:[%s2184 + $0x10] sm:$0xff]
    %v2188 = vld [vmem:[%s2184 + $0x18] sm:$0xff]
    %v2189 = vld [vmem:[%s2184 + $0x20] sm:$0xff]
    %v2190 = vld [vmem:[%s2184 + $0x28] sm:$0xff]
    %v2191 = vld [vmem:[%s2184 + $0x30] sm:$0xff]
    %v2192 = vld [vmem:[%s2184 + $0x38] sm:$0xff]
    %s2193 = scalar_lea.vmem [#allocation5], 128
    %v2194 = vld [vmem:[%s2193] sm:$0xff]
    %v2195 = vld [vmem:[%s2193 + $0x8] sm:$0xff]
    %v2196 = vld [vmem:[%s2193 + $0x10] sm:$0xff]
    %v2197 = vld [vmem:[%s2193 + $0x18] sm:$0xff]
    %v2198 = vld [vmem:[%s2193 + $0x20] sm:$0xff]
    %v2199 = vld [vmem:[%s2193 + $0x28] sm:$0xff]
    %v2200 = vld [vmem:[%s2193 + $0x30] sm:$0xff]
    %v2201 = vld [vmem:[%s2193 + $0x38] sm:$0xff]
    %s2202 = scalar_lea.vmem %s4, 4
    %v2203 = vld [vmem:[%s2202] sm:$0x3]
    %v2204 = vld [vmem:[#allocation3] sm:$0xff]
    %v2205 = vld [vmem:[#allocation3 + $0x8] sm:$0xff]
    %v2206 = vld [vmem:[#allocation3 + $0x10] sm:$0xff]
    %v2207 = vld [vmem:[#allocation3 + $0x18] sm:$0xff]
    %v2208 = vld [vmem:[#allocation3 + $0x20] sm:$0xff]
    %v2209 = vld [vmem:[#allocation3 + $0x28] sm:$0xff]
    %v2210 = vld [vmem:[#allocation3 + $0x30] sm:$0xff]
    %v2211 = vld [vmem:[#allocation3 + $0x38] sm:$0xff]
    %v2212 = vpack.c.bf16 %v2205, %v2204
    %v2213 = vpack.c.bf16 %v2207, %v2206
    %v2214 = vpack.c.bf16 %v2209, %v2208
    %v2215 = vpack.c.bf16 %v2211, %v2210
    %v2217 = vperm.slane %v2203, 0
    %v2218 = vperm.slane %v2203, 1
    %v2229 = vunpack.c.l.b16 %v2185
    %v2230 = vunpack.c.h.b16 %v2185
    %v2231 = vunpack.c.l.b16 %v2186
    %v2232 = vunpack.c.h.b16 %v2186
    %v2233 = vunpack.c.l.b16 %v2187
    %v2234 = vunpack.c.h.b16 %v2187
    %v2235 = vunpack.c.l.b16 %v2188
    %v2236 = vunpack.c.h.b16 %v2188
    %v2237 = vunpack.c.l.b16 %v2189
    %v2238 = vunpack.c.h.b16 %v2189
    %v2239 = vunpack.c.l.b16 %v2190
    %v2240 = vunpack.c.h.b16 %v2190
    %v2241 = vunpack.c.l.b16 %v2191
    %v2242 = vunpack.c.h.b16 %v2191
    %v2243 = vunpack.c.l.b16 %v2192
    %v2244 = vunpack.c.h.b16 %v2192
    %v2245 = vpack.c.b16 %v2231, %v2229
    %v2246 = vpack.c.b16 %v2232, %v2230
    %v2247 = vpack.c.b16 %v2235, %v2233
    %v2248 = vpack.c.b16 %v2236, %v2234
    %v2249 = vpack.c.b16 %v2239, %v2237
    %v2250 = vpack.c.b16 %v2240, %v2238
    %v2251 = vpack.c.b16 %v2243, %v2241
    %v2252 = vpack.c.b16 %v2244, %v2242
    %v2262 = vsel %vm151, %v2212, 0
    %v2265 = vsel %vm151, %v2213, 0
    %v2268 = vsel %vm151, %v2214, 0
    %v2271 = vsel %vm151, %v2215, 0
    %2273 = vmatpush.bf16.msra.mxu0 0
    %2274 = vmatpush.bf16.msra.mxu0 0
    %2275 = vmatpush.bf16.msra.mxu0 0
    %2276 = vmatpush.bf16.msra.mxu0 0
    %2277 = vmatpush.bf16.msra.mxu0 %v2251
    %2278 = vmatpush.bf16.msra.mxu0 %v2249
    %2279 = vmatpush.bf16.msra.mxu0 %v2247
    %2280 = vmatpush.bf16.msra.mxu0 %v2245
    %2281 = vmatmul.bf16.gmra.mxu0 %v2262
    %v2282 = vpop.f32.mrf.mxu0
    %v2283 = vadd.f32 %v2217, %v2282
    %v2284 = vpop.f32.mrf.mxu0
    %v2285 = vadd.f32 %v2217, %v2284
    %2286 = vmatmul.bf16.gmra.mxu0 %v2265
    %v2287 = vpop.f32.mrf.mxu0
    %v2288 = vadd.f32 %v2217, %v2287
    %v2289 = vpop.f32.mrf.mxu0
    %v2290 = vadd.f32 %v2217, %v2289
    %2291 = vmatmul.bf16.gmra.mxu0 %v2268
    %v2292 = vpop.f32.mrf.mxu0
    %v2293 = vadd.f32 %v2217, %v2292
    %v2294 = vpop.f32.mrf.mxu0
    %v2295 = vadd.f32 %v2217, %v2294
    %2296 = vmatmul.bf16.gmra.mxu0 %v2271
    %v2297 = vpop.f32.mrf.mxu0
    %v2298 = vadd.f32 %v2217, %v2297
    %v2299 = vpop.f32.mrf.mxu0
    %v2300 = vadd.f32 %v2217, %v2299
    %2301 = vdwg.mxu0
    %2302 = vmatpush.bf16.msra.mxu0 0
    %2303 = vmatpush.bf16.msra.mxu0 0
    %2304 = vmatpush.bf16.msra.mxu0 0
    %2305 = vmatpush.bf16.msra.mxu0 0
    %2306 = vmatpush.bf16.msra.mxu0 %v2252
    %2307 = vmatpush.bf16.msra.mxu0 %v2250
    %2308 = vmatpush.bf16.msra.mxu0 %v2248
    %2309 = vmatpush.bf16.msra.mxu0 %v2246
    %2310 = vmatmul.bf16.gmra.mxu0 %v2262
    %v2311 = vpop.f32.mrf.mxu0
    %v2312 = vadd.f32 %v2218, %v2311
    %v2313 = vpop.f32.mrf.mxu0
    %v2314 = vadd.f32 %v2218, %v2313
    %2315 = vmatmul.bf16.gmra.mxu0 %v2265
    %v2316 = vpop.f32.mrf.mxu0
    %v2317 = vadd.f32 %v2218, %v2316
    %v2318 = vpop.f32.mrf.mxu0
    %v2319 = vadd.f32 %v2218, %v2318
    %2320 = vmatmul.bf16.gmra.mxu0 %v2268
    %v2321 = vpop.f32.mrf.mxu0
    %v2322 = vadd.f32 %v2218, %v2321
    %v2323 = vpop.f32.mrf.mxu0
    %v2324 = vadd.f32 %v2218, %v2323
    %2325 = vmatmul.bf16.gmra.mxu0 %v2271
    %v2326 = vpop.f32.mrf.mxu0
    %v2327 = vadd.f32 %v2218, %v2326
    %v2328 = vpop.f32.mrf.mxu0
    %v2329 = vadd.f32 %v2218, %v2328
    %2330 = vdwg.mxu0
    %2331 = vst [vmem:[#allocation4] sm:$0xff] %v2283
    %2332 = vst [vmem:[#allocation4 + $0x8] sm:$0xff] %v2312
    %2333 = vst [vmem:[#allocation4 + $0x10] sm:$0xff] %v2285
    %2334 = vst [vmem:[#allocation4 + $0x18] sm:$0xff] %v2314
    %2335 = vst [vmem:[#allocation4 + $0x20] sm:$0xff] %v2288
    %2336 = vst [vmem:[#allocation4 + $0x28] sm:$0xff] %v2317
    %2337 = vst [vmem:[#allocation4 + $0x30] sm:$0xff] %v2290
    %2338 = vst [vmem:[#allocation4 + $0x38] sm:$0xff] %v2319
    %2339 = vst [vmem:[#allocation4 + $0x40] sm:$0xff] %v2293
    %2340 = vst [vmem:[#allocation4 + $0x48] sm:$0xff] %v2322
    %2341 = vst [vmem:[#allocation4 + $0x50] sm:$0xff] %v2295
    %2342 = vst [vmem:[#allocation4 + $0x58] sm:$0xff] %v2324
    %2343 = vst [vmem:[#allocation4 + $0x60] sm:$0xff] %v2298
    %2344 = vst [vmem:[#allocation4 + $0x68] sm:$0xff] %v2327
    %2345 = vst [vmem:[#allocation4 + $0x70] sm:$0xff] %v2300
    %2346 = vst [vmem:[#allocation4 + $0x78] sm:$0xff] %v2329
    %v2355 = vunpack.c.l.b16 %v2194
    %v2356 = vunpack.c.h.b16 %v2194
    %v2357 = vunpack.c.l.b16 %v2195
    %v2358 = vunpack.c.h.b16 %v2195
    %v2359 = vunpack.c.l.b16 %v2196
    %v2360 = vunpack.c.h.b16 %v2196
    %v2361 = vunpack.c.l.b16 %v2197
    %v2362 = vunpack.c.h.b16 %v2197
    %v2363 = vunpack.c.l.b16 %v2198
    %v2364 = vunpack.c.h.b16 %v2198
    %v2365 = vunpack.c.l.b16 %v2199
    %v2366 = vunpack.c.h.b16 %v2199
    %v2367 = vunpack.c.l.b16 %v2200
    %v2368 = vunpack.c.h.b16 %v2200
    %v2369 = vunpack.c.l.b16 %v2201
    %v2370 = vunpack.c.h.b16 %v2201
    %v2371 = vpack.c.b16 %v2357, %v2355
    %v2372 = vpack.c.b16 %v2358, %v2356
    %v2373 = vpack.c.b16 %v2361, %v2359
    %v2374 = vpack.c.b16 %v2362, %v2360
    %v2375 = vpack.c.b16 %v2365, %v2363
    %v2376 = vpack.c.b16 %v2366, %v2364
    %v2377 = vpack.c.b16 %v2369, %v2367
    %v2378 = vpack.c.b16 %v2370, %v2368
    %2387 = vmatpush.bf16.msra.mxu0 0
    %2388 = vmatpush.bf16.msra.mxu0 0
    %2389 = vmatpush.bf16.msra.mxu0 0
    %2390 = vmatpush.bf16.msra.mxu0 0
    %2391 = vmatpush.bf16.msra.mxu0 %v2377
    %2392 = vmatpush.bf16.msra.mxu0 %v2375
    %2393 = vmatpush.bf16.msra.mxu0 %v2373
    %2394 = vmatpush.bf16.msra.mxu0 %v2371
    %2395 = vmatmul.bf16.gmra.mxu0 %v279
    %v2396 = vpop.f32.mrf.mxu0
    %v2397 = vadd.f32 0.0, %v2396
    %v2398 = vpop.f32.mrf.mxu0
    %2399 = vdwg.mxu0
    %2400 = vmatpush.bf16.msra.mxu0 0
    %2401 = vmatpush.bf16.msra.mxu0 0
    %2402 = vmatpush.bf16.msra.mxu0 0
    %2403 = vmatpush.bf16.msra.mxu0 0
    %2404 = vmatpush.bf16.msra.mxu0 %v2378
    %2405 = vmatpush.bf16.msra.mxu0 %v2376
    %2406 = vmatpush.bf16.msra.mxu0 %v2374
    %2407 = vmatpush.bf16.msra.mxu0 %v2372
    %2408 = vmatmul.bf16.gmra.mxu0 %v279
    %v2409 = vpop.f32.mrf.mxu0
    %v2410 = vadd.f32 0.0, %v2409
    %v2411 = vpop.f32.mrf.mxu0
    %2412 = vdwg.mxu0
    %v2413 = vld [vmem:[#allocation4] sm:$0xff]
    %v2414 = vld [vmem:[#allocation4 + $0x8] sm:$0xff]
    %v2415 = vld [vmem:[#allocation4 + $0x70] sm:$0xff]
    %v2416 = vld [vmem:[#allocation4 + $0x78] sm:$0xff]
    %v2417 = vsel %vm53, %v2413, %v2415
    %v2418 = vsel %vm54, %v2414, %v2416
    %v2419 = vadd.f32 %v2417, %v2397
    %v2420 = vadd.f32 %v2418, %v2410
    %v2421 = vxor.u32 %v2419, 2147483648
    %v2422 = vxor.u32 %v2420, 2147483648
    %v2423 = vmul.f32 %v2421, 1.442695
    %v2424 = vpow.pop %v2423
    %v2425 = vmul.f32 %v2422, 1.442695
    %v2426 = vpow.pop %v2425
    %v2427 = vadd.f32 %v2424, 1.0
    %v2428 = vadd.f32 %v2426, 1.0
    %v2429 = vrcp.pop %v2427
    %v2430 = vmul.f32 %v2427, %v2429
    %v2431 = vsub.f32 1.0, %v2430
    %v2432 = vmul.f32 %v2429, %v2431
    %v2433 = vadd.f32 %v2429, %v2432
    %vm2434 = vweird.f32 %v2427
    %vm2435 = vweird.f32 %v2429
    %vm2436 = vmor %vm2434, %vm2435
    %v2437 = vsel %vm2436, %v2429, %v2433
    %v2438 = vand.u32 2147483647, %v2427
    %vm2439 = vcmp.eq.f32.partialorder %v2438, 8.507059e+37
    %v2440 = vand.u32 %v2427, 2147483648
    %v2441 = vor.u32 1.1754944e-38, %v2440
    %v2442 = vsel %vm2439, %v2441, %v2437
    %v2443 = vmul.f32 1.0, %v2442
    %v2444 = vrcp.pop %v2428
    %v2445 = vmul.f32 %v2428, %v2444
    %v2446 = vsub.f32 1.0, %v2445
    %v2447 = vmul.f32 %v2444, %v2446
    %v2448 = vadd.f32 %v2444, %v2447
    %vm2449 = vweird.f32 %v2428
    %vm2450 = vweird.f32 %v2444
    %vm2451 = vmor %vm2449, %vm2450
    %v2452 = vsel %vm2451, %v2444, %v2448
    %v2453 = vand.u32 2147483647, %v2428
    %vm2454 = vcmp.eq.f32.partialorder %v2453, 8.507059e+37
    %v2455 = vand.u32 %v2428, 2147483648
    %v2456 = vor.u32 1.1754944e-38, %v2455
    %v2457 = vsel %vm2454, %v2456, %v2452
    %v2458 = vmul.f32 1.0, %v2457
    %v2459 = vmul.f32 %v2443, 2.0
    %v2460 = vmul.f32 %v2458, 2.0
    %v2461 = vsub.f32 %v2459, 1.0
    %v2462 = vsub.f32 %v2460, 1.0
    %v2463 = vsel %vm59, %v2461, %v2443
    %v2464 = vsel %vm60, %v2462, %v2458
    %v2465 = vmul.f32 %v2463, 0.0
    %v2466 = vmul.f32 %v2463, %v2464
    %2468 = vrot.lane.b32.xlu0 %v2466, 64
    %v2469 = vpop.permute.xlu0 %2468
    %v2471 = vadd.f32 %v2465, %v2469
    %v2472 = vtanh.pop %v2471
    %v2473 = vmul.f32 %v2464, %v2472
    %2475 = vrot.lane.b32.xlu0 %v2473, 64
    %v2476 = vpop.permute.xlu0 %2475
    %v2478 = vsel %vm62, %v2476, 0.0
    %2480 = vrot.lane.b32.xlu0 %v2471, 64
    %v2481 = vpop.permute.xlu0 %2480
    %v2483 = vsel %vm62, %v2481, 0.0
    %v2484 = vpack.c.bf16 %v2478, %v2478
    %v2486 = vsel %vm151, %v2484, 0
    %2488 = vmatpush.bf16.msra.mxu0 0
    %2489 = vmatpush.bf16.msra.mxu0 0
    %2490 = vmatpush.bf16.msra.mxu0 0
    %2491 = vmatpush.bf16.msra.mxu0 0
    %2492 = vmatpush.bf16.msra.mxu0 %v2377
    %2493 = vmatpush.bf16.msra.mxu0 %v2375
    %2494 = vmatpush.bf16.msra.mxu0 %v2373
    %2495 = vmatpush.bf16.msra.mxu0 %v2371
    %2496 = vmatmul.bf16.gmra.mxu0 %v2486
    %v2497 = vpop.f32.mrf.mxu0
    %v2498 = vadd.f32 0.0, %v2497
    %v2499 = vpop.f32.mrf.mxu0
    %2500 = vdwg.mxu0
    %2501 = vmatpush.bf16.msra.mxu0 0
    %2502 = vmatpush.bf16.msra.mxu0 0
    %2503 = vmatpush.bf16.msra.mxu0 0
    %2504 = vmatpush.bf16.msra.mxu0 0
    %2505 = vmatpush.bf16.msra.mxu0 %v2378
    %2506 = vmatpush.bf16.msra.mxu0 %v2376
    %2507 = vmatpush.bf16.msra.mxu0 %v2374
    %2508 = vmatpush.bf16.msra.mxu0 %v2372
    %2509 = vmatmul.bf16.gmra.mxu0 %v2486
    %v2510 = vpop.f32.mrf.mxu0
    %v2511 = vadd.f32 0.0, %v2510
    %v2512 = vpop.f32.mrf.mxu0
    %2513 = vdwg.mxu0
    %v2514 = vld [vmem:[#allocation4 + $0x10] sm:$0xff]
    %v2515 = vld [vmem:[#allocation4 + $0x18] sm:$0xff]
    %v2516 = vld [vmem:[#allocation4 + $0x60] sm:$0xff]
    %v2517 = vld [vmem:[#allocation4 + $0x68] sm:$0xff]
    %v2518 = vsel %vm53, %v2514, %v2516
    %v2519 = vsel %vm54, %v2515, %v2517
    %v2520 = vadd.f32 %v2518, %v2498
    %v2521 = vadd.f32 %v2519, %v2511
    %v2522 = vxor.u32 %v2520, 2147483648
    %v2523 = vxor.u32 %v2521, 2147483648
    %v2524 = vmul.f32 %v2522, 1.442695
    %v2525 = vpow.pop %v2524
    %v2526 = vmul.f32 %v2523, 1.442695
    %v2527 = vpow.pop %v2526
    %v2528 = vadd.f32 %v2525, 1.0
    %v2529 = vadd.f32 %v2527, 1.0
    %v2530 = vrcp.pop %v2528
    %v2531 = vmul.f32 %v2528, %v2530
    %v2532 = vsub.f32 1.0, %v2531
    %v2533 = vmul.f32 %v2530, %v2532
    %v2534 = vadd.f32 %v2530, %v2533
    %vm2535 = vweird.f32 %v2528
    %vm2536 = vweird.f32 %v2530
    %vm2537 = vmor %vm2535, %vm2536
    %v2538 = vsel %vm2537, %v2530, %v2534
    %v2539 = vand.u32 2147483647, %v2528
    %vm2540 = vcmp.eq.f32.partialorder %v2539, 8.507059e+37
    %v2541 = vand.u32 %v2528, 2147483648
    %v2542 = vor.u32 1.1754944e-38, %v2541
    %v2543 = vsel %vm2540, %v2542, %v2538
    %v2544 = vmul.f32 1.0, %v2543
    %v2545 = vrcp.pop %v2529
    %v2546 = vmul.f32 %v2529, %v2545
    %v2547 = vsub.f32 1.0, %v2546
    %v2548 = vmul.f32 %v2545, %v2547
    %v2549 = vadd.f32 %v2545, %v2548
    %vm2550 = vweird.f32 %v2529
    %vm2551 = vweird.f32 %v2545
    %vm2552 = vmor %vm2550, %vm2551
    %v2553 = vsel %vm2552, %v2545, %v2549
    %v2554 = vand.u32 2147483647, %v2529
    %vm2555 = vcmp.eq.f32.partialorder %v2554, 8.507059e+37
    %v2556 = vand.u32 %v2529, 2147483648
    %v2557 = vor.u32 1.1754944e-38, %v2556
    %v2558 = vsel %vm2555, %v2557, %v2553
    %v2559 = vmul.f32 1.0, %v2558
    %v2560 = vmul.f32 %v2544, 2.0
    %v2561 = vmul.f32 %v2559, 2.0
    %v2562 = vsub.f32 %v2560, 1.0
    %v2563 = vsub.f32 %v2561, 1.0
    %v2564 = vsel %vm59, %v2562, %v2544
    %v2565 = vsel %vm60, %v2563, %v2559
    %2567 = vrot.lane.b32.xlu0 %v2483, 64
    %v2568 = vpop.permute.xlu0 %2567
    %v2570 = vmul.f32 %v2564, %v2568
    %v2571 = vmul.f32 %v2564, %v2565
    %2573 = vrot.lane.b32.xlu0 %v2571, 64
    %v2574 = vpop.permute.xlu0 %2573
    %v2576 = vadd.f32 %v2570, %v2574
    %v2577 = vtanh.pop %v2576
    %v2578 = vmul.f32 %v2565, %v2577
    %2580 = vrot.lane.b32.xlu0 %v2578, 64
    %v2581 = vpop.permute.xlu0 %2580
    %v2583 = vsel %vm64, %v2581, %v2478
    %2585 = vrot.lane.b32.xlu0 %v2576, 64
    %v2586 = vpop.permute.xlu0 %2585
    %v2588 = vsel %vm64, %v2586, %v2483
    %v2589 = vpack.c.bf16 %v2583, %v2583
    %v2591 = vsel %vm151, %v2589, 0
    %2593 = vmatpush.bf16.msra.mxu0 0
    %2594 = vmatpush.bf16.msra.mxu0 0
    %2595 = vmatpush.bf16.msra.mxu0 0
    %2596 = vmatpush.bf16.msra.mxu0 0
    %2597 = vmatpush.bf16.msra.mxu0 %v2377
    %2598 = vmatpush.bf16.msra.mxu0 %v2375
    %2599 = vmatpush.bf16.msra.mxu0 %v2373
    %2600 = vmatpush.bf16.msra.mxu0 %v2371
    %2601 = vmatmul.bf16.gmra.mxu0 %v2591
    %v2602 = vpop.f32.mrf.mxu0
    %v2603 = vadd.f32 0.0, %v2602
    %v2604 = vpop.f32.mrf.mxu0
    %2605 = vdwg.mxu0
    %2606 = vmatpush.bf16.msra.mxu0 0
    %2607 = vmatpush.bf16.msra.mxu0 0
    %2608 = vmatpush.bf16.msra.mxu0 0
    %2609 = vmatpush.bf16.msra.mxu0 0
    %2610 = vmatpush.bf16.msra.mxu0 %v2378
    %2611 = vmatpush.bf16.msra.mxu0 %v2376
    %2612 = vmatpush.bf16.msra.mxu0 %v2374
    %2613 = vmatpush.bf16.msra.mxu0 %v2372
    %2614 = vmatmul.bf16.gmra.mxu0 %v2591
    %v2615 = vpop.f32.mrf.mxu0
    %v2616 = vadd.f32 0.0, %v2615
    %v2617 = vpop.f32.mrf.mxu0
    %2618 = vdwg.mxu0
    %v2619 = vld [vmem:[#allocation4 + $0x20] sm:$0xff]
    %v2620 = vld [vmem:[#allocation4 + $0x28] sm:$0xff]
    %v2621 = vld [vmem:[#allocation4 + $0x50] sm:$0xff]
    %v2622 = vld [vmem:[#allocation4 + $0x58] sm:$0xff]
    %v2623 = vsel %vm53, %v2619, %v2621
    %v2624 = vsel %vm54, %v2620, %v2622
    %v2625 = vadd.f32 %v2623, %v2603
    %v2626 = vadd.f32 %v2624, %v2616
    %v2627 = vxor.u32 %v2625, 2147483648
    %v2628 = vxor.u32 %v2626, 2147483648
    %v2629 = vmul.f32 %v2627, 1.442695
    %v2630 = vpow.pop %v2629
    %v2631 = vmul.f32 %v2628, 1.442695
    %v2632 = vpow.pop %v2631
    %v2633 = vadd.f32 %v2630, 1.0
    %v2634 = vadd.f32 %v2632, 1.0
    %v2635 = vrcp.pop %v2633
    %v2636 = vmul.f32 %v2633, %v2635
    %v2637 = vsub.f32 1.0, %v2636
    %v2638 = vmul.f32 %v2635, %v2637
    %v2639 = vadd.f32 %v2635, %v2638
    %vm2640 = vweird.f32 %v2633
    %vm2641 = vweird.f32 %v2635
    %vm2642 = vmor %vm2640, %vm2641
    %v2643 = vsel %vm2642, %v2635, %v2639
    %v2644 = vand.u32 2147483647, %v2633
    %vm2645 = vcmp.eq.f32.partialorder %v2644, 8.507059e+37
    %v2646 = vand.u32 %v2633, 2147483648
    %v2647 = vor.u32 1.1754944e-38, %v2646
    %v2648 = vsel %vm2645, %v2647, %v2643
    %v2649 = vmul.f32 1.0, %v2648
    %v2650 = vrcp.pop %v2634
    %v2651 = vmul.f32 %v2634, %v2650
    %v2652 = vsub.f32 1.0, %v2651
    %v2653 = vmul.f32 %v2650, %v2652
    %v2654 = vadd.f32 %v2650, %v2653
    %vm2655 = vweird.f32 %v2634
    %vm2656 = vweird.f32 %v2650
    %vm2657 = vmor %vm2655, %vm2656
    %v2658 = vsel %vm2657, %v2650, %v2654
    %v2659 = vand.u32 2147483647, %v2634
    %vm2660 = vcmp.eq.f32.partialorder %v2659, 8.507059e+37
    %v2661 = vand.u32 %v2634, 2147483648
    %v2662 = vor.u32 1.1754944e-38, %v2661
    %v2663 = vsel %vm2660, %v2662, %v2658
    %v2664 = vmul.f32 1.0, %v2663
    %v2665 = vmul.f32 %v2649, 2.0
    %v2666 = vmul.f32 %v2664, 2.0
    %v2667 = vsub.f32 %v2665, 1.0
    %v2668 = vsub.f32 %v2666, 1.0
    %v2669 = vsel %vm59, %v2667, %v2649
    %v2670 = vsel %vm60, %v2668, %v2664
    %2672 = vrot.lane.b32.xlu0 %v2588, 64
    %v2673 = vpop.permute.xlu0 %2672
    %v2675 = vmul.f32 %v2669, %v2673
    %v2676 = vmul.f32 %v2669, %v2670
    %2678 = vrot.lane.b32.xlu0 %v2676, 64
    %v2679 = vpop.permute.xlu0 %2678
    %v2681 = vadd.f32 %v2675, %v2679
    %v2682 = vtanh.pop %v2681
    %v2683 = vmul.f32 %v2670, %v2682
    %2685 = vrot.lane.b32.xlu0 %v2683, 64
    %v2686 = vpop.permute.xlu0 %2685
    %v2688 = vsel %vm66, %v2686, %v2583
    %2690 = vrot.lane.b32.xlu0 %v2681, 64
    %v2691 = vpop.permute.xlu0 %2690
    %v2693 = vsel %vm66, %v2691, %v2588
    %v2694 = vpack.c.bf16 %v2688, %v2688
    %v2696 = vsel %vm151, %v2694, 0
    %2698 = vmatpush.bf16.msra.mxu0 0
    %2699 = vmatpush.bf16.msra.mxu0 0
    %2700 = vmatpush.bf16.msra.mxu0 0
    %2701 = vmatpush.bf16.msra.mxu0 0
    %2702 = vmatpush.bf16.msra.mxu0 %v2377
    %2703 = vmatpush.bf16.msra.mxu0 %v2375
    %2704 = vmatpush.bf16.msra.mxu0 %v2373
    %2705 = vmatpush.bf16.msra.mxu0 %v2371
    %2706 = vmatmul.bf16.gmra.mxu0 %v2696
    %v2707 = vpop.f32.mrf.mxu0
    %v2708 = vadd.f32 0.0, %v2707
    %v2709 = vpop.f32.mrf.mxu0
    %2710 = vdwg.mxu0
    %2711 = vmatpush.bf16.msra.mxu0 0
    %2712 = vmatpush.bf16.msra.mxu0 0
    %2713 = vmatpush.bf16.msra.mxu0 0
    %2714 = vmatpush.bf16.msra.mxu0 0
    %2715 = vmatpush.bf16.msra.mxu0 %v2378
    %2716 = vmatpush.bf16.msra.mxu0 %v2376
    %2717 = vmatpush.bf16.msra.mxu0 %v2374
    %2718 = vmatpush.bf16.msra.mxu0 %v2372
    %2719 = vmatmul.bf16.gmra.mxu0 %v2696
    %v2720 = vpop.f32.mrf.mxu0
    %v2721 = vadd.f32 0.0, %v2720
    %v2722 = vpop.f32.mrf.mxu0
    %2723 = vdwg.mxu0
    %v2724 = vld [vmem:[#allocation4 + $0x30] sm:$0xff]
    %v2725 = vld [vmem:[#allocation4 + $0x38] sm:$0xff]
    %v2726 = vld [vmem:[#allocation4 + $0x40] sm:$0xff]
    %v2727 = vld [vmem:[#allocation4 + $0x48] sm:$0xff]
    %v2728 = vsel %vm53, %v2724, %v2726
    %v2729 = vsel %vm54, %v2725, %v2727
    %v2730 = vadd.f32 %v2728, %v2708
    %v2731 = vadd.f32 %v2729, %v2721
    %v2732 = vxor.u32 %v2730, 2147483648
    %v2733 = vxor.u32 %v2731, 2147483648
    %v2734 = vmul.f32 %v2732, 1.442695
    %v2735 = vpow.pop %v2734
    %v2736 = vmul.f32 %v2733, 1.442695
    %v2737 = vpow.pop %v2736
    %v2738 = vadd.f32 %v2735, 1.0
    %v2739 = vadd.f32 %v2737, 1.0
    %v2740 = vrcp.pop %v2738
    %v2741 = vmul.f32 %v2738, %v2740
    %v2742 = vsub.f32 1.0, %v2741
    %v2743 = vmul.f32 %v2740, %v2742
    %v2744 = vadd.f32 %v2740, %v2743
    %vm2745 = vweird.f32 %v2738
    %vm2746 = vweird.f32 %v2740
    %vm2747 = vmor %vm2745, %vm2746
    %v2748 = vsel %vm2747, %v2740, %v2744
    %v2749 = vand.u32 2147483647, %v2738
    %vm2750 = vcmp.eq.f32.partialorder %v2749, 8.507059e+37
    %v2751 = vand.u32 %v2738, 2147483648
    %v2752 = vor.u32 1.1754944e-38, %v2751
    %v2753 = vsel %vm2750, %v2752, %v2748
    %v2754 = vmul.f32 1.0, %v2753
    %v2755 = vrcp.pop %v2739
    %v2756 = vmul.f32 %v2739, %v2755
    %v2757 = vsub.f32 1.0, %v2756
    %v2758 = vmul.f32 %v2755, %v2757
    %v2759 = vadd.f32 %v2755, %v2758
    %vm2760 = vweird.f32 %v2739
    %vm2761 = vweird.f32 %v2755
    %vm2762 = vmor %vm2760, %vm2761
    %v2763 = vsel %vm2762, %v2755, %v2759
    %v2764 = vand.u32 2147483647, %v2739
    %vm2765 = vcmp.eq.f32.partialorder %v2764, 8.507059e+37
    %v2766 = vand.u32 %v2739, 2147483648
    %v2767 = vor.u32 1.1754944e-38, %v2766
    %v2768 = vsel %vm2765, %v2767, %v2763
    %v2769 = vmul.f32 1.0, %v2768
    %v2770 = vmul.f32 %v2754, 2.0
    %v2771 = vmul.f32 %v2769, 2.0
    %v2772 = vsub.f32 %v2770, 1.0
    %v2773 = vsub.f32 %v2771, 1.0
    %v2774 = vsel %vm59, %v2772, %v2754
    %v2775 = vsel %vm60, %v2773, %v2769
    %2777 = vrot.lane.b32.xlu0 %v2693, 64
    %v2778 = vpop.permute.xlu0 %2777
    %v2780 = vmul.f32 %v2774, %v2778
    %v2781 = vmul.f32 %v2774, %v2775
    %2783 = vrot.lane.b32.xlu0 %v2781, 64
    %v2784 = vpop.permute.xlu0 %2783
    %v2786 = vadd.f32 %v2780, %v2784
    %v2787 = vtanh.pop %v2786
    %v2788 = vmul.f32 %v2775, %v2787
    %2790 = vrot.lane.b32.xlu0 %v2788, 64
    %v2791 = vpop.permute.xlu0 %2790
    %v2793 = vsel %vm68, %v2791, %v2688
    %2795 = vrot.lane.b32.xlu0 %v2786, 64
    %v2796 = vpop.permute.xlu0 %2795
    %v2798 = vsel %vm68, %v2796, %v2693
    %v2799 = vpack.c.bf16 %v2793, %v2793
    %v2801 = vsel %vm151, %v2799, 0
    %2803 = vmatpush.bf16.msra.mxu0 0
    %2804 = vmatpush.bf16.msra.mxu0 0
    %2805 = vmatpush.bf16.msra.mxu0 0
    %2806 = vmatpush.bf16.msra.mxu0 0
    %2807 = vmatpush.bf16.msra.mxu0 %v2377
    %2808 = vmatpush.bf16.msra.mxu0 %v2375
    %2809 = vmatpush.bf16.msra.mxu0 %v2373
    %2810 = vmatpush.bf16.msra.mxu0 %v2371
    %2811 = vmatmul.bf16.gmra.mxu0 %v2801
    %v2812 = vpop.f32.mrf.mxu0
    %v2813 = vadd.f32 0.0, %v2812
    %v2814 = vpop.f32.mrf.mxu0
    %2815 = vdwg.mxu0
    %2816 = vmatpush.bf16.msra.mxu0 0
    %2817 = vmatpush.bf16.msra.mxu0 0
    %2818 = vmatpush.bf16.msra.mxu0 0
    %2819 = vmatpush.bf16.msra.mxu0 0
    %2820 = vmatpush.bf16.msra.mxu0 %v2378
    %2821 = vmatpush.bf16.msra.mxu0 %v2376
    %2822 = vmatpush.bf16.msra.mxu0 %v2374
    %2823 = vmatpush.bf16.msra.mxu0 %v2372
    %2824 = vmatmul.bf16.gmra.mxu0 %v2801
    %v2825 = vpop.f32.mrf.mxu0
    %v2826 = vadd.f32 0.0, %v2825
    %v2827 = vpop.f32.mrf.mxu0
    %2828 = vdwg.mxu0
    %v2829 = vsel %vm53, %v2726, %v2724
    %v2830 = vsel %vm54, %v2727, %v2725
    %v2831 = vadd.f32 %v2829, %v2813
    %v2832 = vadd.f32 %v2830, %v2826
    %v2833 = vxor.u32 %v2831, 2147483648
    %v2834 = vxor.u32 %v2832, 2147483648
    %v2835 = vmul.f32 %v2833, 1.442695
    %v2836 = vpow.pop %v2835
    %v2837 = vmul.f32 %v2834, 1.442695
    %v2838 = vpow.pop %v2837
    %v2839 = vadd.f32 %v2836, 1.0
    %v2840 = vadd.f32 %v2838, 1.0
    %v2841 = vrcp.pop %v2839
    %v2842 = vmul.f32 %v2839, %v2841
    %v2843 = vsub.f32 1.0, %v2842
    %v2844 = vmul.f32 %v2841, %v2843
    %v2845 = vadd.f32 %v2841, %v2844
    %vm2846 = vweird.f32 %v2839
    %vm2847 = vweird.f32 %v2841
    %vm2848 = vmor %vm2846, %vm2847
    %v2849 = vsel %vm2848, %v2841, %v2845
    %v2850 = vand.u32 2147483647, %v2839
    %vm2851 = vcmp.eq.f32.partialorder %v2850, 8.507059e+37
    %v2852 = vand.u32 %v2839, 2147483648
    %v2853 = vor.u32 1.1754944e-38, %v2852
    %v2854 = vsel %vm2851, %v2853, %v2849
    %v2855 = vmul.f32 1.0, %v2854
    %v2856 = vrcp.pop %v2840
    %v2857 = vmul.f32 %v2840, %v2856
    %v2858 = vsub.f32 1.0, %v2857
    %v2859 = vmul.f32 %v2856, %v2858
    %v2860 = vadd.f32 %v2856, %v2859
    %vm2861 = vweird.f32 %v2840
    %vm2862 = vweird.f32 %v2856
    %vm2863 = vmor %vm2861, %vm2862
    %v2864 = vsel %vm2863, %v2856, %v2860
    %v2865 = vand.u32 2147483647, %v2840
    %vm2866 = vcmp.eq.f32.partialorder %v2865, 8.507059e+37
    %v2867 = vand.u32 %v2840, 2147483648
    %v2868 = vor.u32 1.1754944e-38, %v2867
    %v2869 = vsel %vm2866, %v2868, %v2864
    %v2870 = vmul.f32 1.0, %v2869
    %v2871 = vmul.f32 %v2855, 2.0
    %v2872 = vmul.f32 %v2870, 2.0
    %v2873 = vsub.f32 %v2871, 1.0
    %v2874 = vsub.f32 %v2872, 1.0
    %v2875 = vsel %vm59, %v2873, %v2855
    %v2876 = vsel %vm60, %v2874, %v2870
    %2878 = vrot.lane.b32.xlu0 %v2798, 64
    %v2879 = vpop.permute.xlu0 %2878
    %v2881 = vmul.f32 %v2875, %v2879
    %v2882 = vmul.f32 %v2875, %v2876
    %2884 = vrot.lane.b32.xlu0 %v2882, 64
    %v2885 = vpop.permute.xlu0 %2884
    %v2887 = vadd.f32 %v2881, %v2885
    %v2888 = vtanh.pop %v2887
    %v2889 = vmul.f32 %v2876, %v2888
    %2891 = vrot.lane.b32.xlu0 %v2889, 64
    %v2892 = vpop.permute.xlu0 %2891
    %v2894 = vsel %vm70, %v2892, %v2793
    %2896 = vrot.lane.b32.xlu0 %v2887, 64
    %v2897 = vpop.permute.xlu0 %2896
    %v2899 = vsel %vm70, %v2897, %v2798
    %v2900 = vpack.c.bf16 %v2894, %v2894
    %v2902 = vsel %vm151, %v2900, 0
    %2904 = vmatpush.bf16.msra.mxu0 0
    %2905 = vmatpush.bf16.msra.mxu0 0
    %2906 = vmatpush.bf16.msra.mxu0 0
    %2907 = vmatpush.bf16.msra.mxu0 0
    %2908 = vmatpush.bf16.msra.mxu0 %v2377
    %2909 = vmatpush.bf16.msra.mxu0 %v2375
    %2910 = vmatpush.bf16.msra.mxu0 %v2373
    %2911 = vmatpush.bf16.msra.mxu0 %v2371
    %2912 = vmatmul.bf16.gmra.mxu0 %v2902
    %v2913 = vpop.f32.mrf.mxu0
    %v2914 = vadd.f32 0.0, %v2913
    %v2915 = vpop.f32.mrf.mxu0
    %2916 = vdwg.mxu0
    %2917 = vmatpush.bf16.msra.mxu0 0
    %2918 = vmatpush.bf16.msra.mxu0 0
    %2919 = vmatpush.bf16.msra.mxu0 0
    %2920 = vmatpush.bf16.msra.mxu0 0
    %2921 = vmatpush.bf16.msra.mxu0 %v2378
    %2922 = vmatpush.bf16.msra.mxu0 %v2376
    %2923 = vmatpush.bf16.msra.mxu0 %v2374
    %2924 = vmatpush.bf16.msra.mxu0 %v2372
    %2925 = vmatmul.bf16.gmra.mxu0 %v2902
    %v2926 = vpop.f32.mrf.mxu0
    %v2927 = vadd.f32 0.0, %v2926
    %v2928 = vpop.f32.mrf.mxu0
    %2929 = vdwg.mxu0
    %v2930 = vsel %vm53, %v2621, %v2619
    %v2931 = vsel %vm54, %v2622, %v2620
    %v2932 = vadd.f32 %v2930, %v2914
    %v2933 = vadd.f32 %v2931, %v2927
    %v2934 = vxor.u32 %v2932, 2147483648
    %v2935 = vxor.u32 %v2933, 2147483648
    %v2936 = vmul.f32 %v2934, 1.442695
    %v2937 = vpow.pop %v2936
    %v2938 = vmul.f32 %v2935, 1.442695
    %v2939 = vpow.pop %v2938
    %v2940 = vadd.f32 %v2937, 1.0
    %v2941 = vadd.f32 %v2939, 1.0
    %v2942 = vrcp.pop %v2940
    %v2943 = vmul.f32 %v2940, %v2942
    %v2944 = vsub.f32 1.0, %v2943
    %v2945 = vmul.f32 %v2942, %v2944
    %v2946 = vadd.f32 %v2942, %v2945
    %vm2947 = vweird.f32 %v2940
    %vm2948 = vweird.f32 %v2942
    %vm2949 = vmor %vm2947, %vm2948
    %v2950 = vsel %vm2949, %v2942, %v2946
    %v2951 = vand.u32 2147483647, %v2940
    %vm2952 = vcmp.eq.f32.partialorder %v2951, 8.507059e+37
    %v2953 = vand.u32 %v2940, 2147483648
    %v2954 = vor.u32 1.1754944e-38, %v2953
    %v2955 = vsel %vm2952, %v2954, %v2950
    %v2956 = vmul.f32 1.0, %v2955
    %v2957 = vrcp.pop %v2941
    %v2958 = vmul.f32 %v2941, %v2957
    %v2959 = vsub.f32 1.0, %v2958
    %v2960 = vmul.f32 %v2957, %v2959
    %v2961 = vadd.f32 %v2957, %v2960
    %vm2962 = vweird.f32 %v2941
    %vm2963 = vweird.f32 %v2957
    %vm2964 = vmor %vm2962, %vm2963
    %v2965 = vsel %vm2964, %v2957, %v2961
    %v2966 = vand.u32 2147483647, %v2941
    %vm2967 = vcmp.eq.f32.partialorder %v2966, 8.507059e+37
    %v2968 = vand.u32 %v2941, 2147483648
    %v2969 = vor.u32 1.1754944e-38, %v2968
    %v2970 = vsel %vm2967, %v2969, %v2965
    %v2971 = vmul.f32 1.0, %v2970
    %v2972 = vmul.f32 %v2956, 2.0
    %v2973 = vmul.f32 %v2971, 2.0
    %v2974 = vsub.f32 %v2972, 1.0
    %v2975 = vsub.f32 %v2973, 1.0
    %v2976 = vsel %vm59, %v2974, %v2956
    %v2977 = vsel %vm60, %v2975, %v2971
    %2979 = vrot.lane.b32.xlu0 %v2899, 64
    %v2980 = vpop.permute.xlu0 %2979
    %v2982 = vmul.f32 %v2976, %v2980
    %v2983 = vmul.f32 %v2976, %v2977
    %2985 = vrot.lane.b32.xlu0 %v2983, 64
    %v2986 = vpop.permute.xlu0 %2985
    %v2988 = vadd.f32 %v2982, %v2986
    %v2989 = vtanh.pop %v2988
    %v2990 = vmul.f32 %v2977, %v2989
    %2992 = vrot.lane.b32.xlu0 %v2990, 64
    %v2993 = vpop.permute.xlu0 %2992
    %v2995 = vsel %vm72, %v2993, %v2894
    %2997 = vrot.lane.b32.xlu0 %v2988, 64
    %v2998 = vpop.permute.xlu0 %2997
    %v3000 = vsel %vm72, %v2998, %v2899
    %v3001 = vpack.c.bf16 %v2995, %v2995
    %v3003 = vsel %vm151, %v3001, 0
    %3005 = vmatpush.bf16.msra.mxu0 0
    %3006 = vmatpush.bf16.msra.mxu0 0
    %3007 = vmatpush.bf16.msra.mxu0 0
    %3008 = vmatpush.bf16.msra.mxu0 0
    %3009 = vmatpush.bf16.msra.mxu0 %v2377
    %3010 = vmatpush.bf16.msra.mxu0 %v2375
    %3011 = vmatpush.bf16.msra.mxu0 %v2373
    %3012 = vmatpush.bf16.msra.mxu0 %v2371
    %3013 = vmatmul.bf16.gmra.mxu0 %v3003
    %v3014 = vpop.f32.mrf.mxu0
    %v3015 = vadd.f32 0.0, %v3014
    %v3016 = vpop.f32.mrf.mxu0
    %3017 = vdwg.mxu0
    %3018 = vmatpush.bf16.msra.mxu0 0
    %3019 = vmatpush.bf16.msra.mxu0 0
    %3020 = vmatpush.bf16.msra.mxu0 0
    %3021 = vmatpush.bf16.msra.mxu0 0
    %3022 = vmatpush.bf16.msra.mxu0 %v2378
    %3023 = vmatpush.bf16.msra.mxu0 %v2376
    %3024 = vmatpush.bf16.msra.mxu0 %v2374
    %3025 = vmatpush.bf16.msra.mxu0 %v2372
    %3026 = vmatmul.bf16.gmra.mxu0 %v3003
    %v3027 = vpop.f32.mrf.mxu0
    %v3028 = vadd.f32 0.0, %v3027
    %v3029 = vpop.f32.mrf.mxu0
    %3030 = vdwg.mxu0
    %v3031 = vsel %vm53, %v2516, %v2514
    %v3032 = vsel %vm54, %v2517, %v2515
    %v3033 = vadd.f32 %v3031, %v3015
    %v3034 = vadd.f32 %v3032, %v3028
    %v3035 = vxor.u32 %v3033, 2147483648
    %v3036 = vxor.u32 %v3034, 2147483648
    %v3037 = vmul.f32 %v3035, 1.442695
    %v3038 = vpow.pop %v3037
    %v3039 = vmul.f32 %v3036, 1.442695
    %v3040 = vpow.pop %v3039
    %v3041 = vadd.f32 %v3038, 1.0
    %v3042 = vadd.f32 %v3040, 1.0
    %v3043 = vrcp.pop %v3041
    %v3044 = vmul.f32 %v3041, %v3043
    %v3045 = vsub.f32 1.0, %v3044
    %v3046 = vmul.f32 %v3043, %v3045
    %v3047 = vadd.f32 %v3043, %v3046
    %vm3048 = vweird.f32 %v3041
    %vm3049 = vweird.f32 %v3043
    %vm3050 = vmor %vm3048, %vm3049
    %v3051 = vsel %vm3050, %v3043, %v3047
    %v3052 = vand.u32 2147483647, %v3041
    %vm3053 = vcmp.eq.f32.partialorder %v3052, 8.507059e+37
    %v3054 = vand.u32 %v3041, 2147483648
    %v3055 = vor.u32 1.1754944e-38, %v3054
    %v3056 = vsel %vm3053, %v3055, %v3051
    %v3057 = vmul.f32 1.0, %v3056
    %v3058 = vrcp.pop %v3042
    %v3059 = vmul.f32 %v3042, %v3058
    %v3060 = vsub.f32 1.0, %v3059
    %v3061 = vmul.f32 %v3058, %v3060
    %v3062 = vadd.f32 %v3058, %v3061
    %vm3063 = vweird.f32 %v3042
    %vm3064 = vweird.f32 %v3058
    %vm3065 = vmor %vm3063, %vm3064
    %v3066 = vsel %vm3065, %v3058, %v3062
    %v3067 = vand.u32 2147483647, %v3042
    %vm3068 = vcmp.eq.f32.partialorder %v3067, 8.507059e+37
    %v3069 = vand.u32 %v3042, 2147483648
    %v3070 = vor.u32 1.1754944e-38, %v3069
    %v3071 = vsel %vm3068, %v3070, %v3066
    %v3072 = vmul.f32 1.0, %v3071
    %v3073 = vmul.f32 %v3057, 2.0
    %v3074 = vmul.f32 %v3072, 2.0
    %v3075 = vsub.f32 %v3073, 1.0
    %v3076 = vsub.f32 %v3074, 1.0
    %v3077 = vsel %vm59, %v3075, %v3057
    %v3078 = vsel %vm60, %v3076, %v3072
    %3080 = vrot.lane.b32.xlu0 %v3000, 64
    %v3081 = vpop.permute.xlu0 %3080
    %v3083 = vmul.f32 %v3077, %v3081
    %v3084 = vmul.f32 %v3077, %v3078
    %3086 = vrot.lane.b32.xlu0 %v3084, 64
    %v3087 = vpop.permute.xlu0 %3086
    %v3089 = vadd.f32 %v3083, %v3087
    %v3090 = vtanh.pop %v3089
    %v3091 = vmul.f32 %v3078, %v3090
    %3093 = vrot.lane.b32.xlu0 %v3091, 64
    %v3094 = vpop.permute.xlu0 %3093
    %v3096 = vsel %vm74, %v3094, %v2995
    %3098 = vrot.lane.b32.xlu0 %v3089, 64
    %v3099 = vpop.permute.xlu0 %3098
    %v3101 = vsel %vm74, %v3099, %v3000
    %v3102 = vpack.c.bf16 %v3096, %v3096
    %v3104 = vsel %vm151, %v3102, 0
    %3106 = vmatpush.bf16.msra.mxu0 0
    %3107 = vmatpush.bf16.msra.mxu0 0
    %3108 = vmatpush.bf16.msra.mxu0 0
    %3109 = vmatpush.bf16.msra.mxu0 0
    %3110 = vmatpush.bf16.msra.mxu0 %v2377
    %3111 = vmatpush.bf16.msra.mxu0 %v2375
    %3112 = vmatpush.bf16.msra.mxu0 %v2373
    %3113 = vmatpush.bf16.msra.mxu0 %v2371
    %3114 = vmatmul.bf16.gmra.mxu0 %v3104
    %v3115 = vpop.f32.mrf.mxu0
    %v3116 = vadd.f32 0.0, %v3115
    %v3117 = vpop.f32.mrf.mxu0
    %3118 = vdwg.mxu0
    %3119 = vmatpush.bf16.msra.mxu0 0
    %3120 = vmatpush.bf16.msra.mxu0 0
    %3121 = vmatpush.bf16.msra.mxu0 0
    %3122 = vmatpush.bf16.msra.mxu0 0
    %3123 = vmatpush.bf16.msra.mxu0 %v2378
    %3124 = vmatpush.bf16.msra.mxu0 %v2376
    %3125 = vmatpush.bf16.msra.mxu0 %v2374
    %3126 = vmatpush.bf16.msra.mxu0 %v2372
    %3127 = vmatmul.bf16.gmra.mxu0 %v3104
    %v3128 = vpop.f32.mrf.mxu0
    %v3129 = vadd.f32 0.0, %v3128
    %v3130 = vpop.f32.mrf.mxu0
    %3131 = vdwg.mxu0
    %v3132 = vsel %vm53, %v2415, %v2413
    %v3133 = vsel %vm54, %v2416, %v2414
    %v3134 = vadd.f32 %v3132, %v3116
    %v3135 = vadd.f32 %v3133, %v3129
    %v3136 = vxor.u32 %v3134, 2147483648
    %v3137 = vxor.u32 %v3135, 2147483648
    %v3138 = vmul.f32 %v3136, 1.442695
    %v3139 = vpow.pop %v3138
    %v3140 = vmul.f32 %v3137, 1.442695
    %v3141 = vpow.pop %v3140
    %v3142 = vadd.f32 %v3139, 1.0
    %v3143 = vadd.f32 %v3141, 1.0
    %v3144 = vrcp.pop %v3142
    %v3145 = vmul.f32 %v3142, %v3144
    %v3146 = vsub.f32 1.0, %v3145
    %v3147 = vmul.f32 %v3144, %v3146
    %v3148 = vadd.f32 %v3144, %v3147
    %vm3149 = vweird.f32 %v3142
    %vm3150 = vweird.f32 %v3144
    %vm3151 = vmor %vm3149, %vm3150
    %v3152 = vsel %vm3151, %v3144, %v3148
    %v3153 = vand.u32 2147483647, %v3142
    %vm3154 = vcmp.eq.f32.partialorder %v3153, 8.507059e+37
    %v3155 = vand.u32 %v3142, 2147483648
    %v3156 = vor.u32 1.1754944e-38, %v3155
    %v3157 = vsel %vm3154, %v3156, %v3152
    %v3158 = vmul.f32 1.0, %v3157
    %v3159 = vrcp.pop %v3143
    %v3160 = vmul.f32 %v3143, %v3159
    %v3161 = vsub.f32 1.0, %v3160
    %v3162 = vmul.f32 %v3159, %v3161
    %v3163 = vadd.f32 %v3159, %v3162
    %vm3164 = vweird.f32 %v3143
    %vm3165 = vweird.f32 %v3159
    %vm3166 = vmor %vm3164, %vm3165
    %v3167 = vsel %vm3166, %v3159, %v3163
    %v3168 = vand.u32 2147483647, %v3143
    %vm3169 = vcmp.eq.f32.partialorder %v3168, 8.507059e+37
    %v3170 = vand.u32 %v3143, 2147483648
    %v3171 = vor.u32 1.1754944e-38, %v3170
    %v3172 = vsel %vm3169, %v3171, %v3167
    %v3173 = vmul.f32 1.0, %v3172
    %v3174 = vmul.f32 %v3158, 2.0
    %v3175 = vmul.f32 %v3173, 2.0
    %v3176 = vsub.f32 %v3174, 1.0
    %v3177 = vsub.f32 %v3175, 1.0
    %v3178 = vsel %vm59, %v3176, %v3158
    %v3179 = vsel %vm60, %v3177, %v3173
    %3181 = vrot.lane.b32.xlu0 %v3101, 64
    %v3182 = vpop.permute.xlu0 %3181
    %v3184 = vmul.f32 %v3178, %v3182
    %v3185 = vmul.f32 %v3178, %v3179
    %3187 = vrot.lane.b32.xlu0 %v3185, 64
    %v3188 = vpop.permute.xlu0 %3187
    %v3190 = vadd.f32 %v3184, %v3188
    %v3191 = vtanh.pop %v3190
    %v3192 = vmul.f32 %v3179, %v3191
    %3194 = vrot.lane.b32.xlu0 %v3192, 64
    %v3195 = vpop.permute.xlu0 %3194
    %v3197 = vsel %vm76, %v3195, %v3096
    %v3198 = vpack.c.bf16 %v3197, %v3197
    %v3199 = vld [vmem:[%s5] sm:$0xf]
    %v3200 = vld [vmem:[%s5 + $0x4] sm:$0xf]
    %v3201 = vld [vmem:[%s5 + $0x8] sm:$0xf]
    %v3202 = vld [vmem:[%s5 + $0xc] sm:$0xf]
    %v3203 = vld [vmem:[%s5 + $0x10] sm:$0xf]
    %v3204 = vld [vmem:[%s5 + $0x14] sm:$0xf]
    %v3205 = vld [vmem:[%s5 + $0x18] sm:$0xf]
    %v3206 = vld [vmem:[%s5 + $0x1c] sm:$0xf]
    %v3207 = vld [vmem:[%s6] sm:$0x1]
    %v3209 = vperm.slane %v3207, 0
    %v3219 = vunpack.c.l.b16 %v3199
    %v3220 = vunpack.c.l.b16 %v3200
    %v3221 = vunpack.c.l.b16 %v3201
    %v3222 = vunpack.c.l.b16 %v3202
    %v3223 = vunpack.c.l.b16 %v3203
    %v3224 = vunpack.c.l.b16 %v3204
    %v3225 = vunpack.c.l.b16 %v3205
    %v3226 = vunpack.c.l.b16 %v3206
    %v3227 = vpack.c.b16 %v3220, %v3219
    %v3228 = vpack.c.b16 %v3222, %v3221
    %v3229 = vpack.c.b16 %v3224, %v3223
    %v3230 = vpack.c.b16 %v3226, %v3225
    %v3236 = vsel %vm151, %v3198, 0
    %3238 = vmatpush.bf16.msra.mxu0 0
    %3239 = vmatpush.bf16.msra.mxu0 0
    %3240 = vmatpush.bf16.msra.mxu0 0
    %3241 = vmatpush.bf16.msra.mxu0 0
    %3242 = vmatpush.bf16.msra.mxu0 %v3230
    %3243 = vmatpush.bf16.msra.mxu0 %v3229
    %3244 = vmatpush.bf16.msra.mxu0 %v3228
    %3245 = vmatpush.bf16.msra.mxu0 %v3227
    %3246 = vmatmul.bf16.gmra.mxu0 %v3236
    %v3247 = vpop.f32.mrf.mxu0
    %v3248 = vadd.f32 %v3209, %v3247
    %v3249 = vpop.f32.mrf.mxu0
    %3250 = vdwg.mxu0
    %3251 = vst [vmem:[%s7] sm:$0xff] %v3248
    // Predicated region
    $region34: #{lstm_forward.1} parent=1 // pred_check
      _
    $region35: #{lstm_forward.1} parent=1 // pred_check_branch
      %3253 = sbr.rel (0) target = $region37
    $region36: #{lstm_forward.1} parent=1 // pred_region
      _
    $region37: #{lstm_forward.1} parent=1 // pred_fallthru
      _
    // Predicated region
    $region38: #{lstm_forward.1} parent=1 // pred_check
      _
    $region39: #{lstm_forward.1} parent=1 // pred_check_branch
      %3255 = sbr.rel (0) target = $region41
    $region40: #{lstm_forward.1} parent=1 // pred_region
      _
    $region41: #{lstm_forward.1} parent=1 // pred_fallthru
      _
    %3256 = vsyncpa [#allocation6], 1

</llo_original>
